<compile_context>
chip_gen: v5e
topology: v5e:2x2
jax: 0.10.0
libtpu: 0.0.40
codegen_flags: <defaults>
</compile_context>

<pallas_src>
import jax
import jax.numpy as jnp
from jax.experimental import pallas as pl
from jax.experimental.pallas import tpu as pltpu

# Layer sizes from the module's __init__.
LAYER_DIMS = [(252, 256), (256, 256), (256, 256), (256, 128),
              (128, 64), (64, 32), (32, 1)]
NEG_SLOPE = 0.01          # PyTorch F.leaky_relu default
IN_PAD = 256              # 252 features zero-padded to a lane-aligned width


def _round_up(n, m):
    return ((n + m - 1) // m) * m


def _leaky_relu(y):
    # one mul + one max on the VPU instead of compare + select + mul
    return jnp.maximum(y, NEG_SLOPE * y)


def _mlp_kernel(x_ref,
                w1, b1, w2, b2, w3, b3, w4, b4, w5, b5, w6, b6, w7t, b7,
                out_ref):
    """One batch tile of the fused 7-layer MLP.

    x_ref : (TB, 256)  bf16   features zero-padded 252 -> 256
    w1..w6: (in, out)  bf16   resident across grid steps (constant index_map)
    b1..b6: (1, out)   f32
    w7t   : (1, 32)    f32    fc7 weight, pre-transposed; applied on the VPU
    b7    : (1, 1)     f32
    out   : (TB, 1)    f32
    """
    def layer(h_bf16, w_ref, b_ref):
        # MXU matmul in bf16 with f32 accumulation; bias-add + activation in f32
        # (v5e has no bf16 VPU); cast back to bf16 only to feed the next matmul.
        y = jnp.dot(h_bf16, w_ref[...], preferred_element_type=jnp.float32)
        y = _leaky_relu(y + b_ref[...])
        return y.astype(jnp.bfloat16)

    h = x_ref[...]
    h = layer(h, w1, b1)
    h = layer(h, w2, b2)
    h = layer(h, w3, b3)
    h = layer(h, w4, b4)
    h = layer(h, w5, b5)
    h = layer(h, w6, b6)                                 # (TB, 32) bf16
    # fc7 (32 -> 1): degenerate N=1 MXU shape, so do it as VPU multiply + row-sum.
    y = jnp.sum(h.astype(jnp.float32) * w7t[...], axis=-1, keepdims=True) + b7[...]
    out_ref[...] = y.astype(out_ref.dtype)


def init_params(key):
    """PyTorch nn.Linear default init: U(-1/sqrt(fan_in), +1/sqrt(fan_in)); stored (in, out)."""
    params = []
    for fan_in, fan_out in LAYER_DIMS:
        key, kw, kb = jax.random.split(key, 3)
        bound = 1.0 / jnp.sqrt(fan_in)
        w = jax.random.uniform(kw, (fan_in, fan_out), jnp.float32, -bound, bound)
        b = jax.random.uniform(kb, (1, fan_out), jnp.float32, -bound, bound)
        params.append((w, b))
    return params


def _prepare_params(params):
    """Pad / cast the f32 reference params into the kernel's layout."""
    flat = []
    for i, (w, b) in enumerate(params):
        if i == 0:
            # zero-pad fc1 rows 252 -> 256 so the padded input columns are inert
            w = jnp.pad(w, ((0, IN_PAD - w.shape[0]), (0, 0)))
        if i < len(params) - 1:
            flat.extend([w.astype(jnp.bfloat16), b])     # bf16 weights, f32 biases
        else:
            flat.extend([w.T, b])                        # fc7 as (1, 32) f32
    return flat


def ca_fc_classifier_forward(x, params, *, tb=256):
    """Fused forward pass matching CA_FCClassifier.forward (discarded BatchNorms omitted)."""
    B = x.shape[0]
    tb = min(tb, _round_up(max(B, 1), 8))                # don't over-tile tiny batches
    b_pad = _round_up(B, tb)
    grid = (pl.cdiv(b_pad, tb),)

    x_p = jnp.pad(x.astype(jnp.float32),
                  ((0, b_pad - B), (0, IN_PAD - x.shape[1]))).astype(jnp.bfloat16)
    flat_params = _prepare_params(params)

    def resident(a):
        # full-array block, constant block index -> DMA'd once, kept resident
        return pl.BlockSpec(a.shape, lambda i: (0, 0))

    in_specs = [pl.BlockSpec((tb, IN_PAD), lambda i: (i, 0))]
    in_specs += [resident(a) for a in flat_params]

    out = pl.pallas_call(
        _mlp_kernel,
        out_shape=jax.ShapeDtypeStruct((b_pad, 1), jnp.float32),
        grid=grid,
        in_specs=in_specs,
        out_specs=pl.BlockSpec((tb, 1), lambda i: (i, 0)),
        compiler_params=pltpu.CompilerParams(
            dimension_semantics=("parallel",)),          # batch tiles across v7x's 2 TCs
    )(x_p, *flat_params)

    return jnp.squeeze(out[:B])                          # matches x.squeeze()


def reference_forward(x, params):
    h = x.astype(jnp.float32)
    for i, (w, b) in enumerate(params):
        h = h @ w + b
        if i < len(params) - 1:
            h = jnp.maximum(h, NEG_SLOPE * h)
    return jnp.squeeze(h)


if __name__ == "__main__":
    key = jax.random.PRNGKey(0)
    key, kx = jax.random.split(key)

    B = 500                                   # deliberately not a multiple of the 256-row tile
    x = jax.random.normal(kx, (B, 252), dtype=jnp.float32)
    params = init_params(jax.random.PRNGKey(0))

    out = jax.block_until_ready(ca_fc_classifier_forward(x, params))
    ref = reference_forward(x, params)

    assert out.shape == (B,), out.shape
    # bf16 matmul inputs vs. the f32 reference -> tolerance loosened accordingly
    max_err = float(jnp.max(jnp.abs(out - ref)))
    assert jnp.allclose(out, ref, atol=5e-2, rtol=5e-2), max_err

    print("KERNEL_OK")
</pallas_src>

<mosaic_0001>
module attributes {stable_mosaic.version = 11 : i64} {
  func.func @_mlp_kernel(%arg0: i32, %arg1: memref<256x256xbf16, #tpu.memory_space<vmem>>, %arg2: memref<256x256xbf16, #tpu.memory_space<vmem>>, %arg3: memref<1x256xf32, #tpu.memory_space<vmem>>, %arg4: memref<256x256xbf16, #tpu.memory_space<vmem>>, %arg5: memref<1x256xf32, #tpu.memory_space<vmem>>, %arg6: memref<256x256xbf16, #tpu.memory_space<vmem>>, %arg7: memref<1x256xf32, #tpu.memory_space<vmem>>, %arg8: memref<256x128xbf16, #tpu.memory_space<vmem>>, %arg9: memref<1x128xf32, #tpu.memory_space<vmem>>, %arg10: memref<128x64xbf16, #tpu.memory_space<vmem>>, %arg11: memref<1x64xf32, #tpu.memory_space<vmem>>, %arg12: memref<64x32xbf16, #tpu.memory_space<vmem>>, %arg13: memref<1x32xf32, #tpu.memory_space<vmem>>, %arg14: memref<1x32xf32, #tpu.memory_space<vmem>>, %arg15: memref<1x1xf32, #tpu.memory_space<vmem>>, %arg16: memref<256x1xf32, #tpu.memory_space<vmem>>) attributes {dimension_semantics = [#tpu.dimension_semantics<parallel>], iteration_bounds = array<i64: 2>, scalar_prefetch = 0 : i64, scratch_operands = 0 : i64, tpu.core_type = #tpu.core_type<tc>, window_params = [{transform_indices = @transform_0, window_bounds = array<i64: 256, 256>}, {pipeline_mode = #tpu.pipeline_mode<synchronous>, transform_indices = @transform_1, window_bounds = array<i64: 256, 256>}, {pipeline_mode = #tpu.pipeline_mode<synchronous>, transform_indices = @transform_2, window_bounds = array<i64: 1, 256>}, {pipeline_mode = #tpu.pipeline_mode<synchronous>, transform_indices = @transform_3, window_bounds = array<i64: 256, 256>}, {pipeline_mode = #tpu.pipeline_mode<synchronous>, transform_indices = @transform_4, window_bounds = array<i64: 1, 256>}, {pipeline_mode = #tpu.pipeline_mode<synchronous>, transform_indices = @transform_5, window_bounds = array<i64: 256, 256>}, {pipeline_mode = #tpu.pipeline_mode<synchronous>, transform_indices = @transform_6, window_bounds = array<i64: 1, 256>}, {pipeline_mode = #tpu.pipeline_mode<synchronous>, transform_indices = @transform_7, window_bounds = array<i64: 256, 128>}, {pipeline_mode = #tpu.pipeline_mode<synchronous>, transform_indices = @transform_8, window_bounds = array<i64: 1, 128>}, {pipeline_mode = #tpu.pipeline_mode<synchronous>, transform_indices = @transform_9, window_bounds = array<i64: 128, 64>}, {pipeline_mode = #tpu.pipeline_mode<synchronous>, transform_indices = @transform_10, window_bounds = array<i64: 1, 64>}, {pipeline_mode = #tpu.pipeline_mode<synchronous>, transform_indices = @transform_11, window_bounds = array<i64: 64, 32>}, {pipeline_mode = #tpu.pipeline_mode<synchronous>, transform_indices = @transform_12, window_bounds = array<i64: 1, 32>}, {pipeline_mode = #tpu.pipeline_mode<synchronous>, transform_indices = @transform_13, window_bounds = array<i64: 1, 32>}, {pipeline_mode = #tpu.pipeline_mode<synchronous>, transform_indices = @transform_14, window_bounds = array<i64: 1, 1>}, {transform_indices = @transform_15, window_bounds = array<i64: 256, 1>}]} {
    %c0 = arith.constant 0 : index
    %c0_0 = arith.constant 0 : index
    %0 = vector.load %arg1[%c0, %c0_0] : memref<256x256xbf16, #tpu.memory_space<vmem>>, vector<256x256xbf16>
    %c0_1 = arith.constant 0 : index
    %c0_2 = arith.constant 0 : index
    %1 = vector.load %arg2[%c0_1, %c0_2] : memref<256x256xbf16, #tpu.memory_space<vmem>>, vector<256x256xbf16>
    %cst = arith.constant dense<0.000000e+00> : vector<256x256xf32>
    %2 = tpu.matmul %0, %1, %cst {dimension_numbers = #tpu.dot_dimension_numbers<[1], [0], [0], [1], [0, 0, 1, 1], [], []>} : vector<256x256xbf16>, vector<256x256xbf16>, vector<256x256xf32> -> vector<256x256xf32>
    %c0_3 = arith.constant 0 : index
    %c0_4 = arith.constant 0 : index
    %3 = vector.load %arg3[%c0_3, %c0_4] : memref<1x256xf32, #tpu.memory_space<vmem>>, vector<1x256xf32>
    %4 = vector.broadcast %3 : vector<1x256xf32> to vector<256x256xf32>
    %5 = arith.addf %2, %4 : vector<256x256xf32>
    %cst_5 = arith.constant 0.00999999977 : f32
    %6 = vector.broadcast %cst_5 : f32 to vector<256x256xf32>
    %7 = arith.mulf %6, %5 : vector<256x256xf32>
    %8 = arith.maximumf %5, %7 : vector<256x256xf32>
    %9 = arith.truncf %8 : vector<256x256xf32> to vector<256x256xbf16>
    %c0_6 = arith.constant 0 : index
    %c0_7 = arith.constant 0 : index
    %10 = vector.load %arg4[%c0_6, %c0_7] : memref<256x256xbf16, #tpu.memory_space<vmem>>, vector<256x256xbf16>
    %cst_8 = arith.constant dense<0.000000e+00> : vector<256x256xf32>
    %11 = tpu.matmul %9, %10, %cst_8 {dimension_numbers = #tpu.dot_dimension_numbers<[1], [0], [0], [1], [0, 0, 1, 1], [], []>} : vector<256x256xbf16>, vector<256x256xbf16>, vector<256x256xf32> -> vector<256x256xf32>
    %c0_9 = arith.constant 0 : index
    %c0_10 = arith.constant 0 : index
    %12 = vector.load %arg5[%c0_9, %c0_10] : memref<1x256xf32, #tpu.memory_space<vmem>>, vector<1x256xf32>
    %13 = vector.broadcast %12 : vector<1x256xf32> to vector<256x256xf32>
    %14 = arith.addf %11, %13 : vector<256x256xf32>
    %cst_11 = arith.constant 0.00999999977 : f32
    %15 = vector.broadcast %cst_11 : f32 to vector<256x256xf32>
    %16 = arith.mulf %15, %14 : vector<256x256xf32>
    %17 = arith.maximumf %14, %16 : vector<256x256xf32>
    %18 = arith.truncf %17 : vector<256x256xf32> to vector<256x256xbf16>
    %c0_12 = arith.constant 0 : index
    %c0_13 = arith.constant 0 : index
    %19 = vector.load %arg6[%c0_12, %c0_13] : memref<256x256xbf16, #tpu.memory_space<vmem>>, vector<256x256xbf16>
    %cst_14 = arith.constant dense<0.000000e+00> : vector<256x256xf32>
    %20 = tpu.matmul %18, %19, %cst_14 {dimension_numbers = #tpu.dot_dimension_numbers<[1], [0], [0], [1], [0, 0, 1, 1], [], []>} : vector<256x256xbf16>, vector<256x256xbf16>, vector<256x256xf32> -> vector<256x256xf32>
    %c0_15 = arith.constant 0 : index
    %c0_16 = arith.constant 0 : index
    %21 = vector.load %arg7[%c0_15, %c0_16] : memref<1x256xf32, #tpu.memory_space<vmem>>, vector<1x256xf32>
    %22 = vector.broadcast %21 : vector<1x256xf32> to vector<256x256xf32>
    %23 = arith.addf %20, %22 : vector<256x256xf32>
    %cst_17 = arith.constant 0.00999999977 : f32
    %24 = vector.broadcast %cst_17 : f32 to vector<256x256xf32>
    %25 = arith.mulf %24, %23 : vector<256x256xf32>
    %26 = arith.maximumf %23, %25 : vector<256x256xf32>
    %27 = arith.truncf %26 : vector<256x256xf32> to vector<256x256xbf16>
    %c0_18 = arith.constant 0 : index
    %c0_19 = arith.constant 0 : index
    %28 = vector.load %arg8[%c0_18, %c0_19] : memref<256x128xbf16, #tpu.memory_space<vmem>>, vector<256x128xbf16>
    %cst_20 = arith.constant dense<0.000000e+00> : vector<256x128xf32>
    %29 = tpu.matmul %27, %28, %cst_20 {dimension_numbers = #tpu.dot_dimension_numbers<[1], [0], [0], [1], [0, 0, 1, 1], [], []>} : vector<256x256xbf16>, vector<256x128xbf16>, vector<256x128xf32> -> vector<256x128xf32>
    %c0_21 = arith.constant 0 : index
    %c0_22 = arith.constant 0 : index
    %30 = vector.load %arg9[%c0_21, %c0_22] : memref<1x128xf32, #tpu.memory_space<vmem>>, vector<1x128xf32>
    %31 = vector.broadcast %30 : vector<1x128xf32> to vector<256x128xf32>
    %32 = arith.addf %29, %31 : vector<256x128xf32>
    %cst_23 = arith.constant 0.00999999977 : f32
    %33 = vector.broadcast %cst_23 : f32 to vector<256x128xf32>
    %34 = arith.mulf %33, %32 : vector<256x128xf32>
    %35 = arith.maximumf %32, %34 : vector<256x128xf32>
    %36 = arith.truncf %35 : vector<256x128xf32> to vector<256x128xbf16>
    %c0_24 = arith.constant 0 : index
    %c0_25 = arith.constant 0 : index
    %37 = vector.load %arg10[%c0_24, %c0_25] : memref<128x64xbf16, #tpu.memory_space<vmem>>, vector<128x64xbf16>
    %cst_26 = arith.constant dense<0.000000e+00> : vector<256x64xf32>
    %38 = tpu.matmul %36, %37, %cst_26 {dimension_numbers = #tpu.dot_dimension_numbers<[1], [0], [0], [1], [0, 0, 1, 1], [], []>} : vector<256x128xbf16>, vector<128x64xbf16>, vector<256x64xf32> -> vector<256x64xf32>
    %c0_27 = arith.constant 0 : index
    %c0_28 = arith.constant 0 : index
    %39 = vector.load %arg11[%c0_27, %c0_28] : memref<1x64xf32, #tpu.memory_space<vmem>>, vector<1x64xf32>
    %40 = vector.broadcast %39 : vector<1x64xf32> to vector<256x64xf32>
    %41 = arith.addf %38, %40 : vector<256x64xf32>
    %cst_29 = arith.constant 0.00999999977 : f32
    %42 = vector.broadcast %cst_29 : f32 to vector<256x64xf32>
    %43 = arith.mulf %42, %41 : vector<256x64xf32>
    %44 = arith.maximumf %41, %43 : vector<256x64xf32>
    %45 = arith.truncf %44 : vector<256x64xf32> to vector<256x64xbf16>
    %c0_30 = arith.constant 0 : index
    %c0_31 = arith.constant 0 : index
    %46 = vector.load %arg12[%c0_30, %c0_31] : memref<64x32xbf16, #tpu.memory_space<vmem>>, vector<64x32xbf16>
    %cst_32 = arith.constant dense<0.000000e+00> : vector<256x32xf32>
    %47 = tpu.matmul %45, %46, %cst_32 {dimension_numbers = #tpu.dot_dimension_numbers<[1], [0], [0], [1], [0, 0, 1, 1], [], []>} : vector<256x64xbf16>, vector<64x32xbf16>, vector<256x32xf32> -> vector<256x32xf32>
    %c0_33 = arith.constant 0 : index
    %c0_34 = arith.constant 0 : index
    %48 = vector.load %arg13[%c0_33, %c0_34] : memref<1x32xf32, #tpu.memory_space<vmem>>, vector<1x32xf32>
    %49 = vector.broadcast %48 : vector<1x32xf32> to vector<256x32xf32>
    %50 = arith.addf %47, %49 : vector<256x32xf32>
    %cst_35 = arith.constant 0.00999999977 : f32
    %51 = vector.broadcast %cst_35 : f32 to vector<256x32xf32>
    %52 = arith.mulf %51, %50 : vector<256x32xf32>
    %53 = arith.maximumf %50, %52 : vector<256x32xf32>
    %54 = arith.truncf %53 : vector<256x32xf32> to vector<256x32xbf16>
    %55 = arith.extf %54 : vector<256x32xbf16> to vector<256x32xf32>
    %c0_36 = arith.constant 0 : index
    %c0_37 = arith.constant 0 : index
    %56 = vector.load %arg14[%c0_36, %c0_37] : memref<1x32xf32, #tpu.memory_space<vmem>>, vector<1x32xf32>
    %57 = vector.broadcast %56 : vector<1x32xf32> to vector<256x32xf32>
    %58 = arith.mulf %55, %57 : vector<256x32xf32>
    %cst_38 = arith.constant dense<0.000000e+00> : vector<256xf32>
    %59 = vector.multi_reduction <add>, %58, %cst_38 [1] : vector<256x32xf32> to vector<256xf32>
    %60 = vector.shape_cast %59 : vector<256xf32> to vector<256x1xf32>
    %c0_39 = arith.constant 0 : index
    %c0_40 = arith.constant 0 : index
    %61 = vector.load %arg15[%c0_39, %c0_40] : memref<1x1xf32, #tpu.memory_space<vmem>>, vector<1x1xf32>
    %62 = vector.broadcast %61 : vector<1x1xf32> to vector<256x1xf32>
    %63 = arith.addf %60, %62 : vector<256x1xf32>
    %c0_41 = arith.constant 0 : index
    %c0_42 = arith.constant 0 : index
    %64 = vector.load %arg16[%c0_41, %c0_42] : memref<256x1xf32, #tpu.memory_space<vmem>>, vector<256x1xf32>
    tpu.vector_store %arg16[%c0_41, %c0_42], %63 {strides = array<i32>} : memref<256x1xf32, #tpu.memory_space<vmem>>, vector<256x1xf32>,
    return
  }
  func.func @transform_0(%arg0: i32) -> (i32, i32) {
    %c0_i32 = arith.constant 0 : i32
    %c0_i32_0 = arith.constant 0 : i32
    return %arg0, %c0_i32 : i32, i32
  }
  func.func @transform_1(%arg0: i32) -> (i32, i32) {
    %c0_i32 = arith.constant 0 : i32
    %c0_i32_0 = arith.constant 0 : i32
    %c0_i32_1 = arith.constant 0 : i32
    return %c0_i32, %c0_i32_0 : i32, i32
  }
  func.func @transform_2(%arg0: i32) -> (i32, i32) {
    %c0_i32 = arith.constant 0 : i32
    %c0_i32_0 = arith.constant 0 : i32
    %c0_i32_1 = arith.constant 0 : i32
    return %c0_i32, %c0_i32_0 : i32, i32
  }
  func.func @transform_3(%arg0: i32) -> (i32, i32) {
    %c0_i32 = arith.constant 0 : i32
    %c0_i32_0 = arith.constant 0 : i32
    %c0_i32_1 = arith.constant 0 : i32
    return %c0_i32, %c0_i32_0 : i32, i32
  }
  func.func @transform_4(%arg0: i32) -> (i32, i32) {
    %c0_i32 = arith.constant 0 : i32
    %c0_i32_0 = arith.constant 0 : i32
    %c0_i32_1 = arith.constant 0 : i32
    return %c0_i32, %c0_i32_0 : i32, i32
  }
  func.func @transform_5(%arg0: i32) -> (i32, i32) {
    %c0_i32 = arith.constant 0 : i32
    %c0_i32_0 = arith.constant 0 : i32
    %c0_i32_1 = arith.constant 0 : i32
    return %c0_i32, %c0_i32_0 : i32, i32
  }
  func.func @transform_6(%arg0: i32) -> (i32, i32) {
    %c0_i32 = arith.constant 0 : i32
    %c0_i32_0 = arith.constant 0 : i32
    %c0_i32_1 = arith.constant 0 : i32
    return %c0_i32, %c0_i32_0 : i32, i32
  }
  func.func @transform_7(%arg0: i32) -> (i32, i32) {
    %c0_i32 = arith.constant 0 : i32
    %c0_i32_0 = arith.constant 0 : i32
    %c0_i32_1 = arith.constant 0 : i32
    return %c0_i32, %c0_i32_0 : i32, i32
  }
  func.func @transform_8(%arg0: i32) -> (i32, i32) {
    %c0_i32 = arith.constant 0 : i32
    %c0_i32_0 = arith.constant 0 : i32
    %c0_i32_1 = arith.constant 0 : i32
    return %c0_i32, %c0_i32_0 : i32, i32
  }
  func.func @transform_9(%arg0: i32) -> (i32, i32) {
    %c0_i32 = arith.constant 0 : i32
    %c0_i32_0 = arith.constant 0 : i32
    %c0_i32_1 = arith.constant 0 : i32
    return %c0_i32, %c0_i32_0 : i32, i32
  }
  func.func @transform_10(%arg0: i32) -> (i32, i32) {
    %c0_i32 = arith.constant 0 : i32
    %c0_i32_0 = arith.constant 0 : i32
    %c0_i32_1 = arith.constant 0 : i32
    return %c0_i32, %c0_i32_0 : i32, i32
  }
  func.func @transform_11(%arg0: i32) -> (i32, i32) {
    %c0_i32 = arith.constant 0 : i32
    %c0_i32_0 = arith.constant 0 : i32
    %c0_i32_1 = arith.constant 0 : i32
    return %c0_i32, %c0_i32_0 : i32, i32
  }
  func.func @transform_12(%arg0: i32) -> (i32, i32) {
    %c0_i32 = arith.constant 0 : i32
    %c0_i32_0 = arith.constant 0 : i32
    %c0_i32_1 = arith.constant 0 : i32
    return %c0_i32, %c0_i32_0 : i32, i32
  }
  func.func @transform_13(%arg0: i32) -> (i32, i32) {
    %c0_i32 = arith.constant 0 : i32
    %c0_i32_0 = arith.constant 0 : i32
    %c0_i32_1 = arith.constant 0 : i32
    return %c0_i32, %c0_i32_0 : i32, i32
  }
  func.func @transform_14(%arg0: i32) -> (i32, i32) {
    %c0_i32 = arith.constant 0 : i32
    %c0_i32_0 = arith.constant 0 : i32
    %c0_i32_1 = arith.constant 0 : i32
    return %c0_i32, %c0_i32_0 : i32, i32
  }
  func.func @transform_15(%arg0: i32) -> (i32, i32) {
    %c0_i32 = arith.constant 0 : i32
    %c0_i32_0 = arith.constant 0 : i32
    return %arg0, %c0_i32 : i32, i32
  }
}

</mosaic_0001>

<llo_original>
// kernel: tpu_custom_call.1
$region0: #{tpu_custom_call.1}
  #allocation0 [shape = 'u32[]', space=smem, size = 0x4, offset = 0x4, fixed_abs, tag = 'smem constant byte address 0x4 - core index']
  #allocation1 [shape = 'u32[72,128]{1,0:T(1,128)}', space=vmem, size = 0x9000, scoped, tag = 'internal scratch']
  #allocation2 [shape = 'f32[1,1]{1,0:T(1,128)S(1)}', space=vmem, size = 0x200, scoped, tag = 'scoped memory for tpu_custom_call.1']
  %s0 = inlined_call_operand.hbm [shape: bf16[512,256], index: 0, kind: input, shape index: {}]
  %s1 = inlined_call_operand.hbm [shape: bf16[256,256], index: 1, kind: input, shape index: {}]
  %s2 = inlined_call_operand.vmem [shape: f32[1,256], index: 2, kind: input, shape index: {}]
  %s3 = inlined_call_operand.hbm [shape: bf16[256,256], index: 3, kind: input, shape index: {}]
  %s4 = inlined_call_operand.vmem [shape: f32[1,256], index: 4, kind: input, shape index: {}]
  %s5 = inlined_call_operand.hbm [shape: bf16[256,256], index: 5, kind: input, shape index: {}]
  %s6 = inlined_call_operand.vmem [shape: f32[1,256], index: 6, kind: input, shape index: {}]
  %s7 = inlined_call_operand.hbm [shape: bf16[256,128], index: 7, kind: input, shape index: {}]
  %s8 = inlined_call_operand.vmem [shape: f32[1,128], index: 8, kind: input, shape index: {}]
  %s9 = inlined_call_operand.vmem [shape: bf16[128,64], index: 9, kind: input, shape index: {}]
  %s10 = inlined_call_operand.vmem [shape: f32[1,64], index: 10, kind: input, shape index: {}]
  %s11 = inlined_call_operand.vmem [shape: bf16[64,32], index: 11, kind: input, shape index: {}]
  %s12 = inlined_call_operand.vmem [shape: f32[1,32], index: 12, kind: input, shape index: {}]
  %s13 = inlined_call_operand.vmem [shape: f32[1,32], index: 13, kind: input, shape index: {}]
  %s14 = inlined_call_operand.<no memory space> [shape: f32[1,1], index: 14, kind: input, shape index: {}]
  %s15 = inlined_call_operand.vmem [shape: f32[512,1], index: 15, kind: output, shape index: {}]
  %s16 = sld [smem:[#allocation0]]
  $region113: #{tpu_custom_call.1} parent=0
    _
  %s18 = ssub.s32 1, %s16
  %s19 = scalar_select 0, %s18, %s16
  %v20 = vstv %s14
  %21 = vst [vmem:[#allocation2] sm:$0x1] %v20
  $region1: #{tpu_custom_call.1} parent=0
    #allocation3 [shape = 'u8[262144]{0}', space=vmem, size = 0x40000, scoped, tag = 'input window, operand 0']
    #allocation4 [shape = 's32[2]{0}', space=sflag, size = 0x8, scoped, tag = 'scoped memory for tpu_custom_call.1']
    #allocation5 [shape = 'u8[131072]{0}', space=vmem, size = 0x20000, scoped, tag = 'input window, operand 1, single buffered']
    #allocation6 [shape = 's32[1]{0}', space=sflag, size = 0x4, scoped, tag = 'scoped memory for tpu_custom_call.1']
    #allocation7 [shape = 'u8[131072]{0}', space=vmem, size = 0x20000, scoped, tag = 'input window, operand 3, single buffered']
    #allocation8 [shape = 'u8[131072]{0}', space=vmem, size = 0x20000, scoped, tag = 'input window, operand 5, single buffered']
    #allocation9 [shape = 's32[1]{0}', space=sflag, size = 0x4, scoped, tag = 'scoped memory for tpu_custom_call.1']
    #allocation10 [shape = 'u8[65536]{0}', space=vmem, size = 0x10000, scoped, tag = 'input window, operand 7, single buffered']
    %22 = vsyncpa [#allocation4], 0
    %s23 = scalar_lea.sflag [#allocation4], 1
    %24 = vsyncpa %s23, 0
    %25 = vsyncpa [#allocation6], 0
    %26 = vsyncpa [#allocation9], 0
    loop: start=0, step=1, limit=4
    $region2: #{tpu_custom_call.1} parent=1 // loop_pre_header
      _
    $region3: #{tpu_custom_call.1} parent=1 // loop_header
      %s28 = sphi 0, %s32
      %p29 = scmp.ge.s32.totalorder %s28, 4
      %s38 = sphi 0, %s40
      %s41 = sphi 0, %s38
      %s42 = sphi 0, %s41
      %s58 = sphi 0, %s42
      %s62 = sphi 0, %s62
      %s64 = sphi 0, %s62
      %s65 = sphi 0, %s64
      %s79 = sphi 0, %s65
      %s83 = sphi 0, %s83
      %s85 = sphi 0, %s83
      %s86 = sphi 0, %s85
      %s100 = sphi 0, %s86
      %s104 = sphi 0, %s104
      %s106 = sphi 0, %s104
      %s107 = sphi 0, %s106
      %s121 = sphi 0, %s107
      %s125 = sphi 0, %s125
      %s127 = sphi 0, %s125
      %s128 = sphi 0, %s127
      %s142 = sphi 0, %s128
      %s146 = sphi 0, %s146
      %s148 = sphi 0, %s146
      %s149 = sphi 0, %s148
      %s163 = sphi 0, %s149
      %s167 = sphi 0, %s167
      %s169 = sphi 0, %s167
      %s170 = sphi 0, %s169
      %s184 = sphi 0, %s170
      %s188 = sphi 0, %s188
      %s190 = sphi 0, %s188
      %s191 = sphi 0, %s190
      %s205 = sphi 0, %s191
      %s209 = sphi 0, %s209
      %s211 = sphi 0, %s209
      %s212 = sphi 0, %s211
      %s226 = sphi 0, %s212
      %s230 = sphi 0, %s230
      %s232 = sphi 0, %s230
      %s233 = sphi 0, %s232
      %s247 = sphi 0, %s233
      %s251 = sphi 0, %s251
      %s253 = sphi 0, %s251
      %s254 = sphi 0, %s253
      %s268 = sphi 0, %s254
      %s272 = sphi 0, %s272
      %s274 = sphi 0, %s272
      %s275 = sphi 0, %s274
      %s289 = sphi 0, %s275
      %s293 = sphi 0, %s293
      %s295 = sphi 0, %s293
      %s296 = sphi 0, %s295
      %s310 = sphi 0, %s296
      %s314 = sphi 0, %s314
      %s316 = sphi 0, %s314
      %s317 = sphi 0, %s316
      %s331 = sphi 0, %s317
      %s335 = sphi 0, %s335
      %s337 = sphi 0, %s335
      %s338 = sphi 0, %s337
      %s352 = sphi 0, %s338
      %s358 = sphi 0, %s360
      %s361 = sphi 0, %s358
      %s362 = sphi 0, %s361
      %s378 = sphi 0, %s362
    $region4: #{tpu_custom_call.1} parent=1 // loop_header_branch
      %31 = sbr.rel (%p29) target = $region8
    $region5: #{tpu_custom_call.1} parent=1 // loop_body
      %s33 = ssub.s32 %s28, 1
      %s34 = ssub.s32 %s28, 2
      %s35 = sadd.s32 %s28, 1
      %s36 = ssub.s32 %s28, %s35
      %p37 = scmp.eq.s32.totalorder %s36, 0
      %s39 = sadd.s32 %s38, 1
      %s40 = scalar_select %p37, %s38, %s39
      %p43 = pneg %p37
      %p44 = scmp.eq.s32.totalorder %s28, 1
      %p45 = por %p43, %p44
      %p46 = scmp.ne.s32.totalorder %s38, %s41
      %p47 = scmp.eq.s32.totalorder %s28, 0
      %p48 = por %p46, %p47
      %p49 = scmp.ne.s32.totalorder %s38, %s41
      %p50 = scmp.eq.s32.totalorder %s33, 1
      %p51 = por %p49, %p50
      %p52 = scmp.ne.s32.totalorder %s41, %s42
      %p53 = scmp.eq.s32.totalorder %s33, 0
      %p54 = por %p52, %p53
      %p55 = scmp.ne.s32.totalorder %s41, %s42
      %p56 = scmp.eq.s32.totalorder %s34, 1
      %p57 = por %p55, %p56
      %p59 = scmp.ne.s32.totalorder %s42, %s58
      %p60 = scmp.eq.s32.totalorder %s34, 0
      %p61 = por %p59, %p60
      %s63 = sadd.s32 %s62, 1
      %p66 = scmp.eq.s32.totalorder %s28, 1
      %p67 = scmp.ne.s32.totalorder %s62, %s64
      %p68 = scmp.eq.s32.totalorder %s28, 0
      %p69 = por %p67, %p68
      %p70 = scmp.ne.s32.totalorder %s62, %s64
      %p71 = scmp.eq.s32.totalorder %s33, 1
      %p72 = por %p70, %p71
      %p73 = scmp.ne.s32.totalorder %s64, %s65
      %p74 = scmp.eq.s32.totalorder %s33, 0
      %p75 = por %p73, %p74
      %p76 = scmp.ne.s32.totalorder %s64, %s65
      %p77 = scmp.eq.s32.totalorder %s34, 1
      %p78 = por %p76, %p77
      %p80 = scmp.ne.s32.totalorder %s65, %s79
      %p81 = scmp.eq.s32.totalorder %s34, 0
      %p82 = por %p80, %p81
      %s84 = sadd.s32 %s83, 1
      %p87 = scmp.eq.s32.totalorder %s28, 1
      %p88 = scmp.ne.s32.totalorder %s83, %s85
      %p89 = scmp.eq.s32.totalorder %s28, 0
      %p90 = por %p88, %p89
      %p91 = scmp.ne.s32.totalorder %s83, %s85
      %p92 = scmp.eq.s32.totalorder %s33, 1
      %p93 = por %p91, %p92
      %p94 = scmp.ne.s32.totalorder %s85, %s86
      %p95 = scmp.eq.s32.totalorder %s33, 0
      %p96 = por %p94, %p95
      %p97 = scmp.ne.s32.totalorder %s85, %s86
      %p98 = scmp.eq.s32.totalorder %s34, 1
      %p99 = por %p97, %p98
      %p101 = scmp.ne.s32.totalorder %s86, %s100
      %p102 = scmp.eq.s32.totalorder %s34, 0
      %p103 = por %p101, %p102
      %s105 = sadd.s32 %s104, 1
      %p108 = scmp.eq.s32.totalorder %s28, 1
      %p109 = scmp.ne.s32.totalorder %s104, %s106
      %p110 = scmp.eq.s32.totalorder %s28, 0
      %p111 = por %p109, %p110
      %p112 = scmp.ne.s32.totalorder %s104, %s106
      %p113 = scmp.eq.s32.totalorder %s33, 1
      %p114 = por %p112, %p113
      %p115 = scmp.ne.s32.totalorder %s106, %s107
      %p116 = scmp.eq.s32.totalorder %s33, 0
      %p117 = por %p115, %p116
      %p118 = scmp.ne.s32.totalorder %s106, %s107
      %p119 = scmp.eq.s32.totalorder %s34, 1
      %p120 = por %p118, %p119
      %p122 = scmp.ne.s32.totalorder %s107, %s121
      %p123 = scmp.eq.s32.totalorder %s34, 0
      %p124 = por %p122, %p123
      %s126 = sadd.s32 %s125, 1
      %p129 = scmp.eq.s32.totalorder %s28, 1
      %p130 = scmp.ne.s32.totalorder %s125, %s127
      %p131 = scmp.eq.s32.totalorder %s28, 0
      %p132 = por %p130, %p131
      %p133 = scmp.ne.s32.totalorder %s125, %s127
      %p134 = scmp.eq.s32.totalorder %s33, 1
      %p135 = por %p133, %p134
      %p136 = scmp.ne.s32.totalorder %s127, %s128
      %p137 = scmp.eq.s32.totalorder %s33, 0
      %p138 = por %p136, %p137
      %p139 = scmp.ne.s32.totalorder %s127, %s128
      %p140 = scmp.eq.s32.totalorder %s34, 1
      %p141 = por %p139, %p140
      %p143 = scmp.ne.s32.totalorder %s128, %s142
      %p144 = scmp.eq.s32.totalorder %s34, 0
      %p145 = por %p143, %p144
      %s147 = sadd.s32 %s146, 1
      %p150 = scmp.eq.s32.totalorder %s28, 1
      %p151 = scmp.ne.s32.totalorder %s146, %s148
      %p152 = scmp.eq.s32.totalorder %s28, 0
      %p153 = por %p151, %p152
      %p154 = scmp.ne.s32.totalorder %s146, %s148
      %p155 = scmp.eq.s32.totalorder %s33, 1
      %p156 = por %p154, %p155
      %p157 = scmp.ne.s32.totalorder %s148, %s149
      %p158 = scmp.eq.s32.totalorder %s33, 0
      %p159 = por %p157, %p158
      %p160 = scmp.ne.s32.totalorder %s148, %s149
      %p161 = scmp.eq.s32.totalorder %s34, 1
      %p162 = por %p160, %p161
      %p164 = scmp.ne.s32.totalorder %s149, %s163
      %p165 = scmp.eq.s32.totalorder %s34, 0
      %p166 = por %p164, %p165
      %s168 = sadd.s32 %s167, 1
      %p171 = scmp.eq.s32.totalorder %s28, 1
      %p172 = scmp.ne.s32.totalorder %s167, %s169
      %p173 = scmp.eq.s32.totalorder %s28, 0
      %p174 = por %p172, %p173
      %p175 = scmp.ne.s32.totalorder %s167, %s169
      %p176 = scmp.eq.s32.totalorder %s33, 1
      %p177 = por %p175, %p176
      %p178 = scmp.ne.s32.totalorder %s169, %s170
      %p179 = scmp.eq.s32.totalorder %s33, 0
      %p180 = por %p178, %p179
      %p181 = scmp.ne.s32.totalorder %s169, %s170
      %p182 = scmp.eq.s32.totalorder %s34, 1
      %p183 = por %p181, %p182
      %p185 = scmp.ne.s32.totalorder %s170, %s184
      %p186 = scmp.eq.s32.totalorder %s34, 0
      %p187 = por %p185, %p186
      %s189 = sadd.s32 %s188, 1
      %p192 = scmp.eq.s32.totalorder %s28, 1
      %p193 = scmp.ne.s32.totalorder %s188, %s190
      %p194 = scmp.eq.s32.totalorder %s28, 0
      %p195 = por %p193, %p194
      %p196 = scmp.ne.s32.totalorder %s188, %s190
      %p197 = scmp.eq.s32.totalorder %s33, 1
      %p198 = por %p196, %p197
      %p199 = scmp.ne.s32.totalorder %s190, %s191
      %p200 = scmp.eq.s32.totalorder %s33, 0
      %p201 = por %p199, %p200
      %p202 = scmp.ne.s32.totalorder %s190, %s191
      %p203 = scmp.eq.s32.totalorder %s34, 1
      %p204 = por %p202, %p203
      %p206 = scmp.ne.s32.totalorder %s191, %s205
      %p207 = scmp.eq.s32.totalorder %s34, 0
      %p208 = por %p206, %p207
      %s210 = sadd.s32 %s209, 1
      %p213 = scmp.eq.s32.totalorder %s28, 1
      %p214 = scmp.ne.s32.totalorder %s209, %s211
      %p215 = scmp.eq.s32.totalorder %s28, 0
      %p216 = por %p214, %p215
      %p217 = scmp.ne.s32.totalorder %s209, %s211
      %p218 = scmp.eq.s32.totalorder %s33, 1
      %p219 = por %p217, %p218
      %p220 = scmp.ne.s32.totalorder %s211, %s212
      %p221 = scmp.eq.s32.totalorder %s33, 0
      %p222 = por %p220, %p221
      %p223 = scmp.ne.s32.totalorder %s211, %s212
      %p224 = scmp.eq.s32.totalorder %s34, 1
      %p225 = por %p223, %p224
      %p227 = scmp.ne.s32.totalorder %s212, %s226
      %p228 = scmp.eq.s32.totalorder %s34, 0
      %p229 = por %p227, %p228
      %s231 = sadd.s32 %s230, 1
      %p234 = scmp.eq.s32.totalorder %s28, 1
      %p235 = scmp.ne.s32.totalorder %s230, %s232
      %p236 = scmp.eq.s32.totalorder %s28, 0
      %p237 = por %p235, %p236
      %p238 = scmp.ne.s32.totalorder %s230, %s232
      %p239 = scmp.eq.s32.totalorder %s33, 1
      %p240 = por %p238, %p239
      %p241 = scmp.ne.s32.totalorder %s232, %s233
      %p242 = scmp.eq.s32.totalorder %s33, 0
      %p243 = por %p241, %p242
      %p244 = scmp.ne.s32.totalorder %s232, %s233
      %p245 = scmp.eq.s32.totalorder %s34, 1
      %p246 = por %p244, %p245
      %p248 = scmp.ne.s32.totalorder %s233, %s247
      %p249 = scmp.eq.s32.totalorder %s34, 0
      %p250 = por %p248, %p249
      %s252 = sadd.s32 %s251, 1
      %p255 = scmp.eq.s32.totalorder %s28, 1
      %p256 = scmp.ne.s32.totalorder %s251, %s253
      %p257 = scmp.eq.s32.totalorder %s28, 0
      %p258 = por %p256, %p257
      %p259 = scmp.ne.s32.totalorder %s251, %s253
      %p260 = scmp.eq.s32.totalorder %s33, 1
      %p261 = por %p259, %p260
      %p262 = scmp.ne.s32.totalorder %s253, %s254
      %p263 = scmp.eq.s32.totalorder %s33, 0
      %p264 = por %p262, %p263
      %p265 = scmp.ne.s32.totalorder %s253, %s254
      %p266 = scmp.eq.s32.totalorder %s34, 1
      %p267 = por %p265, %p266
      %p269 = scmp.ne.s32.totalorder %s254, %s268
      %p270 = scmp.eq.s32.totalorder %s34, 0
      %p271 = por %p269, %p270
      %s273 = sadd.s32 %s272, 1
      %p276 = scmp.eq.s32.totalorder %s28, 1
      %p277 = scmp.ne.s32.totalorder %s272, %s274
      %p278 = scmp.eq.s32.totalorder %s28, 0
      %p279 = por %p277, %p278
      %p280 = scmp.ne.s32.totalorder %s272, %s274
      %p281 = scmp.eq.s32.totalorder %s33, 1
      %p282 = por %p280, %p281
      %p283 = scmp.ne.s32.totalorder %s274, %s275
      %p284 = scmp.eq.s32.totalorder %s33, 0
      %p285 = por %p283, %p284
      %p286 = scmp.ne.s32.totalorder %s274, %s275
      %p287 = scmp.eq.s32.totalorder %s34, 1
      %p288 = por %p286, %p287
      %p290 = scmp.ne.s32.totalorder %s275, %s289
      %p291 = scmp.eq.s32.totalorder %s34, 0
      %p292 = por %p290, %p291
      %s294 = sadd.s32 %s293, 1
      %p297 = scmp.eq.s32.totalorder %s28, 1
      %p298 = scmp.ne.s32.totalorder %s293, %s295
      %p299 = scmp.eq.s32.totalorder %s28, 0
      %p300 = por %p298, %p299
      %p301 = scmp.ne.s32.totalorder %s293, %s295
      %p302 = scmp.eq.s32.totalorder %s33, 1
      %p303 = por %p301, %p302
      %p304 = scmp.ne.s32.totalorder %s295, %s296
      %p305 = scmp.eq.s32.totalorder %s33, 0
      %p306 = por %p304, %p305
      %p307 = scmp.ne.s32.totalorder %s295, %s296
      %p308 = scmp.eq.s32.totalorder %s34, 1
      %p309 = por %p307, %p308
      %p311 = scmp.ne.s32.totalorder %s296, %s310
      %p312 = scmp.eq.s32.totalorder %s34, 0
      %p313 = por %p311, %p312
      %s315 = sadd.s32 %s314, 1
      %p318 = scmp.eq.s32.totalorder %s28, 1
      %p319 = scmp.ne.s32.totalorder %s314, %s316
      %p320 = scmp.eq.s32.totalorder %s28, 0
      %p321 = por %p319, %p320
      %p322 = scmp.ne.s32.totalorder %s314, %s316
      %p323 = scmp.eq.s32.totalorder %s33, 1
      %p324 = por %p322, %p323
      %p325 = scmp.ne.s32.totalorder %s316, %s317
      %p326 = scmp.eq.s32.totalorder %s33, 0
      %p327 = por %p325, %p326
      %p328 = scmp.ne.s32.totalorder %s316, %s317
      %p329 = scmp.eq.s32.totalorder %s34, 1
      %p330 = por %p328, %p329
      %p332 = scmp.ne.s32.totalorder %s317, %s331
      %p333 = scmp.eq.s32.totalorder %s34, 0
      %p334 = por %p332, %p333
      %s336 = sadd.s32 %s335, 1
      %p339 = scmp.eq.s32.totalorder %s28, 1
      %p340 = scmp.ne.s32.totalorder %s335, %s337
      %p341 = scmp.eq.s32.totalorder %s28, 0
      %p342 = por %p340, %p341
      %p343 = scmp.ne.s32.totalorder %s335, %s337
      %p344 = scmp.eq.s32.totalorder %s33, 1
      %p345 = por %p343, %p344
      %p346 = scmp.ne.s32.totalorder %s337, %s338
      %p347 = scmp.eq.s32.totalorder %s33, 0
      %p348 = por %p346, %p347
      %p349 = scmp.ne.s32.totalorder %s337, %s338
      %p350 = scmp.eq.s32.totalorder %s34, 1
      %p351 = por %p349, %p350
      %p353 = scmp.ne.s32.totalorder %s338, %s352
      %p354 = scmp.eq.s32.totalorder %s34, 0
      %p355 = por %p353, %p354
      %s356 = ssub.s32 %s28, %s35
      %p357 = scmp.eq.s32.totalorder %s356, 0
      %s359 = sadd.s32 %s358, 1
      %s360 = scalar_select %p357, %s358, %s359
      %p363 = pneg %p357
      %p364 = scmp.eq.s32.totalorder %s28, 1
      %p365 = por %p363, %p364
      %p366 = scmp.ne.s32.totalorder %s358, %s361
      %p367 = scmp.eq.s32.totalorder %s28, 0
      %p368 = por %p366, %p367
      %p369 = scmp.ne.s32.totalorder %s358, %s361
      %p370 = scmp.eq.s32.totalorder %s33, 1
      %p371 = por %p369, %p370
      %p372 = scmp.ne.s32.totalorder %s361, %s362
      %p373 = scmp.eq.s32.totalorder %s33, 0
      %p374 = por %p372, %p373
      %p375 = scmp.ne.s32.totalorder %s361, %s362
      %p376 = scmp.eq.s32.totalorder %s34, 1
      %p377 = por %p375, %p376
      %p379 = scmp.ne.s32.totalorder %s362, %s378
      %p380 = scmp.eq.s32.totalorder %s34, 0
      %p381 = por %p379, %p380
      %p382 = scmp.le.s32.totalorder 1, %s28
      %p383 = scmp.lt.s32.totalorder %s28, 3
      %p384 = pnand %p382, %p383
      %p385 = pneg %p384
      // Predicated region
      $region9: #{tpu_custom_call.1} parent=5 // pred_check
        _
      $region10: #{tpu_custom_call.1} parent=5 // pred_check_branch
        %387 = sbr.rel (%p384) target = $region12
      $region11: #{tpu_custom_call.1} parent=5 // pred_region
        %s388 = ssub.s32 %s28, 1
        // Predicated region
        $region13: #{tpu_custom_call.1} parent=11 // pred_check
          %p389 = pneg %p75
        $region14: #{tpu_custom_call.1} parent=11 // pred_check_branch
          %391 = sbr.rel (%p389) target = $region16
        $region15: #{tpu_custom_call.1} parent=11 // pred_region
          %393 = vsyncadd [#allocation6], 0
          %s394 = sshll.u32 %s1, 4
          %s395 = int_to_ptr.hbm [resolvable:$true] %s394
          %s396 = sshll.u32 [#allocation5], 4
          %s397 = int_to_ptr.vmem [resolvable:$true] %s396
          %402 = dma.hbm_to_vmem [thread:$0]  %s395, 4096, %s397, [#allocation6], 128, 128, 8
        $region16: #{tpu_custom_call.1} parent=11 // pred_fallthru
          _
        // Predicated region
        $region17: #{tpu_custom_call.1} parent=11 // pred_check
          %p403 = pneg %p96
        $region18: #{tpu_custom_call.1} parent=11 // pred_check_branch
          %405 = sbr.rel (%p403) target = $region20
        $region19: #{tpu_custom_call.1} parent=11 // pred_region
          _
        $region20: #{tpu_custom_call.1} parent=11 // pred_fallthru
          _
        // Predicated region
        $region21: #{tpu_custom_call.1} parent=11 // pred_check
          %p406 = pneg %p117
        $region22: #{tpu_custom_call.1} parent=11 // pred_check_branch
          %408 = sbr.rel (%p406) target = $region24
        $region23: #{tpu_custom_call.1} parent=11 // pred_region
          %410 = vsyncadd [#allocation6], 0
          %s411 = sshll.u32 %s3, 4
          %s412 = int_to_ptr.hbm [resolvable:$true] %s411
          %s413 = sshll.u32 [#allocation7], 4
          %s414 = int_to_ptr.vmem [resolvable:$true] %s413
          %419 = dma.hbm_to_vmem [thread:$0]  %s412, 4096, %s414, [#allocation6], 128, 128, 8
        $region24: #{tpu_custom_call.1} parent=11 // pred_fallthru
          _
        // Predicated region
        $region25: #{tpu_custom_call.1} parent=11 // pred_check
          %p420 = pneg %p138
        $region26: #{tpu_custom_call.1} parent=11 // pred_check_branch
          %422 = sbr.rel (%p420) target = $region28
        $region27: #{tpu_custom_call.1} parent=11 // pred_region
          _
        $region28: #{tpu_custom_call.1} parent=11 // pred_fallthru
          _
        // Predicated region
        $region29: #{tpu_custom_call.1} parent=11 // pred_check
          %p423 = pneg %p159
        $region30: #{tpu_custom_call.1} parent=11 // pred_check_branch
          %425 = sbr.rel (%p423) target = $region32
        $region31: #{tpu_custom_call.1} parent=11 // pred_region
          %427 = vsyncadd [#allocation9], 0
          %s428 = sshll.u32 %s5, 4
          %s429 = int_to_ptr.hbm [resolvable:$true] %s428
          %s430 = sshll.u32 [#allocation8], 4
          %s431 = int_to_ptr.vmem [resolvable:$true] %s430
          %436 = dma.hbm_to_vmem [thread:$0]  %s429, 4096, %s431, [#allocation9], 128, 128, 8
        $region32: #{tpu_custom_call.1} parent=11 // pred_fallthru
          _
        // Predicated region
        $region33: #{tpu_custom_call.1} parent=11 // pred_check
          %p437 = pneg %p180
        $region34: #{tpu_custom_call.1} parent=11 // pred_check_branch
          %439 = sbr.rel (%p437) target = $region36
        $region35: #{tpu_custom_call.1} parent=11 // pred_region
          _
        $region36: #{tpu_custom_call.1} parent=11 // pred_fallthru
          _
        // Predicated region
        $region37: #{tpu_custom_call.1} parent=11 // pred_check
          %p440 = pneg %p201
        $region38: #{tpu_custom_call.1} parent=11 // pred_check_branch
          %442 = sbr.rel (%p440) target = $region40
        $region39: #{tpu_custom_call.1} parent=11 // pred_region
          %444 = vsyncadd [#allocation9], 0
          %s445 = sshll.u32 %s7, 4
          %s446 = int_to_ptr.hbm [resolvable:$true] %s445
          %s447 = sshll.u32 [#allocation10], 4
          %s448 = int_to_ptr.vmem [resolvable:$true] %s447
          %453 = dma.hbm_to_vmem [thread:$0]  %s446, 2048, %s448, [#allocation9], 64, 64, 4
        $region40: #{tpu_custom_call.1} parent=11 // pred_fallthru
          _
        // Predicated region
        $region41: #{tpu_custom_call.1} parent=11 // pred_check
          %p454 = pneg %p222
        $region42: #{tpu_custom_call.1} parent=11 // pred_check_branch
          %456 = sbr.rel (%p454) target = $region44
        $region43: #{tpu_custom_call.1} parent=11 // pred_region
          _
        $region44: #{tpu_custom_call.1} parent=11 // pred_fallthru
          _
        // Predicated region
        $region45: #{tpu_custom_call.1} parent=11 // pred_check
          %p457 = pneg %p243
        $region46: #{tpu_custom_call.1} parent=11 // pred_check_branch
          %459 = sbr.rel (%p457) target = $region48
        $region47: #{tpu_custom_call.1} parent=11 // pred_region
          _
        $region48: #{tpu_custom_call.1} parent=11 // pred_fallthru
          _
        // Predicated region
        $region49: #{tpu_custom_call.1} parent=11 // pred_check
          %p460 = pneg %p264
        $region50: #{tpu_custom_call.1} parent=11 // pred_check_branch
          %462 = sbr.rel (%p460) target = $region52
        $region51: #{tpu_custom_call.1} parent=11 // pred_region
          _
        $region52: #{tpu_custom_call.1} parent=11 // pred_fallthru
          _
        // Predicated region
        $region53: #{tpu_custom_call.1} parent=11 // pred_check
          %p463 = pneg %p285
        $region54: #{tpu_custom_call.1} parent=11 // pred_check_branch
          %465 = sbr.rel (%p463) target = $region56
        $region55: #{tpu_custom_call.1} parent=11 // pred_region
          _
        $region56: #{tpu_custom_call.1} parent=11 // pred_fallthru
          _
        // Predicated region
        $region57: #{tpu_custom_call.1} parent=11 // pred_check
          %p466 = pneg %p306
        $region58: #{tpu_custom_call.1} parent=11 // pred_check_branch
          %468 = sbr.rel (%p466) target = $region60
        $region59: #{tpu_custom_call.1} parent=11 // pred_region
          _
        $region60: #{tpu_custom_call.1} parent=11 // pred_fallthru
          _
        // Predicated region
        $region61: #{tpu_custom_call.1} parent=11 // pred_check
          %p469 = pneg %p327
        $region62: #{tpu_custom_call.1} parent=11 // pred_check_branch
          %471 = sbr.rel (%p469) target = $region64
        $region63: #{tpu_custom_call.1} parent=11 // pred_region
          _
        $region64: #{tpu_custom_call.1} parent=11 // pred_fallthru
          _
        // Predicated region
        $region65: #{tpu_custom_call.1} parent=11 // pred_check
          %p472 = pneg %p348
        $region66: #{tpu_custom_call.1} parent=11 // pred_check_branch
          %474 = sbr.rel (%p472) target = $region68
        $region67: #{tpu_custom_call.1} parent=11 // pred_region
          _
        $region68: #{tpu_custom_call.1} parent=11 // pred_fallthru
          _
      $region12: #{tpu_custom_call.1} parent=5 // pred_fallthru
        _
      %p475 = scmp.lt.s32.totalorder %s28, 2
      // Predicated region
      $region69: #{tpu_custom_call.1} parent=5 // pred_check
        %p476 = pneg %p475
      $region70: #{tpu_custom_call.1} parent=5 // pred_check_branch
        %478 = sbr.rel (%p476) target = $region72
      $region71: #{tpu_custom_call.1} parent=5 // pred_region
        // Predicated region
        $region73: #{tpu_custom_call.1} parent=71 // pred_check
          %p479 = pneg %p48
        $region74: #{tpu_custom_call.1} parent=71 // pred_check_branch
          %481 = sbr.rel (%p479) target = $region76
        $region75: #{tpu_custom_call.1} parent=71 // pred_region
          %s482 = sand.u32 %s38, 1
          %s483 = scalar_lea.sflag [#allocation4], %s482
          %s484 = sand.u32 %s38, 1
          %s485 = smul.addr %s484, 256
          %s486 = scalar_lea.vmem [#allocation3], %s485
          %s487 = smul.u32 32, %s28
          %489 = vsyncadd %s483, 0
          %s490 = smul.addr %s487, 2
          %s491 = smul.addr %s490, 4
          %s492 = scalar_lea.hbm %s0, %s491
          %s493 = sshll.u32 %s492, 4
          %s494 = int_to_ptr.hbm [resolvable:$true] %s493
          %s495 = sshll.u32 %s486, 4
          %s496 = int_to_ptr.vmem [resolvable:$true] %s495
          %501 = dma.hbm_to_vmem [thread:$0]  %s494, 4096, %s496, %s483, 128, 128, 8
        $region76: #{tpu_custom_call.1} parent=71 // pred_fallthru
          _
      $region72: #{tpu_custom_call.1} parent=5 // pred_fallthru
        _
      %p502 = scmp.le.s32.totalorder 1, %s28
      %p503 = scmp.lt.s32.totalorder %s28, 3
      %p504 = pnand %p502, %p503
      %p505 = pneg %p504
      // Predicated region
      $region77: #{tpu_custom_call.1} parent=5 // pred_check
        _
      $region78: #{tpu_custom_call.1} parent=5 // pred_check_branch
        %507 = sbr.rel (%p504) target = $region80
      $region79: #{tpu_custom_call.1} parent=5 // pred_region
        %s508 = ssub.s32 %s28, 1
        %s509 = sand.u32 %s41, 1
        %s510 = scalar_lea.sflag [#allocation4], %s509
        %s511 = sand.u32 %s41, 1
        %s512 = smul.addr %s511, 256
        %s513 = scalar_lea.vmem [#allocation3], %s512
        // Predicated region
        $region81: #{tpu_custom_call.1} parent=79 // pred_check
          %p514 = pneg %p54
        $region82: #{tpu_custom_call.1} parent=79 // pred_check_branch
          %516 = sbr.rel (%p514) target = $region84
        $region83: #{tpu_custom_call.1} parent=79 // pred_region
          %518 = dma.done %s510, 4096
        $region84: #{tpu_custom_call.1} parent=79 // pred_fallthru
          _
        // Predicated region
        $region85: #{tpu_custom_call.1} parent=79 // pred_check
          %p519 = pneg %p75
        $region86: #{tpu_custom_call.1} parent=79 // pred_check_branch
          %521 = sbr.rel (%p519) target = $region88
        $region87: #{tpu_custom_call.1} parent=79 // pred_region
          %523 = dma.done [#allocation6], 4096
        $region88: #{tpu_custom_call.1} parent=79 // pred_fallthru
          _
        // Predicated region
        $region89: #{tpu_custom_call.1} parent=79 // pred_check
          %p524 = pneg %p117
        $region90: #{tpu_custom_call.1} parent=79 // pred_check_branch
          %526 = sbr.rel (%p524) target = $region92
        $region91: #{tpu_custom_call.1} parent=79 // pred_region
          %528 = dma.done [#allocation6], 4096
        $region92: #{tpu_custom_call.1} parent=79 // pred_fallthru
          _
        // Predicated region
        $region93: #{tpu_custom_call.1} parent=79 // pred_check
          %p529 = pneg %p159
        $region94: #{tpu_custom_call.1} parent=79 // pred_check_branch
          %531 = sbr.rel (%p529) target = $region96
        $region95: #{tpu_custom_call.1} parent=79 // pred_region
          %533 = dma.done [#allocation9], 4096
        $region96: #{tpu_custom_call.1} parent=79 // pred_fallthru
          _
        // Predicated region
        $region97: #{tpu_custom_call.1} parent=79 // pred_check
          %p534 = pneg %p201
        $region98: #{tpu_custom_call.1} parent=79 // pred_check_branch
          %536 = sbr.rel (%p534) target = $region100
        $region99: #{tpu_custom_call.1} parent=79 // pred_region
          %538 = dma.done [#allocation9], 2048
        $region100: #{tpu_custom_call.1} parent=79 // pred_fallthru
          _
        %s539 = sand.u32 %s41, 1
        %s540 = scalar_lea.sflag [#allocation4], %s539
        %s541 = sand.u32 %s41, 1
        %s542 = smul.addr %s541, 256
        %s543 = scalar_lea.vmem [#allocation3], %s542
        %p544 = pneg %p54
        %p545 = pneg %p51
        %p546 = pneg %p75
        %p547 = pneg %p72
        %p548 = pneg %p96
        %p549 = pneg %p93
        %p550 = pneg %p117
        %p551 = pneg %p114
        %p552 = pneg %p138
        %p553 = pneg %p135
        %p554 = pneg %p159
        %p555 = pneg %p156
        %p556 = pneg %p180
        %p557 = pneg %p177
        %p558 = pneg %p201
        %p559 = pneg %p198
        %p560 = pneg %p222
        %p561 = pneg %p219
        %p562 = pneg %p243
        %p563 = pneg %p240
        %p564 = pneg %p264
        %p565 = pneg %p261
        %p566 = pneg %p285
        %p567 = pneg %p282
        %p568 = pneg %p306
        %p569 = pneg %p303
        %p570 = pneg %p327
        %p571 = pneg %p324
        %p572 = pneg %p348
        %p573 = pneg %p345
        %p574 = pneg %p374
        %p575 = pneg %p371
        %s576 = smul.u32 32, %s33
        %p577 = scmp.lt.s32.totalorder %s576, 63
        %s578 = scalar_select %p577, %s576, 63
        %s579 = smul.addr %s578, 8
        %s580 = scalar_lea.vmem %s15, %s579
        %s581 = smul.u32 32, %s33
        %s582 = smul.u32 32, %s33
        %p583 = scmp.lt.s32.totalorder %s582, 63
        %s584 = scalar_select %p583, %s582, 63
        %s585 = smul.addr %s584, 8
        %s586 = scalar_lea.vmem %s15, %s585
        %s587 = smul.u32 32, %s33
        %v589 = vld [vmem:[%s513] sm:$0xff]
        %v590 = vld [vmem:[%s513 + $0x8] sm:$0xff]
        %v591 = vld [vmem:[%s513 + $0x10] sm:$0xff]
        %v592 = vld [vmem:[%s513 + $0x18] sm:$0xff]
        %v593 = vld [vmem:[%s513 + $0x20] sm:$0xff]
        %v594 = vld [vmem:[%s513 + $0x28] sm:$0xff]
        %v595 = vld [vmem:[%s513 + $0x30] sm:$0xff]
        %v596 = vld [vmem:[%s513 + $0x38] sm:$0xff]
        %v597 = vld [vmem:[%s513 + $0x40] sm:$0xff]
        %v598 = vld [vmem:[%s513 + $0x48] sm:$0xff]
        %v599 = vld [vmem:[%s513 + $0x50] sm:$0xff]
        %v600 = vld [vmem:[%s513 + $0x58] sm:$0xff]
        %v601 = vld [vmem:[%s513 + $0x60] sm:$0xff]
        %v602 = vld [vmem:[%s513 + $0x68] sm:$0xff]
        %v603 = vld [vmem:[%s513 + $0x70] sm:$0xff]
        %v604 = vld [vmem:[%s513 + $0x78] sm:$0xff]
        %v605 = vld [vmem:[%s513 + $0x80] sm:$0xff]
        %v606 = vld [vmem:[%s513 + $0x88] sm:$0xff]
        %v607 = vld [vmem:[%s513 + $0x90] sm:$0xff]
        %v608 = vld [vmem:[%s513 + $0x98] sm:$0xff]
        %v609 = vld [vmem:[%s513 + $0xa0] sm:$0xff]
        %v610 = vld [vmem:[%s513 + $0xa8] sm:$0xff]
        %v611 = vld [vmem:[%s513 + $0xb0] sm:$0xff]
        %v612 = vld [vmem:[%s513 + $0xb8] sm:$0xff]
        %v613 = vld [vmem:[%s513 + $0xc0] sm:$0xff]
        %v614 = vld [vmem:[%s513 + $0xc8] sm:$0xff]
        %v615 = vld [vmem:[%s513 + $0xd0] sm:$0xff]
        %v616 = vld [vmem:[%s513 + $0xd8] sm:$0xff]
        %v617 = vld [vmem:[%s513 + $0xe0] sm:$0xff]
        %v618 = vld [vmem:[%s513 + $0xe8] sm:$0xff]
        %v619 = vld [vmem:[%s513 + $0xf0] sm:$0xff]
        %v620 = vld [vmem:[%s513 + $0xf8] sm:$0xff]
        %v621 = vld [vmem:[#allocation5] sm:$0xff]
        %v622 = vld [vmem:[#allocation5 + $0x8] sm:$0xff]
        %v623 = vld [vmem:[#allocation5 + $0x10] sm:$0xff]
        %v624 = vld [vmem:[#allocation5 + $0x18] sm:$0xff]
        %v625 = vld [vmem:[#allocation5 + $0x20] sm:$0xff]
        %v626 = vld [vmem:[#allocation5 + $0x28] sm:$0xff]
        %v627 = vld [vmem:[#allocation5 + $0x30] sm:$0xff]
        %v628 = vld [vmem:[#allocation5 + $0x38] sm:$0xff]
        %v629 = vld [vmem:[#allocation5 + $0x40] sm:$0xff]
        %v630 = vld [vmem:[#allocation5 + $0x48] sm:$0xff]
        %v631 = vld [vmem:[#allocation5 + $0x50] sm:$0xff]
        %v632 = vld [vmem:[#allocation5 + $0x58] sm:$0xff]
        %v633 = vld [vmem:[#allocation5 + $0x60] sm:$0xff]
        %v634 = vld [vmem:[#allocation5 + $0x68] sm:$0xff]
        %v635 = vld [vmem:[#allocation5 + $0x70] sm:$0xff]
        %v636 = vld [vmem:[#allocation5 + $0x78] sm:$0xff]
        %v637 = vld [vmem:[#allocation5 + $0x80] sm:$0xff]
        %v638 = vld [vmem:[#allocation5 + $0x88] sm:$0xff]
        %v639 = vld [vmem:[#allocation5 + $0x90] sm:$0xff]
        %v640 = vld [vmem:[#allocation5 + $0x98] sm:$0xff]
        %v641 = vld [vmem:[#allocation5 + $0xa0] sm:$0xff]
        %v642 = vld [vmem:[#allocation5 + $0xa8] sm:$0xff]
        %v643 = vld [vmem:[#allocation5 + $0xb0] sm:$0xff]
        %v644 = vld [vmem:[#allocation5 + $0xb8] sm:$0xff]
        %v645 = vld [vmem:[#allocation5 + $0xc0] sm:$0xff]
        %v646 = vld [vmem:[#allocation5 + $0xc8] sm:$0xff]
        %v647 = vld [vmem:[#allocation5 + $0xd0] sm:$0xff]
        %v648 = vld [vmem:[#allocation5 + $0xd8] sm:$0xff]
        %v649 = vld [vmem:[#allocation5 + $0xe0] sm:$0xff]
        %v650 = vld [vmem:[#allocation5 + $0xe8] sm:$0xff]
        %v651 = vld [vmem:[#allocation5 + $0xf0] sm:$0xff]
        %v652 = vld [vmem:[#allocation5 + $0xf8] sm:$0xff]
        %v653 = vld [vmem:[%s2] sm:$0x3]
        %v655 = vperm.slane %v653, 0
        %v656 = vperm.slane %v653, 1
        %v691 = vunpack.c.l.b16 %v589
        %v692 = vunpack.c.h.b16 %v589
        %v693 = vunpack.c.l.b16 %v590
        %v694 = vunpack.c.h.b16 %v590
        %v695 = vunpack.c.l.b16 %v591
        %v696 = vunpack.c.h.b16 %v591
        %v697 = vunpack.c.l.b16 %v592
        %v698 = vunpack.c.h.b16 %v592
        %v699 = vunpack.c.l.b16 %v593
        %v700 = vunpack.c.h.b16 %v593
        %v701 = vunpack.c.l.b16 %v594
        %v702 = vunpack.c.h.b16 %v594
        %v703 = vunpack.c.l.b16 %v595
        %v704 = vunpack.c.h.b16 %v595
        %v705 = vunpack.c.l.b16 %v596
        %v706 = vunpack.c.h.b16 %v596
        %v707 = vunpack.c.l.b16 %v597
        %v708 = vunpack.c.h.b16 %v597
        %v709 = vunpack.c.l.b16 %v598
        %v710 = vunpack.c.h.b16 %v598
        %v711 = vunpack.c.l.b16 %v599
        %v712 = vunpack.c.h.b16 %v599
        %v713 = vunpack.c.l.b16 %v600
        %v714 = vunpack.c.h.b16 %v600
        %v715 = vunpack.c.l.b16 %v601
        %v716 = vunpack.c.h.b16 %v601
        %v717 = vunpack.c.l.b16 %v602
        %v718 = vunpack.c.h.b16 %v602
        %v719 = vunpack.c.l.b16 %v603
        %v720 = vunpack.c.h.b16 %v603
        %v721 = vunpack.c.l.b16 %v604
        %v722 = vunpack.c.h.b16 %v604
        %v723 = vunpack.c.l.b16 %v605
        %v724 = vunpack.c.h.b16 %v605
        %v725 = vunpack.c.l.b16 %v606
        %v726 = vunpack.c.h.b16 %v606
        %v727 = vunpack.c.l.b16 %v607
        %v728 = vunpack.c.h.b16 %v607
        %v729 = vunpack.c.l.b16 %v608
        %v730 = vunpack.c.h.b16 %v608
        %v731 = vunpack.c.l.b16 %v609
        %v732 = vunpack.c.h.b16 %v609
        %v733 = vunpack.c.l.b16 %v610
        %v734 = vunpack.c.h.b16 %v610
        %v735 = vunpack.c.l.b16 %v611
        %v736 = vunpack.c.h.b16 %v611
        %v737 = vunpack.c.l.b16 %v612
        %v738 = vunpack.c.h.b16 %v612
        %v739 = vunpack.c.l.b16 %v613
        %v740 = vunpack.c.h.b16 %v613
        %v741 = vunpack.c.l.b16 %v614
        %v742 = vunpack.c.h.b16 %v614
        %v743 = vunpack.c.l.b16 %v615
        %v744 = vunpack.c.h.b16 %v615
        %v745 = vunpack.c.l.b16 %v616
        %v746 = vunpack.c.h.b16 %v616
        %v747 = vunpack.c.l.b16 %v617
        %v748 = vunpack.c.h.b16 %v617
        %v749 = vunpack.c.l.b16 %v618
        %v750 = vunpack.c.h.b16 %v618
        %v751 = vunpack.c.l.b16 %v619
        %v752 = vunpack.c.h.b16 %v619
        %v753 = vunpack.c.l.b16 %v620
        %v754 = vunpack.c.h.b16 %v620
        %v755 = vpack.c.b16 %v693, %v691
        %v756 = vpack.c.b16 %v694, %v692
        %v757 = vpack.c.b16 %v697, %v695
        %v758 = vpack.c.b16 %v698, %v696
        %v759 = vpack.c.b16 %v701, %v699
        %v760 = vpack.c.b16 %v702, %v700
        %v761 = vpack.c.b16 %v705, %v703
        %v762 = vpack.c.b16 %v706, %v704
        %v763 = vpack.c.b16 %v709, %v707
        %v764 = vpack.c.b16 %v710, %v708
        %v765 = vpack.c.b16 %v713, %v711
        %v766 = vpack.c.b16 %v714, %v712
        %v767 = vpack.c.b16 %v717, %v715
        %v768 = vpack.c.b16 %v718, %v716
        %v769 = vpack.c.b16 %v721, %v719
        %v770 = vpack.c.b16 %v722, %v720
        %v771 = vpack.c.b16 %v725, %v723
        %v772 = vpack.c.b16 %v726, %v724
        %v773 = vpack.c.b16 %v729, %v727
        %v774 = vpack.c.b16 %v730, %v728
        %v775 = vpack.c.b16 %v733, %v731
        %v776 = vpack.c.b16 %v734, %v732
        %v777 = vpack.c.b16 %v737, %v735
        %v778 = vpack.c.b16 %v738, %v736
        %v779 = vpack.c.b16 %v741, %v739
        %v780 = vpack.c.b16 %v742, %v740
        %v781 = vpack.c.b16 %v745, %v743
        %v782 = vpack.c.b16 %v746, %v744
        %v783 = vpack.c.b16 %v749, %v747
        %v784 = vpack.c.b16 %v750, %v748
        %v785 = vpack.c.b16 %v753, %v751
        %v786 = vpack.c.b16 %v754, %v752
        %v851 = vunpack.c.l.b16 %v621
        %v852 = vunpack.c.h.b16 %v621
        %v853 = vunpack.c.l.b16 %v622
        %v854 = vunpack.c.h.b16 %v622
        %v855 = vunpack.c.l.b16 %v623
        %v856 = vunpack.c.h.b16 %v623
        %v857 = vunpack.c.l.b16 %v624
        %v858 = vunpack.c.h.b16 %v624
        %v859 = vunpack.c.l.b16 %v625
        %v860 = vunpack.c.h.b16 %v625
        %v861 = vunpack.c.l.b16 %v626
        %v862 = vunpack.c.h.b16 %v626
        %v863 = vunpack.c.l.b16 %v627
        %v864 = vunpack.c.h.b16 %v627
        %v865 = vunpack.c.l.b16 %v628
        %v866 = vunpack.c.h.b16 %v628
        %v867 = vunpack.c.l.b16 %v629
        %v868 = vunpack.c.h.b16 %v629
        %v869 = vunpack.c.l.b16 %v630
        %v870 = vunpack.c.h.b16 %v630
        %v871 = vunpack.c.l.b16 %v631
        %v872 = vunpack.c.h.b16 %v631
        %v873 = vunpack.c.l.b16 %v632
        %v874 = vunpack.c.h.b16 %v632
        %v875 = vunpack.c.l.b16 %v633
        %v876 = vunpack.c.h.b16 %v633
        %v877 = vunpack.c.l.b16 %v634
        %v878 = vunpack.c.h.b16 %v634
        %v879 = vunpack.c.l.b16 %v635
        %v880 = vunpack.c.h.b16 %v635
        %v881 = vunpack.c.l.b16 %v636
        %v882 = vunpack.c.h.b16 %v636
        %v883 = vunpack.c.l.b16 %v637
        %v884 = vunpack.c.h.b16 %v637
        %v885 = vunpack.c.l.b16 %v638
        %v886 = vunpack.c.h.b16 %v638
        %v887 = vunpack.c.l.b16 %v639
        %v888 = vunpack.c.h.b16 %v639
        %v889 = vunpack.c.l.b16 %v640
        %v890 = vunpack.c.h.b16 %v640
        %v891 = vunpack.c.l.b16 %v641
        %v892 = vunpack.c.h.b16 %v641
        %v893 = vunpack.c.l.b16 %v642
        %v894 = vunpack.c.h.b16 %v642
        %v895 = vunpack.c.l.b16 %v643
        %v896 = vunpack.c.h.b16 %v643
        %v897 = vunpack.c.l.b16 %v644
        %v898 = vunpack.c.h.b16 %v644
        %v899 = vunpack.c.l.b16 %v645
        %v900 = vunpack.c.h.b16 %v645
        %v901 = vunpack.c.l.b16 %v646
        %v902 = vunpack.c.h.b16 %v646
        %v903 = vunpack.c.l.b16 %v647
        %v904 = vunpack.c.h.b16 %v647
        %v905 = vunpack.c.l.b16 %v648
        %v906 = vunpack.c.h.b16 %v648
        %v907 = vunpack.c.l.b16 %v649
        %v908 = vunpack.c.h.b16 %v649
        %v909 = vunpack.c.l.b16 %v650
        %v910 = vunpack.c.h.b16 %v650
        %v911 = vunpack.c.l.b16 %v651
        %v912 = vunpack.c.h.b16 %v651
        %v913 = vunpack.c.l.b16 %v652
        %v914 = vunpack.c.h.b16 %v652
        %v915 = vpack.c.b16 %v853, %v851
        %v916 = vpack.c.b16 %v854, %v852
        %v917 = vpack.c.b16 %v857, %v855
        %v918 = vpack.c.b16 %v858, %v856
        %v919 = vpack.c.b16 %v861, %v859
        %v920 = vpack.c.b16 %v862, %v860
        %v921 = vpack.c.b16 %v865, %v863
        %v922 = vpack.c.b16 %v866, %v864
        %v923 = vpack.c.b16 %v869, %v867
        %v924 = vpack.c.b16 %v870, %v868
        %v925 = vpack.c.b16 %v873, %v871
        %v926 = vpack.c.b16 %v874, %v872
        %v927 = vpack.c.b16 %v877, %v875
        %v928 = vpack.c.b16 %v878, %v876
        %v929 = vpack.c.b16 %v881, %v879
        %v930 = vpack.c.b16 %v882, %v880
        %v931 = vpack.c.b16 %v885, %v883
        %v932 = vpack.c.b16 %v886, %v884
        %v933 = vpack.c.b16 %v889, %v887
        %v934 = vpack.c.b16 %v890, %v888
        %v935 = vpack.c.b16 %v893, %v891
        %v936 = vpack.c.b16 %v894, %v892
        %v937 = vpack.c.b16 %v897, %v895
        %v938 = vpack.c.b16 %v898, %v896
        %v939 = vpack.c.b16 %v901, %v899
        %v940 = vpack.c.b16 %v902, %v900
        %v941 = vpack.c.b16 %v905, %v903
        %v942 = vpack.c.b16 %v906, %v904
        %v943 = vpack.c.b16 %v909, %v907
        %v944 = vpack.c.b16 %v910, %v908
        %v945 = vpack.c.b16 %v913, %v911
        %v946 = vpack.c.b16 %v914, %v912
        %979 = vmatpush.bf16.msra.mxu0 %v929
        %980 = vmatpush.bf16.msra.mxu0 %v927
        %981 = vmatpush.bf16.msra.mxu0 %v925
        %982 = vmatpush.bf16.msra.mxu0 %v923
        %983 = vmatpush.bf16.msra.mxu0 %v921
        %984 = vmatpush.bf16.msra.mxu0 %v919
        %985 = vmatpush.bf16.msra.mxu0 %v917
        %986 = vmatpush.bf16.msra.mxu0 %v915
        %987 = vmatmul.bf16.gmra.mxu0 %v755
        %v988 = vpop.f32.mrf.mxu0
        %v989 = vadd.f32 %v655, %v988
        %v990 = vpop.f32.mrf.mxu0
        %v991 = vadd.f32 %v655, %v990
        %992 = vmatmul.bf16.gmra.mxu0 %v757
        %v993 = vpop.f32.mrf.mxu0
        %v994 = vadd.f32 %v655, %v993
        %v995 = vpop.f32.mrf.mxu0
        %v996 = vadd.f32 %v655, %v995
        %997 = vmatmul.bf16.gmra.mxu0 %v759
        %v998 = vpop.f32.mrf.mxu0
        %v999 = vadd.f32 %v655, %v998
        %v1000 = vpop.f32.mrf.mxu0
        %v1001 = vadd.f32 %v655, %v1000
        %1002 = vmatmul.bf16.gmra.mxu0 %v761
        %v1003 = vpop.f32.mrf.mxu0
        %v1004 = vadd.f32 %v655, %v1003
        %v1005 = vpop.f32.mrf.mxu0
        %v1006 = vadd.f32 %v655, %v1005
        %1007 = vmatmul.bf16.gmra.mxu0 %v763
        %v1008 = vpop.f32.mrf.mxu0
        %v1009 = vadd.f32 %v655, %v1008
        %v1010 = vpop.f32.mrf.mxu0
        %v1011 = vadd.f32 %v655, %v1010
        %1012 = vmatmul.bf16.gmra.mxu0 %v765
        %v1013 = vpop.f32.mrf.mxu0
        %v1014 = vadd.f32 %v655, %v1013
        %v1015 = vpop.f32.mrf.mxu0
        %v1016 = vadd.f32 %v655, %v1015
        %1017 = vmatmul.bf16.gmra.mxu0 %v767
        %v1018 = vpop.f32.mrf.mxu0
        %v1019 = vadd.f32 %v655, %v1018
        %v1020 = vpop.f32.mrf.mxu0
        %v1021 = vadd.f32 %v655, %v1020
        %1022 = vmatmul.bf16.gmra.mxu0 %v769
        %v1023 = vpop.f32.mrf.mxu0
        %v1024 = vadd.f32 %v655, %v1023
        %v1025 = vpop.f32.mrf.mxu0
        %v1026 = vadd.f32 %v655, %v1025
        %1027 = vmatmul.bf16.gmra.mxu0 %v771
        %v1028 = vpop.f32.mrf.mxu0
        %v1029 = vadd.f32 %v655, %v1028
        %v1030 = vpop.f32.mrf.mxu0
        %v1031 = vadd.f32 %v655, %v1030
        %1032 = vmatmul.bf16.gmra.mxu0 %v773
        %v1033 = vpop.f32.mrf.mxu0
        %v1034 = vadd.f32 %v655, %v1033
        %v1035 = vpop.f32.mrf.mxu0
        %v1036 = vadd.f32 %v655, %v1035
        %1037 = vmatmul.bf16.gmra.mxu0 %v775
        %v1038 = vpop.f32.mrf.mxu0
        %v1039 = vadd.f32 %v655, %v1038
        %v1040 = vpop.f32.mrf.mxu0
        %v1041 = vadd.f32 %v655, %v1040
        %1042 = vmatmul.bf16.gmra.mxu0 %v777
        %v1043 = vpop.f32.mrf.mxu0
        %v1044 = vadd.f32 %v655, %v1043
        %v1045 = vpop.f32.mrf.mxu0
        %v1046 = vadd.f32 %v655, %v1045
        %1047 = vmatmul.bf16.gmra.mxu0 %v779
        %v1048 = vpop.f32.mrf.mxu0
        %v1049 = vadd.f32 %v655, %v1048
        %v1050 = vpop.f32.mrf.mxu0
        %v1051 = vadd.f32 %v655, %v1050
        %1052 = vmatmul.bf16.gmra.mxu0 %v781
        %v1053 = vpop.f32.mrf.mxu0
        %v1054 = vadd.f32 %v655, %v1053
        %v1055 = vpop.f32.mrf.mxu0
        %v1056 = vadd.f32 %v655, %v1055
        %1057 = vmatmul.bf16.gmra.mxu0 %v783
        %v1058 = vpop.f32.mrf.mxu0
        %v1059 = vadd.f32 %v655, %v1058
        %v1060 = vpop.f32.mrf.mxu0
        %v1061 = vadd.f32 %v655, %v1060
        %1062 = vmatmul.bf16.gmra.mxu0 %v785
        %v1063 = vpop.f32.mrf.mxu0
        %v1064 = vadd.f32 %v655, %v1063
        %v1065 = vpop.f32.mrf.mxu0
        %v1066 = vadd.f32 %v655, %v1065
        %1067 = vdwg.mxu0
        %1068 = vmatpush.bf16.msra.mxu0 %v945
        %1069 = vmatpush.bf16.msra.mxu0 %v943
        %1070 = vmatpush.bf16.msra.mxu0 %v941
        %1071 = vmatpush.bf16.msra.mxu0 %v939
        %1072 = vmatpush.bf16.msra.mxu0 %v937
        %1073 = vmatpush.bf16.msra.mxu0 %v935
        %1074 = vmatpush.bf16.msra.mxu0 %v933
        %1075 = vmatpush.bf16.msra.mxu0 %v931
        %1076 = vmatmul.bf16.gmra.mxu0 %v756
        %v1077 = vpop.f32.mrf.mxu0
        %v1078 = vadd.f32 %v989, %v1077
        %v1079 = vpop.f32.mrf.mxu0
        %v1080 = vadd.f32 %v991, %v1079
        %1081 = vmatmul.bf16.gmra.mxu0 %v758
        %v1082 = vpop.f32.mrf.mxu0
        %v1083 = vadd.f32 %v994, %v1082
        %v1084 = vpop.f32.mrf.mxu0
        %v1085 = vadd.f32 %v996, %v1084
        %1086 = vmatmul.bf16.gmra.mxu0 %v760
        %v1087 = vpop.f32.mrf.mxu0
        %v1088 = vadd.f32 %v999, %v1087
        %v1089 = vpop.f32.mrf.mxu0
        %v1090 = vadd.f32 %v1001, %v1089
        %1091 = vmatmul.bf16.gmra.mxu0 %v762
        %v1092 = vpop.f32.mrf.mxu0
        %v1093 = vadd.f32 %v1004, %v1092
        %v1094 = vpop.f32.mrf.mxu0
        %v1095 = vadd.f32 %v1006, %v1094
        %1096 = vmatmul.bf16.gmra.mxu0 %v764
        %v1097 = vpop.f32.mrf.mxu0
        %v1098 = vadd.f32 %v1009, %v1097
        %v1099 = vpop.f32.mrf.mxu0
        %v1100 = vadd.f32 %v1011, %v1099
        %1101 = vmatmul.bf16.gmra.mxu0 %v766
        %v1102 = vpop.f32.mrf.mxu0
        %v1103 = vadd.f32 %v1014, %v1102
        %v1104 = vpop.f32.mrf.mxu0
        %v1105 = vadd.f32 %v1016, %v1104
        %1106 = vmatmul.bf16.gmra.mxu0 %v768
        %v1107 = vpop.f32.mrf.mxu0
        %v1108 = vadd.f32 %v1019, %v1107
        %v1109 = vpop.f32.mrf.mxu0
        %v1110 = vadd.f32 %v1021, %v1109
        %1111 = vmatmul.bf16.gmra.mxu0 %v770
        %v1112 = vpop.f32.mrf.mxu0
        %v1113 = vadd.f32 %v1024, %v1112
        %v1114 = vpop.f32.mrf.mxu0
        %v1115 = vadd.f32 %v1026, %v1114
        %1116 = vmatmul.bf16.gmra.mxu0 %v772
        %v1117 = vpop.f32.mrf.mxu0
        %v1118 = vadd.f32 %v1029, %v1117
        %v1119 = vpop.f32.mrf.mxu0
        %v1120 = vadd.f32 %v1031, %v1119
        %1121 = vmatmul.bf16.gmra.mxu0 %v774
        %v1122 = vpop.f32.mrf.mxu0
        %v1123 = vadd.f32 %v1034, %v1122
        %v1124 = vpop.f32.mrf.mxu0
        %v1125 = vadd.f32 %v1036, %v1124
        %1126 = vmatmul.bf16.gmra.mxu0 %v776
        %v1127 = vpop.f32.mrf.mxu0
        %v1128 = vadd.f32 %v1039, %v1127
        %v1129 = vpop.f32.mrf.mxu0
        %v1130 = vadd.f32 %v1041, %v1129
        %1131 = vmatmul.bf16.gmra.mxu0 %v778
        %v1132 = vpop.f32.mrf.mxu0
        %v1133 = vadd.f32 %v1044, %v1132
        %v1134 = vpop.f32.mrf.mxu0
        %v1135 = vadd.f32 %v1046, %v1134
        %1136 = vmatmul.bf16.gmra.mxu0 %v780
        %v1137 = vpop.f32.mrf.mxu0
        %v1138 = vadd.f32 %v1049, %v1137
        %v1139 = vpop.f32.mrf.mxu0
        %v1140 = vadd.f32 %v1051, %v1139
        %1141 = vmatmul.bf16.gmra.mxu0 %v782
        %v1142 = vpop.f32.mrf.mxu0
        %v1143 = vadd.f32 %v1054, %v1142
        %v1144 = vpop.f32.mrf.mxu0
        %v1145 = vadd.f32 %v1056, %v1144
        %1146 = vmatmul.bf16.gmra.mxu0 %v784
        %v1147 = vpop.f32.mrf.mxu0
        %v1148 = vadd.f32 %v1059, %v1147
        %v1149 = vpop.f32.mrf.mxu0
        %v1150 = vadd.f32 %v1061, %v1149
        %1151 = vmatmul.bf16.gmra.mxu0 %v786
        %v1152 = vpop.f32.mrf.mxu0
        %v1153 = vadd.f32 %v1064, %v1152
        %v1154 = vpop.f32.mrf.mxu0
        %v1155 = vadd.f32 %v1066, %v1154
        %1156 = vdwg.mxu0
        %1157 = vmatpush.bf16.msra.mxu0 %v930
        %1158 = vmatpush.bf16.msra.mxu0 %v928
        %1159 = vmatpush.bf16.msra.mxu0 %v926
        %1160 = vmatpush.bf16.msra.mxu0 %v924
        %1161 = vmatpush.bf16.msra.mxu0 %v922
        %1162 = vmatpush.bf16.msra.mxu0 %v920
        %1163 = vmatpush.bf16.msra.mxu0 %v918
        %1164 = vmatpush.bf16.msra.mxu0 %v916
        %1165 = vmatmul.bf16.gmra.mxu0 %v755
        %v1166 = vpop.f32.mrf.mxu0
        %v1167 = vadd.f32 %v656, %v1166
        %v1168 = vpop.f32.mrf.mxu0
        %v1169 = vadd.f32 %v656, %v1168
        %1170 = vmatmul.bf16.gmra.mxu0 %v757
        %v1171 = vpop.f32.mrf.mxu0
        %v1172 = vadd.f32 %v656, %v1171
        %v1173 = vpop.f32.mrf.mxu0
        %v1174 = vadd.f32 %v656, %v1173
        %1175 = vmatmul.bf16.gmra.mxu0 %v759
        %v1176 = vpop.f32.mrf.mxu0
        %v1177 = vadd.f32 %v656, %v1176
        %v1178 = vpop.f32.mrf.mxu0
        %v1179 = vadd.f32 %v656, %v1178
        %1180 = vmatmul.bf16.gmra.mxu0 %v761
        %v1181 = vpop.f32.mrf.mxu0
        %v1182 = vadd.f32 %v656, %v1181
        %v1183 = vpop.f32.mrf.mxu0
        %v1184 = vadd.f32 %v656, %v1183
        %1185 = vmatmul.bf16.gmra.mxu0 %v763
        %v1186 = vpop.f32.mrf.mxu0
        %v1187 = vadd.f32 %v656, %v1186
        %v1188 = vpop.f32.mrf.mxu0
        %v1189 = vadd.f32 %v656, %v1188
        %1190 = vmatmul.bf16.gmra.mxu0 %v765
        %v1191 = vpop.f32.mrf.mxu0
        %v1192 = vadd.f32 %v656, %v1191
        %v1193 = vpop.f32.mrf.mxu0
        %v1194 = vadd.f32 %v656, %v1193
        %1195 = vmatmul.bf16.gmra.mxu0 %v767
        %v1196 = vpop.f32.mrf.mxu0
        %v1197 = vadd.f32 %v656, %v1196
        %v1198 = vpop.f32.mrf.mxu0
        %v1199 = vadd.f32 %v656, %v1198
        %1200 = vmatmul.bf16.gmra.mxu0 %v769
        %v1201 = vpop.f32.mrf.mxu0
        %v1202 = vadd.f32 %v656, %v1201
        %v1203 = vpop.f32.mrf.mxu0
        %v1204 = vadd.f32 %v656, %v1203
        %1205 = vmatmul.bf16.gmra.mxu0 %v771
        %v1206 = vpop.f32.mrf.mxu0
        %v1207 = vadd.f32 %v656, %v1206
        %v1208 = vpop.f32.mrf.mxu0
        %v1209 = vadd.f32 %v656, %v1208
        %1210 = vmatmul.bf16.gmra.mxu0 %v773
        %v1211 = vpop.f32.mrf.mxu0
        %v1212 = vadd.f32 %v656, %v1211
        %v1213 = vpop.f32.mrf.mxu0
        %v1214 = vadd.f32 %v656, %v1213
        %1215 = vmatmul.bf16.gmra.mxu0 %v775
        %v1216 = vpop.f32.mrf.mxu0
        %v1217 = vadd.f32 %v656, %v1216
        %v1218 = vpop.f32.mrf.mxu0
        %v1219 = vadd.f32 %v656, %v1218
        %1220 = vmatmul.bf16.gmra.mxu0 %v777
        %v1221 = vpop.f32.mrf.mxu0
        %v1222 = vadd.f32 %v656, %v1221
        %v1223 = vpop.f32.mrf.mxu0
        %v1224 = vadd.f32 %v656, %v1223
        %1225 = vmatmul.bf16.gmra.mxu0 %v779
        %v1226 = vpop.f32.mrf.mxu0
        %v1227 = vadd.f32 %v656, %v1226
        %v1228 = vpop.f32.mrf.mxu0
        %v1229 = vadd.f32 %v656, %v1228
        %1230 = vmatmul.bf16.gmra.mxu0 %v781
        %v1231 = vpop.f32.mrf.mxu0
        %v1232 = vadd.f32 %v656, %v1231
        %v1233 = vpop.f32.mrf.mxu0
        %v1234 = vadd.f32 %v656, %v1233
        %1235 = vmatmul.bf16.gmra.mxu0 %v783
        %v1236 = vpop.f32.mrf.mxu0
        %v1237 = vadd.f32 %v656, %v1236
        %v1238 = vpop.f32.mrf.mxu0
        %v1239 = vadd.f32 %v656, %v1238
        %1240 = vmatmul.bf16.gmra.mxu0 %v785
        %v1241 = vpop.f32.mrf.mxu0
        %v1242 = vadd.f32 %v656, %v1241
        %v1243 = vpop.f32.mrf.mxu0
        %v1244 = vadd.f32 %v656, %v1243
        %1245 = vdwg.mxu0
        %1246 = vmatpush.bf16.msra.mxu0 %v946
        %1247 = vmatpush.bf16.msra.mxu0 %v944
        %1248 = vmatpush.bf16.msra.mxu0 %v942
        %1249 = vmatpush.bf16.msra.mxu0 %v940
        %1250 = vmatpush.bf16.msra.mxu0 %v938
        %1251 = vmatpush.bf16.msra.mxu0 %v936
        %1252 = vmatpush.bf16.msra.mxu0 %v934
        %1253 = vmatpush.bf16.msra.mxu0 %v932
        %1254 = vmatmul.bf16.gmra.mxu0 %v756
        %v1255 = vpop.f32.mrf.mxu0
        %v1256 = vadd.f32 %v1167, %v1255
        %v1257 = vpop.f32.mrf.mxu0
        %v1258 = vadd.f32 %v1169, %v1257
        %1259 = vmatmul.bf16.gmra.mxu0 %v758
        %v1260 = vpop.f32.mrf.mxu0
        %v1261 = vadd.f32 %v1172, %v1260
        %v1262 = vpop.f32.mrf.mxu0
        %v1263 = vadd.f32 %v1174, %v1262
        %1264 = vmatmul.bf16.gmra.mxu0 %v760
        %v1265 = vpop.f32.mrf.mxu0
        %v1266 = vadd.f32 %v1177, %v1265
        %v1267 = vpop.f32.mrf.mxu0
        %v1268 = vadd.f32 %v1179, %v1267
        %1269 = vmatmul.bf16.gmra.mxu0 %v762
        %v1270 = vpop.f32.mrf.mxu0
        %v1271 = vadd.f32 %v1182, %v1270
        %v1272 = vpop.f32.mrf.mxu0
        %v1273 = vadd.f32 %v1184, %v1272
        %1274 = vmatmul.bf16.gmra.mxu0 %v764
        %v1275 = vpop.f32.mrf.mxu0
        %v1276 = vadd.f32 %v1187, %v1275
        %v1277 = vpop.f32.mrf.mxu0
        %v1278 = vadd.f32 %v1189, %v1277
        %1279 = vmatmul.bf16.gmra.mxu0 %v766
        %v1280 = vpop.f32.mrf.mxu0
        %v1281 = vadd.f32 %v1192, %v1280
        %v1282 = vpop.f32.mrf.mxu0
        %v1283 = vadd.f32 %v1194, %v1282
        %1284 = vmatmul.bf16.gmra.mxu0 %v768
        %v1285 = vpop.f32.mrf.mxu0
        %v1286 = vadd.f32 %v1197, %v1285
        %v1287 = vpop.f32.mrf.mxu0
        %v1288 = vadd.f32 %v1199, %v1287
        %1289 = vmatmul.bf16.gmra.mxu0 %v770
        %v1290 = vpop.f32.mrf.mxu0
        %v1291 = vadd.f32 %v1202, %v1290
        %v1292 = vpop.f32.mrf.mxu0
        %v1293 = vadd.f32 %v1204, %v1292
        %1294 = vmatmul.bf16.gmra.mxu0 %v772
        %v1295 = vpop.f32.mrf.mxu0
        %v1296 = vadd.f32 %v1207, %v1295
        %v1297 = vpop.f32.mrf.mxu0
        %v1298 = vadd.f32 %v1209, %v1297
        %1299 = vmatmul.bf16.gmra.mxu0 %v774
        %v1300 = vpop.f32.mrf.mxu0
        %v1301 = vadd.f32 %v1212, %v1300
        %v1302 = vpop.f32.mrf.mxu0
        %v1303 = vadd.f32 %v1214, %v1302
        %1304 = vmatmul.bf16.gmra.mxu0 %v776
        %v1305 = vpop.f32.mrf.mxu0
        %v1306 = vadd.f32 %v1217, %v1305
        %v1307 = vpop.f32.mrf.mxu0
        %v1308 = vadd.f32 %v1219, %v1307
        %1309 = vmatmul.bf16.gmra.mxu0 %v778
        %v1310 = vpop.f32.mrf.mxu0
        %v1311 = vadd.f32 %v1222, %v1310
        %v1312 = vpop.f32.mrf.mxu0
        %v1313 = vadd.f32 %v1224, %v1312
        %1314 = vmatmul.bf16.gmra.mxu0 %v780
        %v1315 = vpop.f32.mrf.mxu0
        %v1316 = vadd.f32 %v1227, %v1315
        %v1317 = vpop.f32.mrf.mxu0
        %v1318 = vadd.f32 %v1229, %v1317
        %1319 = vmatmul.bf16.gmra.mxu0 %v782
        %v1320 = vpop.f32.mrf.mxu0
        %v1321 = vadd.f32 %v1232, %v1320
        %v1322 = vpop.f32.mrf.mxu0
        %v1323 = vadd.f32 %v1234, %v1322
        %1324 = vmatmul.bf16.gmra.mxu0 %v784
        %v1325 = vpop.f32.mrf.mxu0
        %v1326 = vadd.f32 %v1237, %v1325
        %v1327 = vpop.f32.mrf.mxu0
        %v1328 = vadd.f32 %v1239, %v1327
        %1329 = vmatmul.bf16.gmra.mxu0 %v786
        %v1330 = vpop.f32.mrf.mxu0
        %v1331 = vadd.f32 %v1242, %v1330
        %v1332 = vpop.f32.mrf.mxu0
        %v1333 = vadd.f32 %v1244, %v1332
        %1334 = vdwg.mxu0
        %v1335 = vmul.f32 %v1078, 0.01
        %v1336 = vmul.f32 %v1256, 0.01
        %v1337 = vmul.f32 %v1080, 0.01
        %v1338 = vmul.f32 %v1258, 0.01
        %v1339 = vmul.f32 %v1083, 0.01
        %v1340 = vmul.f32 %v1261, 0.01
        %v1341 = vmul.f32 %v1085, 0.01
        %v1342 = vmul.f32 %v1263, 0.01
        %v1343 = vmul.f32 %v1088, 0.01
        %v1344 = vmul.f32 %v1266, 0.01
        %v1345 = vmul.f32 %v1090, 0.01
        %v1346 = vmul.f32 %v1268, 0.01
        %v1347 = vmul.f32 %v1093, 0.01
        %v1348 = vmul.f32 %v1271, 0.01
        %v1349 = vmul.f32 %v1095, 0.01
        %v1350 = vmul.f32 %v1273, 0.01
        %v1351 = vmul.f32 %v1098, 0.01
        %v1352 = vmul.f32 %v1276, 0.01
        %v1353 = vmul.f32 %v1100, 0.01
        %v1354 = vmul.f32 %v1278, 0.01
        %v1355 = vmul.f32 %v1103, 0.01
        %v1356 = vmul.f32 %v1281, 0.01
        %v1357 = vmul.f32 %v1105, 0.01
        %v1358 = vmul.f32 %v1283, 0.01
        %v1359 = vmul.f32 %v1108, 0.01
        %v1360 = vmul.f32 %v1286, 0.01
        %v1361 = vmul.f32 %v1110, 0.01
        %v1362 = vmul.f32 %v1288, 0.01
        %v1363 = vmul.f32 %v1113, 0.01
        %v1364 = vmul.f32 %v1291, 0.01
        %v1365 = vmul.f32 %v1115, 0.01
        %v1366 = vmul.f32 %v1293, 0.01
        %v1367 = vmul.f32 %v1118, 0.01
        %v1368 = vmul.f32 %v1296, 0.01
        %v1369 = vmul.f32 %v1120, 0.01
        %v1370 = vmul.f32 %v1298, 0.01
        %v1371 = vmul.f32 %v1123, 0.01
        %v1372 = vmul.f32 %v1301, 0.01
        %v1373 = vmul.f32 %v1125, 0.01
        %v1374 = vmul.f32 %v1303, 0.01
        %v1375 = vmul.f32 %v1128, 0.01
        %v1376 = vmul.f32 %v1306, 0.01
        %v1377 = vmul.f32 %v1130, 0.01
        %v1378 = vmul.f32 %v1308, 0.01
        %v1379 = vmul.f32 %v1133, 0.01
        %v1380 = vmul.f32 %v1311, 0.01
        %v1381 = vmul.f32 %v1135, 0.01
        %v1382 = vmul.f32 %v1313, 0.01
        %v1383 = vmul.f32 %v1138, 0.01
        %v1384 = vmul.f32 %v1316, 0.01
        %v1385 = vmul.f32 %v1140, 0.01
        %v1386 = vmul.f32 %v1318, 0.01
        %v1387 = vmul.f32 %v1143, 0.01
        %v1388 = vmul.f32 %v1321, 0.01
        %v1389 = vmul.f32 %v1145, 0.01
        %v1390 = vmul.f32 %v1323, 0.01
        %v1391 = vmul.f32 %v1148, 0.01
        %v1392 = vmul.f32 %v1326, 0.01
        %v1393 = vmul.f32 %v1150, 0.01
        %v1394 = vmul.f32 %v1328, 0.01
        %v1395 = vmul.f32 %v1153, 0.01
        %v1396 = vmul.f32 %v1331, 0.01
        %v1397 = vmul.f32 %v1155, 0.01
        %v1398 = vmul.f32 %v1333, 0.01
        %v1399 = vmax.f32 %v1078, %v1335
        %v1400 = vmax.f32 %v1256, %v1336
        %v1401 = vmax.f32 %v1080, %v1337
        %v1402 = vmax.f32 %v1258, %v1338
        %v1403 = vmax.f32 %v1083, %v1339
        %v1404 = vmax.f32 %v1261, %v1340
        %v1405 = vmax.f32 %v1085, %v1341
        %v1406 = vmax.f32 %v1263, %v1342
        %v1407 = vmax.f32 %v1088, %v1343
        %v1408 = vmax.f32 %v1266, %v1344
        %v1409 = vmax.f32 %v1090, %v1345
        %v1410 = vmax.f32 %v1268, %v1346
        %v1411 = vmax.f32 %v1093, %v1347
        %v1412 = vmax.f32 %v1271, %v1348
        %v1413 = vmax.f32 %v1095, %v1349
        %v1414 = vmax.f32 %v1273, %v1350
        %v1415 = vmax.f32 %v1098, %v1351
        %v1416 = vmax.f32 %v1276, %v1352
        %v1417 = vmax.f32 %v1100, %v1353
        %v1418 = vmax.f32 %v1278, %v1354
        %v1419 = vmax.f32 %v1103, %v1355
        %v1420 = vmax.f32 %v1281, %v1356
        %v1421 = vmax.f32 %v1105, %v1357
        %v1422 = vmax.f32 %v1283, %v1358
        %v1423 = vmax.f32 %v1108, %v1359
        %v1424 = vmax.f32 %v1286, %v1360
        %v1425 = vmax.f32 %v1110, %v1361
        %v1426 = vmax.f32 %v1288, %v1362
        %v1427 = vmax.f32 %v1113, %v1363
        %v1428 = vmax.f32 %v1291, %v1364
        %v1429 = vmax.f32 %v1115, %v1365
        %v1430 = vmax.f32 %v1293, %v1366
        %v1431 = vmax.f32 %v1118, %v1367
        %v1432 = vmax.f32 %v1296, %v1368
        %v1433 = vmax.f32 %v1120, %v1369
        %v1434 = vmax.f32 %v1298, %v1370
        %v1435 = vmax.f32 %v1123, %v1371
        %v1436 = vmax.f32 %v1301, %v1372
        %v1437 = vmax.f32 %v1125, %v1373
        %v1438 = vmax.f32 %v1303, %v1374
        %v1439 = vmax.f32 %v1128, %v1375
        %v1440 = vmax.f32 %v1306, %v1376
        %v1441 = vmax.f32 %v1130, %v1377
        %v1442 = vmax.f32 %v1308, %v1378
        %v1443 = vmax.f32 %v1133, %v1379
        %v1444 = vmax.f32 %v1311, %v1380
        %v1445 = vmax.f32 %v1135, %v1381
        %v1446 = vmax.f32 %v1313, %v1382
        %v1447 = vmax.f32 %v1138, %v1383
        %v1448 = vmax.f32 %v1316, %v1384
        %v1449 = vmax.f32 %v1140, %v1385
        %v1450 = vmax.f32 %v1318, %v1386
        %v1451 = vmax.f32 %v1143, %v1387
        %v1452 = vmax.f32 %v1321, %v1388
        %v1453 = vmax.f32 %v1145, %v1389
        %v1454 = vmax.f32 %v1323, %v1390
        %v1455 = vmax.f32 %v1148, %v1391
        %v1456 = vmax.f32 %v1326, %v1392
        %v1457 = vmax.f32 %v1150, %v1393
        %v1458 = vmax.f32 %v1328, %v1394
        %v1459 = vmax.f32 %v1153, %v1395
        %v1460 = vmax.f32 %v1331, %v1396
        %v1461 = vmax.f32 %v1155, %v1397
        %v1462 = vmax.f32 %v1333, %v1398
        %v1463 = vpack.c.bf16 %v1401, %v1399
        %v1464 = vpack.c.bf16 %v1402, %v1400
        %v1465 = vpack.c.bf16 %v1405, %v1403
        %v1466 = vpack.c.bf16 %v1406, %v1404
        %v1467 = vpack.c.bf16 %v1409, %v1407
        %v1468 = vpack.c.bf16 %v1410, %v1408
        %v1469 = vpack.c.bf16 %v1413, %v1411
        %v1470 = vpack.c.bf16 %v1414, %v1412
        %v1471 = vpack.c.bf16 %v1417, %v1415
        %v1472 = vpack.c.bf16 %v1418, %v1416
        %v1473 = vpack.c.bf16 %v1421, %v1419
        %v1474 = vpack.c.bf16 %v1422, %v1420
        %v1475 = vpack.c.bf16 %v1425, %v1423
        %v1476 = vpack.c.bf16 %v1426, %v1424
        %v1477 = vpack.c.bf16 %v1429, %v1427
        %v1478 = vpack.c.bf16 %v1430, %v1428
        %v1479 = vpack.c.bf16 %v1433, %v1431
        %v1480 = vpack.c.bf16 %v1434, %v1432
        %v1481 = vpack.c.bf16 %v1437, %v1435
        %v1482 = vpack.c.bf16 %v1438, %v1436
        %v1483 = vpack.c.bf16 %v1441, %v1439
        %v1484 = vpack.c.bf16 %v1442, %v1440
        %v1485 = vpack.c.bf16 %v1445, %v1443
        %v1486 = vpack.c.bf16 %v1446, %v1444
        %v1487 = vpack.c.bf16 %v1449, %v1447
        %v1488 = vpack.c.bf16 %v1450, %v1448
        %v1489 = vpack.c.bf16 %v1453, %v1451
        %v1490 = vpack.c.bf16 %v1454, %v1452
        %v1491 = vpack.c.bf16 %v1457, %v1455
        %v1492 = vpack.c.bf16 %v1458, %v1456
        %v1493 = vpack.c.bf16 %v1461, %v1459
        %v1494 = vpack.c.bf16 %v1462, %v1460
        %v1495 = vld [vmem:[#allocation7] sm:$0xff]
        %v1496 = vld [vmem:[#allocation7 + $0x8] sm:$0xff]
        %v1497 = vld [vmem:[#allocation7 + $0x10] sm:$0xff]
        %v1498 = vld [vmem:[#allocation7 + $0x18] sm:$0xff]
        %v1499 = vld [vmem:[#allocation7 + $0x20] sm:$0xff]
        %v1500 = vld [vmem:[#allocation7 + $0x28] sm:$0xff]
        %v1501 = vld [vmem:[#allocation7 + $0x30] sm:$0xff]
        %v1502 = vld [vmem:[#allocation7 + $0x38] sm:$0xff]
        %v1503 = vld [vmem:[#allocation7 + $0x40] sm:$0xff]
        %v1504 = vld [vmem:[#allocation7 + $0x48] sm:$0xff]
        %v1505 = vld [vmem:[#allocation7 + $0x50] sm:$0xff]
        %v1506 = vld [vmem:[#allocation7 + $0x58] sm:$0xff]
        %v1507 = vld [vmem:[#allocation7 + $0x60] sm:$0xff]
        %v1508 = vld [vmem:[#allocation7 + $0x68] sm:$0xff]
        %v1509 = vld [vmem:[#allocation7 + $0x70] sm:$0xff]
        %v1510 = vld [vmem:[#allocation7 + $0x78] sm:$0xff]
        %v1511 = vld [vmem:[#allocation7 + $0x80] sm:$0xff]
        %v1512 = vld [vmem:[#allocation7 + $0x88] sm:$0xff]
        %v1513 = vld [vmem:[#allocation7 + $0x90] sm:$0xff]
        %v1514 = vld [vmem:[#allocation7 + $0x98] sm:$0xff]
        %v1515 = vld [vmem:[#allocation7 + $0xa0] sm:$0xff]
        %v1516 = vld [vmem:[#allocation7 + $0xa8] sm:$0xff]
        %v1517 = vld [vmem:[#allocation7 + $0xb0] sm:$0xff]
        %v1518 = vld [vmem:[#allocation7 + $0xb8] sm:$0xff]
        %v1519 = vld [vmem:[#allocation7 + $0xc0] sm:$0xff]
        %v1520 = vld [vmem:[#allocation7 + $0xc8] sm:$0xff]
        %v1521 = vld [vmem:[#allocation7 + $0xd0] sm:$0xff]
        %v1522 = vld [vmem:[#allocation7 + $0xd8] sm:$0xff]
        %v1523 = vld [vmem:[#allocation7 + $0xe0] sm:$0xff]
        %v1524 = vld [vmem:[#allocation7 + $0xe8] sm:$0xff]
        %v1525 = vld [vmem:[#allocation7 + $0xf0] sm:$0xff]
        %v1526 = vld [vmem:[#allocation7 + $0xf8] sm:$0xff]
        %v1527 = vld [vmem:[%s4] sm:$0x3]
        %v1529 = vperm.slane %v1527, 0
        %v1530 = vperm.slane %v1527, 1
        %v1565 = vunpack.c.l.b16 %v1495
        %v1566 = vunpack.c.h.b16 %v1495
        %v1567 = vunpack.c.l.b16 %v1496
        %v1568 = vunpack.c.h.b16 %v1496
        %v1569 = vunpack.c.l.b16 %v1497
        %v1570 = vunpack.c.h.b16 %v1497
        %v1571 = vunpack.c.l.b16 %v1498
        %v1572 = vunpack.c.h.b16 %v1498
        %v1573 = vunpack.c.l.b16 %v1499
        %v1574 = vunpack.c.h.b16 %v1499
        %v1575 = vunpack.c.l.b16 %v1500
        %v1576 = vunpack.c.h.b16 %v1500
        %v1577 = vunpack.c.l.b16 %v1501
        %v1578 = vunpack.c.h.b16 %v1501
        %v1579 = vunpack.c.l.b16 %v1502
        %v1580 = vunpack.c.h.b16 %v1502
        %v1581 = vunpack.c.l.b16 %v1503
        %v1582 = vunpack.c.h.b16 %v1503
        %v1583 = vunpack.c.l.b16 %v1504
        %v1584 = vunpack.c.h.b16 %v1504
        %v1585 = vunpack.c.l.b16 %v1505
        %v1586 = vunpack.c.h.b16 %v1505
        %v1587 = vunpack.c.l.b16 %v1506
        %v1588 = vunpack.c.h.b16 %v1506
        %v1589 = vunpack.c.l.b16 %v1507
        %v1590 = vunpack.c.h.b16 %v1507
        %v1591 = vunpack.c.l.b16 %v1508
        %v1592 = vunpack.c.h.b16 %v1508
        %v1593 = vunpack.c.l.b16 %v1509
        %v1594 = vunpack.c.h.b16 %v1509
        %v1595 = vunpack.c.l.b16 %v1510
        %v1596 = vunpack.c.h.b16 %v1510
        %v1597 = vunpack.c.l.b16 %v1511
        %v1598 = vunpack.c.h.b16 %v1511
        %v1599 = vunpack.c.l.b16 %v1512
        %v1600 = vunpack.c.h.b16 %v1512
        %v1601 = vunpack.c.l.b16 %v1513
        %v1602 = vunpack.c.h.b16 %v1513
        %v1603 = vunpack.c.l.b16 %v1514
        %v1604 = vunpack.c.h.b16 %v1514
        %v1605 = vunpack.c.l.b16 %v1515
        %v1606 = vunpack.c.h.b16 %v1515
        %v1607 = vunpack.c.l.b16 %v1516
        %v1608 = vunpack.c.h.b16 %v1516
        %v1609 = vunpack.c.l.b16 %v1517
        %v1610 = vunpack.c.h.b16 %v1517
        %v1611 = vunpack.c.l.b16 %v1518
        %v1612 = vunpack.c.h.b16 %v1518
        %v1613 = vunpack.c.l.b16 %v1519
        %v1614 = vunpack.c.h.b16 %v1519
        %v1615 = vunpack.c.l.b16 %v1520
        %v1616 = vunpack.c.h.b16 %v1520
        %v1617 = vunpack.c.l.b16 %v1521
        %v1618 = vunpack.c.h.b16 %v1521
        %v1619 = vunpack.c.l.b16 %v1522
        %v1620 = vunpack.c.h.b16 %v1522
        %v1621 = vunpack.c.l.b16 %v1523
        %v1622 = vunpack.c.h.b16 %v1523
        %v1623 = vunpack.c.l.b16 %v1524
        %v1624 = vunpack.c.h.b16 %v1524
        %v1625 = vunpack.c.l.b16 %v1525
        %v1626 = vunpack.c.h.b16 %v1525
        %v1627 = vunpack.c.l.b16 %v1526
        %v1628 = vunpack.c.h.b16 %v1526
        %v1629 = vpack.c.b16 %v1567, %v1565
        %v1630 = vpack.c.b16 %v1568, %v1566
        %v1631 = vpack.c.b16 %v1571, %v1569
        %v1632 = vpack.c.b16 %v1572, %v1570
        %v1633 = vpack.c.b16 %v1575, %v1573
        %v1634 = vpack.c.b16 %v1576, %v1574
        %v1635 = vpack.c.b16 %v1579, %v1577
        %v1636 = vpack.c.b16 %v1580, %v1578
        %v1637 = vpack.c.b16 %v1583, %v1581
        %v1638 = vpack.c.b16 %v1584, %v1582
        %v1639 = vpack.c.b16 %v1587, %v1585
        %v1640 = vpack.c.b16 %v1588, %v1586
        %v1641 = vpack.c.b16 %v1591, %v1589
        %v1642 = vpack.c.b16 %v1592, %v1590
        %v1643 = vpack.c.b16 %v1595, %v1593
        %v1644 = vpack.c.b16 %v1596, %v1594
        %v1645 = vpack.c.b16 %v1599, %v1597
        %v1646 = vpack.c.b16 %v1600, %v1598
        %v1647 = vpack.c.b16 %v1603, %v1601
        %v1648 = vpack.c.b16 %v1604, %v1602
        %v1649 = vpack.c.b16 %v1607, %v1605
        %v1650 = vpack.c.b16 %v1608, %v1606
        %v1651 = vpack.c.b16 %v1611, %v1609
        %v1652 = vpack.c.b16 %v1612, %v1610
        %v1653 = vpack.c.b16 %v1615, %v1613
        %v1654 = vpack.c.b16 %v1616, %v1614
        %v1655 = vpack.c.b16 %v1619, %v1617
        %v1656 = vpack.c.b16 %v1620, %v1618
        %v1657 = vpack.c.b16 %v1623, %v1621
        %v1658 = vpack.c.b16 %v1624, %v1622
        %v1659 = vpack.c.b16 %v1627, %v1625
        %v1660 = vpack.c.b16 %v1628, %v1626
        %1693 = vmatpush.bf16.msra.mxu0 %v1643
        %1694 = vmatpush.bf16.msra.mxu0 %v1641
        %1695 = vmatpush.bf16.msra.mxu0 %v1639
        %1696 = vmatpush.bf16.msra.mxu0 %v1637
        %1697 = vmatpush.bf16.msra.mxu0 %v1635
        %1698 = vmatpush.bf16.msra.mxu0 %v1633
        %1699 = vmatpush.bf16.msra.mxu0 %v1631
        %1700 = vmatpush.bf16.msra.mxu0 %v1629
        %1701 = vmatmul.bf16.gmra.mxu0 %v1463
        %v1702 = vpop.f32.mrf.mxu0
        %v1703 = vadd.f32 %v1529, %v1702
        %v1704 = vpop.f32.mrf.mxu0
        %v1705 = vadd.f32 %v1529, %v1704
        %1706 = vmatmul.bf16.gmra.mxu0 %v1465
        %v1707 = vpop.f32.mrf.mxu0
        %v1708 = vadd.f32 %v1529, %v1707
        %v1709 = vpop.f32.mrf.mxu0
        %v1710 = vadd.f32 %v1529, %v1709
        %1711 = vmatmul.bf16.gmra.mxu0 %v1467
        %v1712 = vpop.f32.mrf.mxu0
        %v1713 = vadd.f32 %v1529, %v1712
        %v1714 = vpop.f32.mrf.mxu0
        %v1715 = vadd.f32 %v1529, %v1714
        %1716 = vmatmul.bf16.gmra.mxu0 %v1469
        %v1717 = vpop.f32.mrf.mxu0
        %v1718 = vadd.f32 %v1529, %v1717
        %v1719 = vpop.f32.mrf.mxu0
        %v1720 = vadd.f32 %v1529, %v1719
        %1721 = vmatmul.bf16.gmra.mxu0 %v1471
        %v1722 = vpop.f32.mrf.mxu0
        %v1723 = vadd.f32 %v1529, %v1722
        %v1724 = vpop.f32.mrf.mxu0
        %v1725 = vadd.f32 %v1529, %v1724
        %1726 = vmatmul.bf16.gmra.mxu0 %v1473
        %v1727 = vpop.f32.mrf.mxu0
        %v1728 = vadd.f32 %v1529, %v1727
        %v1729 = vpop.f32.mrf.mxu0
        %v1730 = vadd.f32 %v1529, %v1729
        %1731 = vmatmul.bf16.gmra.mxu0 %v1475
        %v1732 = vpop.f32.mrf.mxu0
        %v1733 = vadd.f32 %v1529, %v1732
        %v1734 = vpop.f32.mrf.mxu0
        %v1735 = vadd.f32 %v1529, %v1734
        %1736 = vmatmul.bf16.gmra.mxu0 %v1477
        %v1737 = vpop.f32.mrf.mxu0
        %v1738 = vadd.f32 %v1529, %v1737
        %v1739 = vpop.f32.mrf.mxu0
        %v1740 = vadd.f32 %v1529, %v1739
        %1741 = vmatmul.bf16.gmra.mxu0 %v1479
        %v1742 = vpop.f32.mrf.mxu0
        %v1743 = vadd.f32 %v1529, %v1742
        %v1744 = vpop.f32.mrf.mxu0
        %v1745 = vadd.f32 %v1529, %v1744
        %1746 = vmatmul.bf16.gmra.mxu0 %v1481
        %v1747 = vpop.f32.mrf.mxu0
        %v1748 = vadd.f32 %v1529, %v1747
        %v1749 = vpop.f32.mrf.mxu0
        %v1750 = vadd.f32 %v1529, %v1749
        %1751 = vmatmul.bf16.gmra.mxu0 %v1483
        %v1752 = vpop.f32.mrf.mxu0
        %v1753 = vadd.f32 %v1529, %v1752
        %v1754 = vpop.f32.mrf.mxu0
        %v1755 = vadd.f32 %v1529, %v1754
        %1756 = vmatmul.bf16.gmra.mxu0 %v1485
        %v1757 = vpop.f32.mrf.mxu0
        %v1758 = vadd.f32 %v1529, %v1757
        %v1759 = vpop.f32.mrf.mxu0
        %v1760 = vadd.f32 %v1529, %v1759
        %1761 = vmatmul.bf16.gmra.mxu0 %v1487
        %v1762 = vpop.f32.mrf.mxu0
        %v1763 = vadd.f32 %v1529, %v1762
        %v1764 = vpop.f32.mrf.mxu0
        %v1765 = vadd.f32 %v1529, %v1764
        %1766 = vmatmul.bf16.gmra.mxu0 %v1489
        %v1767 = vpop.f32.mrf.mxu0
        %v1768 = vadd.f32 %v1529, %v1767
        %v1769 = vpop.f32.mrf.mxu0
        %v1770 = vadd.f32 %v1529, %v1769
        %1771 = vmatmul.bf16.gmra.mxu0 %v1491
        %v1772 = vpop.f32.mrf.mxu0
        %v1773 = vadd.f32 %v1529, %v1772
        %v1774 = vpop.f32.mrf.mxu0
        %v1775 = vadd.f32 %v1529, %v1774
        %1776 = vmatmul.bf16.gmra.mxu0 %v1493
        %v1777 = vpop.f32.mrf.mxu0
        %v1778 = vadd.f32 %v1529, %v1777
        %v1779 = vpop.f32.mrf.mxu0
        %v1780 = vadd.f32 %v1529, %v1779
        %1781 = vdwg.mxu0
        %1782 = vmatpush.bf16.msra.mxu0 %v1659
        %1783 = vmatpush.bf16.msra.mxu0 %v1657
        %1784 = vmatpush.bf16.msra.mxu0 %v1655
        %1785 = vmatpush.bf16.msra.mxu0 %v1653
        %1786 = vmatpush.bf16.msra.mxu0 %v1651
        %1787 = vmatpush.bf16.msra.mxu0 %v1649
        %1788 = vmatpush.bf16.msra.mxu0 %v1647
        %1789 = vmatpush.bf16.msra.mxu0 %v1645
        %1790 = vmatmul.bf16.gmra.mxu0 %v1464
        %v1791 = vpop.f32.mrf.mxu0
        %v1792 = vadd.f32 %v1703, %v1791
        %v1793 = vpop.f32.mrf.mxu0
        %v1794 = vadd.f32 %v1705, %v1793
        %1795 = vmatmul.bf16.gmra.mxu0 %v1466
        %v1796 = vpop.f32.mrf.mxu0
        %v1797 = vadd.f32 %v1708, %v1796
        %v1798 = vpop.f32.mrf.mxu0
        %v1799 = vadd.f32 %v1710, %v1798
        %1800 = vmatmul.bf16.gmra.mxu0 %v1468
        %v1801 = vpop.f32.mrf.mxu0
        %v1802 = vadd.f32 %v1713, %v1801
        %v1803 = vpop.f32.mrf.mxu0
        %v1804 = vadd.f32 %v1715, %v1803
        %1805 = vmatmul.bf16.gmra.mxu0 %v1470
        %v1806 = vpop.f32.mrf.mxu0
        %v1807 = vadd.f32 %v1718, %v1806
        %v1808 = vpop.f32.mrf.mxu0
        %v1809 = vadd.f32 %v1720, %v1808
        %1810 = vmatmul.bf16.gmra.mxu0 %v1472
        %v1811 = vpop.f32.mrf.mxu0
        %v1812 = vadd.f32 %v1723, %v1811
        %v1813 = vpop.f32.mrf.mxu0
        %v1814 = vadd.f32 %v1725, %v1813
        %1815 = vmatmul.bf16.gmra.mxu0 %v1474
        %v1816 = vpop.f32.mrf.mxu0
        %v1817 = vadd.f32 %v1728, %v1816
        %v1818 = vpop.f32.mrf.mxu0
        %v1819 = vadd.f32 %v1730, %v1818
        %1820 = vmatmul.bf16.gmra.mxu0 %v1476
        %v1821 = vpop.f32.mrf.mxu0
        %v1822 = vadd.f32 %v1733, %v1821
        %v1823 = vpop.f32.mrf.mxu0
        %v1824 = vadd.f32 %v1735, %v1823
        %1825 = vmatmul.bf16.gmra.mxu0 %v1478
        %v1826 = vpop.f32.mrf.mxu0
        %v1827 = vadd.f32 %v1738, %v1826
        %v1828 = vpop.f32.mrf.mxu0
        %v1829 = vadd.f32 %v1740, %v1828
        %1830 = vmatmul.bf16.gmra.mxu0 %v1480
        %v1831 = vpop.f32.mrf.mxu0
        %v1832 = vadd.f32 %v1743, %v1831
        %v1833 = vpop.f32.mrf.mxu0
        %v1834 = vadd.f32 %v1745, %v1833
        %1835 = vmatmul.bf16.gmra.mxu0 %v1482
        %v1836 = vpop.f32.mrf.mxu0
        %v1837 = vadd.f32 %v1748, %v1836
        %v1838 = vpop.f32.mrf.mxu0
        %v1839 = vadd.f32 %v1750, %v1838
        %1840 = vmatmul.bf16.gmra.mxu0 %v1484
        %v1841 = vpop.f32.mrf.mxu0
        %v1842 = vadd.f32 %v1753, %v1841
        %v1843 = vpop.f32.mrf.mxu0
        %v1844 = vadd.f32 %v1755, %v1843
        %1845 = vmatmul.bf16.gmra.mxu0 %v1486
        %v1846 = vpop.f32.mrf.mxu0
        %v1847 = vadd.f32 %v1758, %v1846
        %v1848 = vpop.f32.mrf.mxu0
        %v1849 = vadd.f32 %v1760, %v1848
        %1850 = vmatmul.bf16.gmra.mxu0 %v1488
        %v1851 = vpop.f32.mrf.mxu0
        %v1852 = vadd.f32 %v1763, %v1851
        %v1853 = vpop.f32.mrf.mxu0
        %v1854 = vadd.f32 %v1765, %v1853
        %1855 = vmatmul.bf16.gmra.mxu0 %v1490
        %v1856 = vpop.f32.mrf.mxu0
        %v1857 = vadd.f32 %v1768, %v1856
        %v1858 = vpop.f32.mrf.mxu0
        %v1859 = vadd.f32 %v1770, %v1858
        %1860 = vmatmul.bf16.gmra.mxu0 %v1492
        %v1861 = vpop.f32.mrf.mxu0
        %v1862 = vadd.f32 %v1773, %v1861
        %v1863 = vpop.f32.mrf.mxu0
        %v1864 = vadd.f32 %v1775, %v1863
        %1865 = vmatmul.bf16.gmra.mxu0 %v1494
        %v1866 = vpop.f32.mrf.mxu0
        %v1867 = vadd.f32 %v1778, %v1866
        %v1868 = vpop.f32.mrf.mxu0
        %v1869 = vadd.f32 %v1780, %v1868
        %1870 = vdwg.mxu0
        %1871 = vmatpush.bf16.msra.mxu0 %v1644
        %1872 = vmatpush.bf16.msra.mxu0 %v1642
        %1873 = vmatpush.bf16.msra.mxu0 %v1640
        %1874 = vmatpush.bf16.msra.mxu0 %v1638
        %1875 = vmatpush.bf16.msra.mxu0 %v1636
        %1876 = vmatpush.bf16.msra.mxu0 %v1634
        %1877 = vmatpush.bf16.msra.mxu0 %v1632
        %1878 = vmatpush.bf16.msra.mxu0 %v1630
        %1879 = vmatmul.bf16.gmra.mxu0 %v1463
        %v1880 = vpop.f32.mrf.mxu0
        %v1881 = vadd.f32 %v1530, %v1880
        %v1882 = vpop.f32.mrf.mxu0
        %v1883 = vadd.f32 %v1530, %v1882
        %1884 = vmatmul.bf16.gmra.mxu0 %v1465
        %v1885 = vpop.f32.mrf.mxu0
        %v1886 = vadd.f32 %v1530, %v1885
        %v1887 = vpop.f32.mrf.mxu0
        %v1888 = vadd.f32 %v1530, %v1887
        %1889 = vmatmul.bf16.gmra.mxu0 %v1467
        %v1890 = vpop.f32.mrf.mxu0
        %v1891 = vadd.f32 %v1530, %v1890
        %v1892 = vpop.f32.mrf.mxu0
        %v1893 = vadd.f32 %v1530, %v1892
        %1894 = vmatmul.bf16.gmra.mxu0 %v1469
        %v1895 = vpop.f32.mrf.mxu0
        %v1896 = vadd.f32 %v1530, %v1895
        %v1897 = vpop.f32.mrf.mxu0
        %v1898 = vadd.f32 %v1530, %v1897
        %1899 = vmatmul.bf16.gmra.mxu0 %v1471
        %v1900 = vpop.f32.mrf.mxu0
        %v1901 = vadd.f32 %v1530, %v1900
        %v1902 = vpop.f32.mrf.mxu0
        %v1903 = vadd.f32 %v1530, %v1902
        %1904 = vmatmul.bf16.gmra.mxu0 %v1473
        %v1905 = vpop.f32.mrf.mxu0
        %v1906 = vadd.f32 %v1530, %v1905
        %v1907 = vpop.f32.mrf.mxu0
        %v1908 = vadd.f32 %v1530, %v1907
        %1909 = vmatmul.bf16.gmra.mxu0 %v1475
        %v1910 = vpop.f32.mrf.mxu0
        %v1911 = vadd.f32 %v1530, %v1910
        %v1912 = vpop.f32.mrf.mxu0
        %v1913 = vadd.f32 %v1530, %v1912
        %1914 = vmatmul.bf16.gmra.mxu0 %v1477
        %v1915 = vpop.f32.mrf.mxu0
        %v1916 = vadd.f32 %v1530, %v1915
        %v1917 = vpop.f32.mrf.mxu0
        %v1918 = vadd.f32 %v1530, %v1917
        %1919 = vmatmul.bf16.gmra.mxu0 %v1479
        %v1920 = vpop.f32.mrf.mxu0
        %v1921 = vadd.f32 %v1530, %v1920
        %v1922 = vpop.f32.mrf.mxu0
        %v1923 = vadd.f32 %v1530, %v1922
        %1924 = vmatmul.bf16.gmra.mxu0 %v1481
        %v1925 = vpop.f32.mrf.mxu0
        %v1926 = vadd.f32 %v1530, %v1925
        %v1927 = vpop.f32.mrf.mxu0
        %v1928 = vadd.f32 %v1530, %v1927
        %1929 = vmatmul.bf16.gmra.mxu0 %v1483
        %v1930 = vpop.f32.mrf.mxu0
        %v1931 = vadd.f32 %v1530, %v1930
        %v1932 = vpop.f32.mrf.mxu0
        %v1933 = vadd.f32 %v1530, %v1932
        %1934 = vmatmul.bf16.gmra.mxu0 %v1485
        %v1935 = vpop.f32.mrf.mxu0
        %v1936 = vadd.f32 %v1530, %v1935
        %v1937 = vpop.f32.mrf.mxu0
        %v1938 = vadd.f32 %v1530, %v1937
        %1939 = vmatmul.bf16.gmra.mxu0 %v1487
        %v1940 = vpop.f32.mrf.mxu0
        %v1941 = vadd.f32 %v1530, %v1940
        %v1942 = vpop.f32.mrf.mxu0
        %v1943 = vadd.f32 %v1530, %v1942
        %1944 = vmatmul.bf16.gmra.mxu0 %v1489
        %v1945 = vpop.f32.mrf.mxu0
        %v1946 = vadd.f32 %v1530, %v1945
        %v1947 = vpop.f32.mrf.mxu0
        %v1948 = vadd.f32 %v1530, %v1947
        %1949 = vmatmul.bf16.gmra.mxu0 %v1491
        %v1950 = vpop.f32.mrf.mxu0
        %v1951 = vadd.f32 %v1530, %v1950
        %v1952 = vpop.f32.mrf.mxu0
        %v1953 = vadd.f32 %v1530, %v1952
        %1954 = vmatmul.bf16.gmra.mxu0 %v1493
        %v1955 = vpop.f32.mrf.mxu0
        %v1956 = vadd.f32 %v1530, %v1955
        %v1957 = vpop.f32.mrf.mxu0
        %v1958 = vadd.f32 %v1530, %v1957
        %1959 = vdwg.mxu0
        %1960 = vmatpush.bf16.msra.mxu0 %v1660
        %1961 = vmatpush.bf16.msra.mxu0 %v1658
        %1962 = vmatpush.bf16.msra.mxu0 %v1656
        %1963 = vmatpush.bf16.msra.mxu0 %v1654
        %1964 = vmatpush.bf16.msra.mxu0 %v1652
        %1965 = vmatpush.bf16.msra.mxu0 %v1650
        %1966 = vmatpush.bf16.msra.mxu0 %v1648
        %1967 = vmatpush.bf16.msra.mxu0 %v1646
        %1968 = vmatmul.bf16.gmra.mxu0 %v1464
        %v1969 = vpop.f32.mrf.mxu0
        %v1970 = vadd.f32 %v1881, %v1969
        %v1971 = vpop.f32.mrf.mxu0
        %v1972 = vadd.f32 %v1883, %v1971
        %1973 = vmatmul.bf16.gmra.mxu0 %v1466
        %v1974 = vpop.f32.mrf.mxu0
        %v1975 = vadd.f32 %v1886, %v1974
        %v1976 = vpop.f32.mrf.mxu0
        %v1977 = vadd.f32 %v1888, %v1976
        %1978 = vmatmul.bf16.gmra.mxu0 %v1468
        %v1979 = vpop.f32.mrf.mxu0
        %v1980 = vadd.f32 %v1891, %v1979
        %v1981 = vpop.f32.mrf.mxu0
        %v1982 = vadd.f32 %v1893, %v1981
        %1983 = vmatmul.bf16.gmra.mxu0 %v1470
        %v1984 = vpop.f32.mrf.mxu0
        %v1985 = vadd.f32 %v1896, %v1984
        %v1986 = vpop.f32.mrf.mxu0
        %v1987 = vadd.f32 %v1898, %v1986
        %1988 = vmatmul.bf16.gmra.mxu0 %v1472
        %v1989 = vpop.f32.mrf.mxu0
        %v1990 = vadd.f32 %v1901, %v1989
        %v1991 = vpop.f32.mrf.mxu0
        %v1992 = vadd.f32 %v1903, %v1991
        %1993 = vmatmul.bf16.gmra.mxu0 %v1474
        %v1994 = vpop.f32.mrf.mxu0
        %v1995 = vadd.f32 %v1906, %v1994
        %v1996 = vpop.f32.mrf.mxu0
        %v1997 = vadd.f32 %v1908, %v1996
        %1998 = vmatmul.bf16.gmra.mxu0 %v1476
        %v1999 = vpop.f32.mrf.mxu0
        %v2000 = vadd.f32 %v1911, %v1999
        %v2001 = vpop.f32.mrf.mxu0
        %v2002 = vadd.f32 %v1913, %v2001
        %2003 = vmatmul.bf16.gmra.mxu0 %v1478
        %v2004 = vpop.f32.mrf.mxu0
        %v2005 = vadd.f32 %v1916, %v2004
        %v2006 = vpop.f32.mrf.mxu0
        %v2007 = vadd.f32 %v1918, %v2006
        %2008 = vmatmul.bf16.gmra.mxu0 %v1480
        %v2009 = vpop.f32.mrf.mxu0
        %v2010 = vadd.f32 %v1921, %v2009
        %v2011 = vpop.f32.mrf.mxu0
        %v2012 = vadd.f32 %v1923, %v2011
        %2013 = vmatmul.bf16.gmra.mxu0 %v1482
        %v2014 = vpop.f32.mrf.mxu0
        %v2015 = vadd.f32 %v1926, %v2014
        %v2016 = vpop.f32.mrf.mxu0
        %v2017 = vadd.f32 %v1928, %v2016
        %2018 = vmatmul.bf16.gmra.mxu0 %v1484
        %v2019 = vpop.f32.mrf.mxu0
        %v2020 = vadd.f32 %v1931, %v2019
        %v2021 = vpop.f32.mrf.mxu0
        %v2022 = vadd.f32 %v1933, %v2021
        %2023 = vmatmul.bf16.gmra.mxu0 %v1486
        %v2024 = vpop.f32.mrf.mxu0
        %v2025 = vadd.f32 %v1936, %v2024
        %v2026 = vpop.f32.mrf.mxu0
        %v2027 = vadd.f32 %v1938, %v2026
        %2028 = vmatmul.bf16.gmra.mxu0 %v1488
        %v2029 = vpop.f32.mrf.mxu0
        %v2030 = vadd.f32 %v1941, %v2029
        %v2031 = vpop.f32.mrf.mxu0
        %v2032 = vadd.f32 %v1943, %v2031
        %2033 = vmatmul.bf16.gmra.mxu0 %v1490
        %v2034 = vpop.f32.mrf.mxu0
        %v2035 = vadd.f32 %v1946, %v2034
        %v2036 = vpop.f32.mrf.mxu0
        %v2037 = vadd.f32 %v1948, %v2036
        %2038 = vmatmul.bf16.gmra.mxu0 %v1492
        %v2039 = vpop.f32.mrf.mxu0
        %v2040 = vadd.f32 %v1951, %v2039
        %v2041 = vpop.f32.mrf.mxu0
        %v2042 = vadd.f32 %v1953, %v2041
        %2043 = vmatmul.bf16.gmra.mxu0 %v1494
        %v2044 = vpop.f32.mrf.mxu0
        %v2045 = vadd.f32 %v1956, %v2044
        %v2046 = vpop.f32.mrf.mxu0
        %v2047 = vadd.f32 %v1958, %v2046
        %2048 = vdwg.mxu0
        %v2049 = vmul.f32 %v1792, 0.01
        %v2050 = vmul.f32 %v1970, 0.01
        %v2051 = vmul.f32 %v1794, 0.01
        %v2052 = vmul.f32 %v1972, 0.01
        %v2053 = vmul.f32 %v1797, 0.01
        %v2054 = vmul.f32 %v1975, 0.01
        %v2055 = vmul.f32 %v1799, 0.01
        %v2056 = vmul.f32 %v1977, 0.01
        %v2057 = vmul.f32 %v1802, 0.01
        %v2058 = vmul.f32 %v1980, 0.01
        %v2059 = vmul.f32 %v1804, 0.01
        %v2060 = vmul.f32 %v1982, 0.01
        %v2061 = vmul.f32 %v1807, 0.01
        %v2062 = vmul.f32 %v1985, 0.01
        %v2063 = vmul.f32 %v1809, 0.01
        %v2064 = vmul.f32 %v1987, 0.01
        %v2065 = vmul.f32 %v1812, 0.01
        %v2066 = vmul.f32 %v1990, 0.01
        %v2067 = vmul.f32 %v1814, 0.01
        %v2068 = vmul.f32 %v1992, 0.01
        %v2069 = vmul.f32 %v1817, 0.01
        %v2070 = vmul.f32 %v1995, 0.01
        %v2071 = vmul.f32 %v1819, 0.01
        %v2072 = vmul.f32 %v1997, 0.01
        %v2073 = vmul.f32 %v1822, 0.01
        %v2074 = vmul.f32 %v2000, 0.01
        %v2075 = vmul.f32 %v1824, 0.01
        %v2076 = vmul.f32 %v2002, 0.01
        %v2077 = vmul.f32 %v1827, 0.01
        %v2078 = vmul.f32 %v2005, 0.01
        %v2079 = vmul.f32 %v1829, 0.01
        %v2080 = vmul.f32 %v2007, 0.01
        %v2081 = vmul.f32 %v1832, 0.01
        %v2082 = vmul.f32 %v2010, 0.01
        %v2083 = vmul.f32 %v1834, 0.01
        %v2084 = vmul.f32 %v2012, 0.01
        %v2085 = vmul.f32 %v1837, 0.01
        %v2086 = vmul.f32 %v2015, 0.01
        %v2087 = vmul.f32 %v1839, 0.01
        %v2088 = vmul.f32 %v2017, 0.01
        %v2089 = vmul.f32 %v1842, 0.01
        %v2090 = vmul.f32 %v2020, 0.01
        %v2091 = vmul.f32 %v1844, 0.01
        %v2092 = vmul.f32 %v2022, 0.01
        %v2093 = vmul.f32 %v1847, 0.01
        %v2094 = vmul.f32 %v2025, 0.01
        %v2095 = vmul.f32 %v1849, 0.01
        %v2096 = vmul.f32 %v2027, 0.01
        %v2097 = vmul.f32 %v1852, 0.01
        %v2098 = vmul.f32 %v2030, 0.01
        %v2099 = vmul.f32 %v1854, 0.01
        %v2100 = vmul.f32 %v2032, 0.01
        %v2101 = vmul.f32 %v1857, 0.01
        %v2102 = vmul.f32 %v2035, 0.01
        %v2103 = vmul.f32 %v1859, 0.01
        %v2104 = vmul.f32 %v2037, 0.01
        %v2105 = vmul.f32 %v1862, 0.01
        %v2106 = vmul.f32 %v2040, 0.01
        %v2107 = vmul.f32 %v1864, 0.01
        %v2108 = vmul.f32 %v2042, 0.01
        %v2109 = vmul.f32 %v1867, 0.01
        %v2110 = vmul.f32 %v2045, 0.01
        %v2111 = vmul.f32 %v1869, 0.01
        %v2112 = vmul.f32 %v2047, 0.01
        %v2113 = vmax.f32 %v1792, %v2049
        %v2114 = vmax.f32 %v1970, %v2050
        %v2115 = vmax.f32 %v1794, %v2051
        %v2116 = vmax.f32 %v1972, %v2052
        %v2117 = vmax.f32 %v1797, %v2053
        %v2118 = vmax.f32 %v1975, %v2054
        %v2119 = vmax.f32 %v1799, %v2055
        %v2120 = vmax.f32 %v1977, %v2056
        %v2121 = vmax.f32 %v1802, %v2057
        %v2122 = vmax.f32 %v1980, %v2058
        %v2123 = vmax.f32 %v1804, %v2059
        %v2124 = vmax.f32 %v1982, %v2060
        %v2125 = vmax.f32 %v1807, %v2061
        %v2126 = vmax.f32 %v1985, %v2062
        %v2127 = vmax.f32 %v1809, %v2063
        %v2128 = vmax.f32 %v1987, %v2064
        %v2129 = vmax.f32 %v1812, %v2065
        %v2130 = vmax.f32 %v1990, %v2066
        %v2131 = vmax.f32 %v1814, %v2067
        %v2132 = vmax.f32 %v1992, %v2068
        %v2133 = vmax.f32 %v1817, %v2069
        %v2134 = vmax.f32 %v1995, %v2070
        %v2135 = vmax.f32 %v1819, %v2071
        %v2136 = vmax.f32 %v1997, %v2072
        %v2137 = vmax.f32 %v1822, %v2073
        %v2138 = vmax.f32 %v2000, %v2074
        %v2139 = vmax.f32 %v1824, %v2075
        %v2140 = vmax.f32 %v2002, %v2076
        %v2141 = vmax.f32 %v1827, %v2077
        %v2142 = vmax.f32 %v2005, %v2078
        %v2143 = vmax.f32 %v1829, %v2079
        %v2144 = vmax.f32 %v2007, %v2080
        %v2145 = vmax.f32 %v1832, %v2081
        %v2146 = vmax.f32 %v2010, %v2082
        %v2147 = vmax.f32 %v1834, %v2083
        %v2148 = vmax.f32 %v2012, %v2084
        %v2149 = vmax.f32 %v1837, %v2085
        %v2150 = vmax.f32 %v2015, %v2086
        %v2151 = vmax.f32 %v1839, %v2087
        %v2152 = vmax.f32 %v2017, %v2088
        %v2153 = vmax.f32 %v1842, %v2089
        %v2154 = vmax.f32 %v2020, %v2090
        %v2155 = vmax.f32 %v1844, %v2091
        %v2156 = vmax.f32 %v2022, %v2092
        %v2157 = vmax.f32 %v1847, %v2093
        %v2158 = vmax.f32 %v2025, %v2094
        %v2159 = vmax.f32 %v1849, %v2095
        %v2160 = vmax.f32 %v2027, %v2096
        %v2161 = vmax.f32 %v1852, %v2097
        %v2162 = vmax.f32 %v2030, %v2098
        %v2163 = vmax.f32 %v1854, %v2099
        %v2164 = vmax.f32 %v2032, %v2100
        %v2165 = vmax.f32 %v1857, %v2101
        %v2166 = vmax.f32 %v2035, %v2102
        %v2167 = vmax.f32 %v1859, %v2103
        %v2168 = vmax.f32 %v2037, %v2104
        %v2169 = vmax.f32 %v1862, %v2105
        %v2170 = vmax.f32 %v2040, %v2106
        %v2171 = vmax.f32 %v1864, %v2107
        %v2172 = vmax.f32 %v2042, %v2108
        %v2173 = vmax.f32 %v1867, %v2109
        %v2174 = vmax.f32 %v2045, %v2110
        %v2175 = vmax.f32 %v1869, %v2111
        %v2176 = vmax.f32 %v2047, %v2112
        %v2177 = vpack.c.bf16 %v2115, %v2113
        %v2178 = vpack.c.bf16 %v2116, %v2114
        %v2179 = vpack.c.bf16 %v2119, %v2117
        %v2180 = vpack.c.bf16 %v2120, %v2118
        %v2181 = vpack.c.bf16 %v2123, %v2121
        %v2182 = vpack.c.bf16 %v2124, %v2122
        %v2183 = vpack.c.bf16 %v2127, %v2125
        %v2184 = vpack.c.bf16 %v2128, %v2126
        %v2185 = vpack.c.bf16 %v2131, %v2129
        %v2186 = vpack.c.bf16 %v2132, %v2130
        %v2187 = vpack.c.bf16 %v2135, %v2133
        %v2188 = vpack.c.bf16 %v2136, %v2134
        %v2189 = vpack.c.bf16 %v2139, %v2137
        %v2190 = vpack.c.bf16 %v2140, %v2138
        %v2191 = vpack.c.bf16 %v2143, %v2141
        %v2192 = vpack.c.bf16 %v2144, %v2142
        %v2193 = vpack.c.bf16 %v2147, %v2145
        %v2194 = vpack.c.bf16 %v2148, %v2146
        %v2195 = vpack.c.bf16 %v2151, %v2149
        %v2196 = vpack.c.bf16 %v2152, %v2150
        %v2197 = vpack.c.bf16 %v2155, %v2153
        %v2198 = vpack.c.bf16 %v2156, %v2154
        %v2199 = vpack.c.bf16 %v2159, %v2157
        %v2200 = vpack.c.bf16 %v2160, %v2158
        %v2201 = vpack.c.bf16 %v2163, %v2161
        %v2202 = vpack.c.bf16 %v2164, %v2162
        %v2203 = vpack.c.bf16 %v2167, %v2165
        %v2204 = vpack.c.bf16 %v2168, %v2166
        %v2205 = vpack.c.bf16 %v2171, %v2169
        %v2206 = vpack.c.bf16 %v2172, %v2170
        %v2207 = vpack.c.bf16 %v2175, %v2173
        %v2208 = vpack.c.bf16 %v2176, %v2174
        %v2209 = vld [vmem:[#allocation8] sm:$0xff]
        %v2210 = vld [vmem:[#allocation8 + $0x8] sm:$0xff]
        %v2211 = vld [vmem:[#allocation8 + $0x10] sm:$0xff]
        %v2212 = vld [vmem:[#allocation8 + $0x18] sm:$0xff]
        %v2213 = vld [vmem:[#allocation8 + $0x20] sm:$0xff]
        %v2214 = vld [vmem:[#allocation8 + $0x28] sm:$0xff]
        %v2215 = vld [vmem:[#allocation8 + $0x30] sm:$0xff]
        %v2216 = vld [vmem:[#allocation8 + $0x38] sm:$0xff]
        %v2217 = vld [vmem:[#allocation8 + $0x40] sm:$0xff]
        %v2218 = vld [vmem:[#allocation8 + $0x48] sm:$0xff]
        %v2219 = vld [vmem:[#allocation8 + $0x50] sm:$0xff]
        %v2220 = vld [vmem:[#allocation8 + $0x58] sm:$0xff]
        %v2221 = vld [vmem:[#allocation8 + $0x60] sm:$0xff]
        %v2222 = vld [vmem:[#allocation8 + $0x68] sm:$0xff]
        %v2223 = vld [vmem:[#allocation8 + $0x70] sm:$0xff]
        %v2224 = vld [vmem:[#allocation8 + $0x78] sm:$0xff]
        %v2225 = vld [vmem:[#allocation8 + $0x80] sm:$0xff]
        %v2226 = vld [vmem:[#allocation8 + $0x88] sm:$0xff]
        %v2227 = vld [vmem:[#allocation8 + $0x90] sm:$0xff]
        %v2228 = vld [vmem:[#allocation8 + $0x98] sm:$0xff]
        %v2229 = vld [vmem:[#allocation8 + $0xa0] sm:$0xff]
        %v2230 = vld [vmem:[#allocation8 + $0xa8] sm:$0xff]
        %v2231 = vld [vmem:[#allocation8 + $0xb0] sm:$0xff]
        %v2232 = vld [vmem:[#allocation8 + $0xb8] sm:$0xff]
        %v2233 = vld [vmem:[#allocation8 + $0xc0] sm:$0xff]
        %v2234 = vld [vmem:[#allocation8 + $0xc8] sm:$0xff]
        %v2235 = vld [vmem:[#allocation8 + $0xd0] sm:$0xff]
        %v2236 = vld [vmem:[#allocation8 + $0xd8] sm:$0xff]
        %v2237 = vld [vmem:[#allocation8 + $0xe0] sm:$0xff]
        %v2238 = vld [vmem:[#allocation8 + $0xe8] sm:$0xff]
        %v2239 = vld [vmem:[#allocation8 + $0xf0] sm:$0xff]
        %v2240 = vld [vmem:[#allocation8 + $0xf8] sm:$0xff]
        %v2241 = vld [vmem:[%s6] sm:$0x3]
        %v2243 = vperm.slane %v2241, 0
        %v2244 = vperm.slane %v2241, 1
        %v2279 = vunpack.c.l.b16 %v2209
        %v2280 = vunpack.c.h.b16 %v2209
        %v2281 = vunpack.c.l.b16 %v2210
        %v2282 = vunpack.c.h.b16 %v2210
        %v2283 = vunpack.c.l.b16 %v2211
        %v2284 = vunpack.c.h.b16 %v2211
        %v2285 = vunpack.c.l.b16 %v2212
        %v2286 = vunpack.c.h.b16 %v2212
        %v2287 = vunpack.c.l.b16 %v2213
        %v2288 = vunpack.c.h.b16 %v2213
        %v2289 = vunpack.c.l.b16 %v2214
        %v2290 = vunpack.c.h.b16 %v2214
        %v2291 = vunpack.c.l.b16 %v2215
        %v2292 = vunpack.c.h.b16 %v2215
        %v2293 = vunpack.c.l.b16 %v2216
        %v2294 = vunpack.c.h.b16 %v2216
        %v2295 = vunpack.c.l.b16 %v2217
        %v2296 = vunpack.c.h.b16 %v2217
        %v2297 = vunpack.c.l.b16 %v2218
        %v2298 = vunpack.c.h.b16 %v2218
        %v2299 = vunpack.c.l.b16 %v2219
        %v2300 = vunpack.c.h.b16 %v2219
        %v2301 = vunpack.c.l.b16 %v2220
        %v2302 = vunpack.c.h.b16 %v2220
        %v2303 = vunpack.c.l.b16 %v2221
        %v2304 = vunpack.c.h.b16 %v2221
        %v2305 = vunpack.c.l.b16 %v2222
        %v2306 = vunpack.c.h.b16 %v2222
        %v2307 = vunpack.c.l.b16 %v2223
        %v2308 = vunpack.c.h.b16 %v2223
        %v2309 = vunpack.c.l.b16 %v2224
        %v2310 = vunpack.c.h.b16 %v2224
        %v2311 = vunpack.c.l.b16 %v2225
        %v2312 = vunpack.c.h.b16 %v2225
        %v2313 = vunpack.c.l.b16 %v2226
        %v2314 = vunpack.c.h.b16 %v2226
        %v2315 = vunpack.c.l.b16 %v2227
        %v2316 = vunpack.c.h.b16 %v2227
        %v2317 = vunpack.c.l.b16 %v2228
        %v2318 = vunpack.c.h.b16 %v2228
        %v2319 = vunpack.c.l.b16 %v2229
        %v2320 = vunpack.c.h.b16 %v2229
        %v2321 = vunpack.c.l.b16 %v2230
        %v2322 = vunpack.c.h.b16 %v2230
        %v2323 = vunpack.c.l.b16 %v2231
        %v2324 = vunpack.c.h.b16 %v2231
        %v2325 = vunpack.c.l.b16 %v2232
        %v2326 = vunpack.c.h.b16 %v2232
        %v2327 = vunpack.c.l.b16 %v2233
        %v2328 = vunpack.c.h.b16 %v2233
        %v2329 = vunpack.c.l.b16 %v2234
        %v2330 = vunpack.c.h.b16 %v2234
        %v2331 = vunpack.c.l.b16 %v2235
        %v2332 = vunpack.c.h.b16 %v2235
        %v2333 = vunpack.c.l.b16 %v2236
        %v2334 = vunpack.c.h.b16 %v2236
        %v2335 = vunpack.c.l.b16 %v2237
        %v2336 = vunpack.c.h.b16 %v2237
        %v2337 = vunpack.c.l.b16 %v2238
        %v2338 = vunpack.c.h.b16 %v2238
        %v2339 = vunpack.c.l.b16 %v2239
        %v2340 = vunpack.c.h.b16 %v2239
        %v2341 = vunpack.c.l.b16 %v2240
        %v2342 = vunpack.c.h.b16 %v2240
        %v2343 = vpack.c.b16 %v2281, %v2279
        %v2344 = vpack.c.b16 %v2282, %v2280
        %v2345 = vpack.c.b16 %v2285, %v2283
        %v2346 = vpack.c.b16 %v2286, %v2284
        %v2347 = vpack.c.b16 %v2289, %v2287
        %v2348 = vpack.c.b16 %v2290, %v2288
        %v2349 = vpack.c.b16 %v2293, %v2291
        %v2350 = vpack.c.b16 %v2294, %v2292
        %v2351 = vpack.c.b16 %v2297, %v2295
        %v2352 = vpack.c.b16 %v2298, %v2296
        %v2353 = vpack.c.b16 %v2301, %v2299
        %v2354 = vpack.c.b16 %v2302, %v2300
        %v2355 = vpack.c.b16 %v2305, %v2303
        %v2356 = vpack.c.b16 %v2306, %v2304
        %v2357 = vpack.c.b16 %v2309, %v2307
        %v2358 = vpack.c.b16 %v2310, %v2308
        %v2359 = vpack.c.b16 %v2313, %v2311
        %v2360 = vpack.c.b16 %v2314, %v2312
        %v2361 = vpack.c.b16 %v2317, %v2315
        %v2362 = vpack.c.b16 %v2318, %v2316
        %v2363 = vpack.c.b16 %v2321, %v2319
        %v2364 = vpack.c.b16 %v2322, %v2320
        %v2365 = vpack.c.b16 %v2325, %v2323
        %v2366 = vpack.c.b16 %v2326, %v2324
        %v2367 = vpack.c.b16 %v2329, %v2327
        %v2368 = vpack.c.b16 %v2330, %v2328
        %v2369 = vpack.c.b16 %v2333, %v2331
        %v2370 = vpack.c.b16 %v2334, %v2332
        %v2371 = vpack.c.b16 %v2337, %v2335
        %v2372 = vpack.c.b16 %v2338, %v2336
        %v2373 = vpack.c.b16 %v2341, %v2339
        %v2374 = vpack.c.b16 %v2342, %v2340
        %2407 = vmatpush.bf16.msra.mxu0 %v2357
        %2408 = vmatpush.bf16.msra.mxu0 %v2355
        %2409 = vmatpush.bf16.msra.mxu0 %v2353
        %2410 = vmatpush.bf16.msra.mxu0 %v2351
        %2411 = vmatpush.bf16.msra.mxu0 %v2349
        %2412 = vmatpush.bf16.msra.mxu0 %v2347
        %2413 = vmatpush.bf16.msra.mxu0 %v2345
        %2414 = vmatpush.bf16.msra.mxu0 %v2343
        %2415 = vmatmul.bf16.gmra.mxu0 %v2177
        %v2416 = vpop.f32.mrf.mxu0
        %v2417 = vadd.f32 %v2243, %v2416
        %v2418 = vpop.f32.mrf.mxu0
        %v2419 = vadd.f32 %v2243, %v2418
        %2420 = vmatmul.bf16.gmra.mxu0 %v2179
        %v2421 = vpop.f32.mrf.mxu0
        %v2422 = vadd.f32 %v2243, %v2421
        %v2423 = vpop.f32.mrf.mxu0
        %v2424 = vadd.f32 %v2243, %v2423
        %2425 = vmatmul.bf16.gmra.mxu0 %v2181
        %v2426 = vpop.f32.mrf.mxu0
        %v2427 = vadd.f32 %v2243, %v2426
        %v2428 = vpop.f32.mrf.mxu0
        %v2429 = vadd.f32 %v2243, %v2428
        %2430 = vmatmul.bf16.gmra.mxu0 %v2183
        %v2431 = vpop.f32.mrf.mxu0
        %v2432 = vadd.f32 %v2243, %v2431
        %v2433 = vpop.f32.mrf.mxu0
        %v2434 = vadd.f32 %v2243, %v2433
        %2435 = vmatmul.bf16.gmra.mxu0 %v2185
        %v2436 = vpop.f32.mrf.mxu0
        %v2437 = vadd.f32 %v2243, %v2436
        %v2438 = vpop.f32.mrf.mxu0
        %v2439 = vadd.f32 %v2243, %v2438
        %2440 = vmatmul.bf16.gmra.mxu0 %v2187
        %v2441 = vpop.f32.mrf.mxu0
        %v2442 = vadd.f32 %v2243, %v2441
        %v2443 = vpop.f32.mrf.mxu0
        %v2444 = vadd.f32 %v2243, %v2443
        %2445 = vmatmul.bf16.gmra.mxu0 %v2189
        %v2446 = vpop.f32.mrf.mxu0
        %v2447 = vadd.f32 %v2243, %v2446
        %v2448 = vpop.f32.mrf.mxu0
        %v2449 = vadd.f32 %v2243, %v2448
        %2450 = vmatmul.bf16.gmra.mxu0 %v2191
        %v2451 = vpop.f32.mrf.mxu0
        %v2452 = vadd.f32 %v2243, %v2451
        %v2453 = vpop.f32.mrf.mxu0
        %v2454 = vadd.f32 %v2243, %v2453
        %2455 = vmatmul.bf16.gmra.mxu0 %v2193
        %v2456 = vpop.f32.mrf.mxu0
        %v2457 = vadd.f32 %v2243, %v2456
        %v2458 = vpop.f32.mrf.mxu0
        %v2459 = vadd.f32 %v2243, %v2458
        %2460 = vmatmul.bf16.gmra.mxu0 %v2195
        %v2461 = vpop.f32.mrf.mxu0
        %v2462 = vadd.f32 %v2243, %v2461
        %v2463 = vpop.f32.mrf.mxu0
        %v2464 = vadd.f32 %v2243, %v2463
        %2465 = vmatmul.bf16.gmra.mxu0 %v2197
        %v2466 = vpop.f32.mrf.mxu0
        %v2467 = vadd.f32 %v2243, %v2466
        %v2468 = vpop.f32.mrf.mxu0
        %v2469 = vadd.f32 %v2243, %v2468
        %2470 = vmatmul.bf16.gmra.mxu0 %v2199
        %v2471 = vpop.f32.mrf.mxu0
        %v2472 = vadd.f32 %v2243, %v2471
        %v2473 = vpop.f32.mrf.mxu0
        %v2474 = vadd.f32 %v2243, %v2473
        %2475 = vmatmul.bf16.gmra.mxu0 %v2201
        %v2476 = vpop.f32.mrf.mxu0
        %v2477 = vadd.f32 %v2243, %v2476
        %v2478 = vpop.f32.mrf.mxu0
        %v2479 = vadd.f32 %v2243, %v2478
        %2480 = vmatmul.bf16.gmra.mxu0 %v2203
        %v2481 = vpop.f32.mrf.mxu0
        %v2482 = vadd.f32 %v2243, %v2481
        %v2483 = vpop.f32.mrf.mxu0
        %v2484 = vadd.f32 %v2243, %v2483
        %2485 = vmatmul.bf16.gmra.mxu0 %v2205
        %v2486 = vpop.f32.mrf.mxu0
        %v2487 = vadd.f32 %v2243, %v2486
        %v2488 = vpop.f32.mrf.mxu0
        %v2489 = vadd.f32 %v2243, %v2488
        %2490 = vmatmul.bf16.gmra.mxu0 %v2207
        %v2491 = vpop.f32.mrf.mxu0
        %v2492 = vadd.f32 %v2243, %v2491
        %v2493 = vpop.f32.mrf.mxu0
        %v2494 = vadd.f32 %v2243, %v2493
        %2495 = vdwg.mxu0
        %2496 = vmatpush.bf16.msra.mxu0 %v2373
        %2497 = vmatpush.bf16.msra.mxu0 %v2371
        %2498 = vmatpush.bf16.msra.mxu0 %v2369
        %2499 = vmatpush.bf16.msra.mxu0 %v2367
        %2500 = vmatpush.bf16.msra.mxu0 %v2365
        %2501 = vmatpush.bf16.msra.mxu0 %v2363
        %2502 = vmatpush.bf16.msra.mxu0 %v2361
        %2503 = vmatpush.bf16.msra.mxu0 %v2359
        %2504 = vmatmul.bf16.gmra.mxu0 %v2178
        %v2505 = vpop.f32.mrf.mxu0
        %v2506 = vadd.f32 %v2417, %v2505
        %v2507 = vpop.f32.mrf.mxu0
        %v2508 = vadd.f32 %v2419, %v2507
        %2509 = vmatmul.bf16.gmra.mxu0 %v2180
        %v2510 = vpop.f32.mrf.mxu0
        %v2511 = vadd.f32 %v2422, %v2510
        %v2512 = vpop.f32.mrf.mxu0
        %v2513 = vadd.f32 %v2424, %v2512
        %2514 = vmatmul.bf16.gmra.mxu0 %v2182
        %v2515 = vpop.f32.mrf.mxu0
        %v2516 = vadd.f32 %v2427, %v2515
        %v2517 = vpop.f32.mrf.mxu0
        %v2518 = vadd.f32 %v2429, %v2517
        %2519 = vmatmul.bf16.gmra.mxu0 %v2184
        %v2520 = vpop.f32.mrf.mxu0
        %v2521 = vadd.f32 %v2432, %v2520
        %v2522 = vpop.f32.mrf.mxu0
        %v2523 = vadd.f32 %v2434, %v2522
        %2524 = vmatmul.bf16.gmra.mxu0 %v2186
        %v2525 = vpop.f32.mrf.mxu0
        %v2526 = vadd.f32 %v2437, %v2525
        %v2527 = vpop.f32.mrf.mxu0
        %v2528 = vadd.f32 %v2439, %v2527
        %2529 = vmatmul.bf16.gmra.mxu0 %v2188
        %v2530 = vpop.f32.mrf.mxu0
        %v2531 = vadd.f32 %v2442, %v2530
        %v2532 = vpop.f32.mrf.mxu0
        %v2533 = vadd.f32 %v2444, %v2532
        %2534 = vmatmul.bf16.gmra.mxu0 %v2190
        %v2535 = vpop.f32.mrf.mxu0
        %v2536 = vadd.f32 %v2447, %v2535
        %v2537 = vpop.f32.mrf.mxu0
        %v2538 = vadd.f32 %v2449, %v2537
        %2539 = vmatmul.bf16.gmra.mxu0 %v2192
        %v2540 = vpop.f32.mrf.mxu0
        %v2541 = vadd.f32 %v2452, %v2540
        %v2542 = vpop.f32.mrf.mxu0
        %v2543 = vadd.f32 %v2454, %v2542
        %2544 = vmatmul.bf16.gmra.mxu0 %v2194
        %v2545 = vpop.f32.mrf.mxu0
        %v2546 = vadd.f32 %v2457, %v2545
        %v2547 = vpop.f32.mrf.mxu0
        %v2548 = vadd.f32 %v2459, %v2547
        %2549 = vmatmul.bf16.gmra.mxu0 %v2196
        %v2550 = vpop.f32.mrf.mxu0
        %v2551 = vadd.f32 %v2462, %v2550
        %v2552 = vpop.f32.mrf.mxu0
        %v2553 = vadd.f32 %v2464, %v2552
        %2554 = vmatmul.bf16.gmra.mxu0 %v2198
        %v2555 = vpop.f32.mrf.mxu0
        %v2556 = vadd.f32 %v2467, %v2555
        %v2557 = vpop.f32.mrf.mxu0
        %v2558 = vadd.f32 %v2469, %v2557
        %2559 = vmatmul.bf16.gmra.mxu0 %v2200
        %v2560 = vpop.f32.mrf.mxu0
        %v2561 = vadd.f32 %v2472, %v2560
        %v2562 = vpop.f32.mrf.mxu0
        %v2563 = vadd.f32 %v2474, %v2562
        %2564 = vmatmul.bf16.gmra.mxu0 %v2202
        %v2565 = vpop.f32.mrf.mxu0
        %v2566 = vadd.f32 %v2477, %v2565
        %v2567 = vpop.f32.mrf.mxu0
        %v2568 = vadd.f32 %v2479, %v2567
        %2569 = vmatmul.bf16.gmra.mxu0 %v2204
        %v2570 = vpop.f32.mrf.mxu0
        %v2571 = vadd.f32 %v2482, %v2570
        %v2572 = vpop.f32.mrf.mxu0
        %v2573 = vadd.f32 %v2484, %v2572
        %2574 = vmatmul.bf16.gmra.mxu0 %v2206
        %v2575 = vpop.f32.mrf.mxu0
        %v2576 = vadd.f32 %v2487, %v2575
        %v2577 = vpop.f32.mrf.mxu0
        %v2578 = vadd.f32 %v2489, %v2577
        %2579 = vmatmul.bf16.gmra.mxu0 %v2208
        %v2580 = vpop.f32.mrf.mxu0
        %v2581 = vadd.f32 %v2492, %v2580
        %v2582 = vpop.f32.mrf.mxu0
        %v2583 = vadd.f32 %v2494, %v2582
        %2584 = vdwg.mxu0
        %2585 = vmatpush.bf16.msra.mxu0 %v2358
        %2586 = vmatpush.bf16.msra.mxu0 %v2356
        %2587 = vmatpush.bf16.msra.mxu0 %v2354
        %2588 = vmatpush.bf16.msra.mxu0 %v2352
        %2589 = vmatpush.bf16.msra.mxu0 %v2350
        %2590 = vmatpush.bf16.msra.mxu0 %v2348
        %2591 = vmatpush.bf16.msra.mxu0 %v2346
        %2592 = vmatpush.bf16.msra.mxu0 %v2344
        %2593 = vmatmul.bf16.gmra.mxu0 %v2177
        %v2594 = vpop.f32.mrf.mxu0
        %v2595 = vadd.f32 %v2244, %v2594
        %v2596 = vpop.f32.mrf.mxu0
        %v2597 = vadd.f32 %v2244, %v2596
        %2598 = vmatmul.bf16.gmra.mxu0 %v2179
        %v2599 = vpop.f32.mrf.mxu0
        %v2600 = vadd.f32 %v2244, %v2599
        %v2601 = vpop.f32.mrf.mxu0
        %v2602 = vadd.f32 %v2244, %v2601
        %2603 = vmatmul.bf16.gmra.mxu0 %v2181
        %v2604 = vpop.f32.mrf.mxu0
        %v2605 = vadd.f32 %v2244, %v2604
        %v2606 = vpop.f32.mrf.mxu0
        %v2607 = vadd.f32 %v2244, %v2606
        %2608 = vmatmul.bf16.gmra.mxu0 %v2183
        %v2609 = vpop.f32.mrf.mxu0
        %v2610 = vadd.f32 %v2244, %v2609
        %v2611 = vpop.f32.mrf.mxu0
        %v2612 = vadd.f32 %v2244, %v2611
        %2613 = vmatmul.bf16.gmra.mxu0 %v2185
        %v2614 = vpop.f32.mrf.mxu0
        %v2615 = vadd.f32 %v2244, %v2614
        %v2616 = vpop.f32.mrf.mxu0
        %v2617 = vadd.f32 %v2244, %v2616
        %2618 = vmatmul.bf16.gmra.mxu0 %v2187
        %v2619 = vpop.f32.mrf.mxu0
        %v2620 = vadd.f32 %v2244, %v2619
        %v2621 = vpop.f32.mrf.mxu0
        %v2622 = vadd.f32 %v2244, %v2621
        %2623 = vmatmul.bf16.gmra.mxu0 %v2189
        %v2624 = vpop.f32.mrf.mxu0
        %v2625 = vadd.f32 %v2244, %v2624
        %v2626 = vpop.f32.mrf.mxu0
        %v2627 = vadd.f32 %v2244, %v2626
        %2628 = vmatmul.bf16.gmra.mxu0 %v2191
        %v2629 = vpop.f32.mrf.mxu0
        %v2630 = vadd.f32 %v2244, %v2629
        %v2631 = vpop.f32.mrf.mxu0
        %v2632 = vadd.f32 %v2244, %v2631
        %2633 = vmatmul.bf16.gmra.mxu0 %v2193
        %v2634 = vpop.f32.mrf.mxu0
        %v2635 = vadd.f32 %v2244, %v2634
        %v2636 = vpop.f32.mrf.mxu0
        %v2637 = vadd.f32 %v2244, %v2636
        %2638 = vmatmul.bf16.gmra.mxu0 %v2195
        %v2639 = vpop.f32.mrf.mxu0
        %v2640 = vadd.f32 %v2244, %v2639
        %v2641 = vpop.f32.mrf.mxu0
        %v2642 = vadd.f32 %v2244, %v2641
        %2643 = vmatmul.bf16.gmra.mxu0 %v2197
        %v2644 = vpop.f32.mrf.mxu0
        %v2645 = vadd.f32 %v2244, %v2644
        %v2646 = vpop.f32.mrf.mxu0
        %v2647 = vadd.f32 %v2244, %v2646
        %2648 = vmatmul.bf16.gmra.mxu0 %v2199
        %v2649 = vpop.f32.mrf.mxu0
        %v2650 = vadd.f32 %v2244, %v2649
        %v2651 = vpop.f32.mrf.mxu0
        %v2652 = vadd.f32 %v2244, %v2651
        %2653 = vmatmul.bf16.gmra.mxu0 %v2201
        %v2654 = vpop.f32.mrf.mxu0
        %v2655 = vadd.f32 %v2244, %v2654
        %v2656 = vpop.f32.mrf.mxu0
        %v2657 = vadd.f32 %v2244, %v2656
        %2658 = vmatmul.bf16.gmra.mxu0 %v2203
        %v2659 = vpop.f32.mrf.mxu0
        %v2660 = vadd.f32 %v2244, %v2659
        %v2661 = vpop.f32.mrf.mxu0
        %v2662 = vadd.f32 %v2244, %v2661
        %2663 = vmatmul.bf16.gmra.mxu0 %v2205
        %v2664 = vpop.f32.mrf.mxu0
        %v2665 = vadd.f32 %v2244, %v2664
        %v2666 = vpop.f32.mrf.mxu0
        %v2667 = vadd.f32 %v2244, %v2666
        %2668 = vmatmul.bf16.gmra.mxu0 %v2207
        %v2669 = vpop.f32.mrf.mxu0
        %v2670 = vadd.f32 %v2244, %v2669
        %v2671 = vpop.f32.mrf.mxu0
        %v2672 = vadd.f32 %v2244, %v2671
        %2673 = vdwg.mxu0
        %2674 = vmatpush.bf16.msra.mxu0 %v2374
        %2675 = vmatpush.bf16.msra.mxu0 %v2372
        %2676 = vmatpush.bf16.msra.mxu0 %v2370
        %2677 = vmatpush.bf16.msra.mxu0 %v2368
        %2678 = vmatpush.bf16.msra.mxu0 %v2366
        %2679 = vmatpush.bf16.msra.mxu0 %v2364
        %2680 = vmatpush.bf16.msra.mxu0 %v2362
        %2681 = vmatpush.bf16.msra.mxu0 %v2360
        %2682 = vmatmul.bf16.gmra.mxu0 %v2178
        %v2683 = vpop.f32.mrf.mxu0
        %v2684 = vadd.f32 %v2595, %v2683
        %v2685 = vpop.f32.mrf.mxu0
        %v2686 = vadd.f32 %v2597, %v2685
        %2687 = vmatmul.bf16.gmra.mxu0 %v2180
        %v2688 = vpop.f32.mrf.mxu0
        %v2689 = vadd.f32 %v2600, %v2688
        %v2690 = vpop.f32.mrf.mxu0
        %v2691 = vadd.f32 %v2602, %v2690
        %2692 = vmatmul.bf16.gmra.mxu0 %v2182
        %v2693 = vpop.f32.mrf.mxu0
        %v2694 = vadd.f32 %v2605, %v2693
        %v2695 = vpop.f32.mrf.mxu0
        %v2696 = vadd.f32 %v2607, %v2695
        %2697 = vmatmul.bf16.gmra.mxu0 %v2184
        %v2698 = vpop.f32.mrf.mxu0
        %v2699 = vadd.f32 %v2610, %v2698
        %v2700 = vpop.f32.mrf.mxu0
        %v2701 = vadd.f32 %v2612, %v2700
        %2702 = vmatmul.bf16.gmra.mxu0 %v2186
        %v2703 = vpop.f32.mrf.mxu0
        %v2704 = vadd.f32 %v2615, %v2703
        %v2705 = vpop.f32.mrf.mxu0
        %v2706 = vadd.f32 %v2617, %v2705
        %2707 = vmatmul.bf16.gmra.mxu0 %v2188
        %v2708 = vpop.f32.mrf.mxu0
        %v2709 = vadd.f32 %v2620, %v2708
        %v2710 = vpop.f32.mrf.mxu0
        %v2711 = vadd.f32 %v2622, %v2710
        %2712 = vmatmul.bf16.gmra.mxu0 %v2190
        %v2713 = vpop.f32.mrf.mxu0
        %v2714 = vadd.f32 %v2625, %v2713
        %v2715 = vpop.f32.mrf.mxu0
        %v2716 = vadd.f32 %v2627, %v2715
        %2717 = vmatmul.bf16.gmra.mxu0 %v2192
        %v2718 = vpop.f32.mrf.mxu0
        %v2719 = vadd.f32 %v2630, %v2718
        %v2720 = vpop.f32.mrf.mxu0
        %v2721 = vadd.f32 %v2632, %v2720
        %2722 = vmatmul.bf16.gmra.mxu0 %v2194
        %v2723 = vpop.f32.mrf.mxu0
        %v2724 = vadd.f32 %v2635, %v2723
        %v2725 = vpop.f32.mrf.mxu0
        %v2726 = vadd.f32 %v2637, %v2725
        %2727 = vmatmul.bf16.gmra.mxu0 %v2196
        %v2728 = vpop.f32.mrf.mxu0
        %v2729 = vadd.f32 %v2640, %v2728
        %v2730 = vpop.f32.mrf.mxu0
        %v2731 = vadd.f32 %v2642, %v2730
        %2732 = vmatmul.bf16.gmra.mxu0 %v2198
        %v2733 = vpop.f32.mrf.mxu0
        %v2734 = vadd.f32 %v2645, %v2733
        %v2735 = vpop.f32.mrf.mxu0
        %v2736 = vadd.f32 %v2647, %v2735
        %2737 = vmatmul.bf16.gmra.mxu0 %v2200
        %v2738 = vpop.f32.mrf.mxu0
        %v2739 = vadd.f32 %v2650, %v2738
        %v2740 = vpop.f32.mrf.mxu0
        %v2741 = vadd.f32 %v2652, %v2740
        %2742 = vmatmul.bf16.gmra.mxu0 %v2202
        %v2743 = vpop.f32.mrf.mxu0
        %v2744 = vadd.f32 %v2655, %v2743
        %v2745 = vpop.f32.mrf.mxu0
        %v2746 = vadd.f32 %v2657, %v2745
        %2747 = vmatmul.bf16.gmra.mxu0 %v2204
        %v2748 = vpop.f32.mrf.mxu0
        %v2749 = vadd.f32 %v2660, %v2748
        %v2750 = vpop.f32.mrf.mxu0
        %v2751 = vadd.f32 %v2662, %v2750
        %2752 = vmatmul.bf16.gmra.mxu0 %v2206
        %v2753 = vpop.f32.mrf.mxu0
        %v2754 = vadd.f32 %v2665, %v2753
        %v2755 = vpop.f32.mrf.mxu0
        %v2756 = vadd.f32 %v2667, %v2755
        %2757 = vmatmul.bf16.gmra.mxu0 %v2208
        %v2758 = vpop.f32.mrf.mxu0
        %v2759 = vadd.f32 %v2670, %v2758
        %v2760 = vpop.f32.mrf.mxu0
        %v2761 = vadd.f32 %v2672, %v2760
        %2762 = vdwg.mxu0
        %v2763 = vmul.f32 %v2506, 0.01
        %v2764 = vmul.f32 %v2684, 0.01
        %v2765 = vmul.f32 %v2508, 0.01
        %v2766 = vmul.f32 %v2686, 0.01
        %v2767 = vmul.f32 %v2511, 0.01
        %v2768 = vmul.f32 %v2689, 0.01
        %v2769 = vmul.f32 %v2513, 0.01
        %v2770 = vmul.f32 %v2691, 0.01
        %v2771 = vmul.f32 %v2516, 0.01
        %v2772 = vmul.f32 %v2694, 0.01
        %v2773 = vmul.f32 %v2518, 0.01
        %v2774 = vmul.f32 %v2696, 0.01
        %v2775 = vmul.f32 %v2521, 0.01
        %v2776 = vmul.f32 %v2699, 0.01
        %v2777 = vmul.f32 %v2523, 0.01
        %v2778 = vmul.f32 %v2701, 0.01
        %v2779 = vmul.f32 %v2526, 0.01
        %v2780 = vmul.f32 %v2704, 0.01
        %v2781 = vmul.f32 %v2528, 0.01
        %v2782 = vmul.f32 %v2706, 0.01
        %v2783 = vmul.f32 %v2531, 0.01
        %v2784 = vmul.f32 %v2709, 0.01
        %v2785 = vmul.f32 %v2533, 0.01
        %v2786 = vmul.f32 %v2711, 0.01
        %v2787 = vmul.f32 %v2536, 0.01
        %v2788 = vmul.f32 %v2714, 0.01
        %v2789 = vmul.f32 %v2538, 0.01
        %v2790 = vmul.f32 %v2716, 0.01
        %v2791 = vmul.f32 %v2541, 0.01
        %v2792 = vmul.f32 %v2719, 0.01
        %v2793 = vmul.f32 %v2543, 0.01
        %v2794 = vmul.f32 %v2721, 0.01
        %v2795 = vmul.f32 %v2546, 0.01
        %v2796 = vmul.f32 %v2724, 0.01
        %v2797 = vmul.f32 %v2548, 0.01
        %v2798 = vmul.f32 %v2726, 0.01
        %v2799 = vmul.f32 %v2551, 0.01
        %v2800 = vmul.f32 %v2729, 0.01
        %v2801 = vmul.f32 %v2553, 0.01
        %v2802 = vmul.f32 %v2731, 0.01
        %v2803 = vmul.f32 %v2556, 0.01
        %v2804 = vmul.f32 %v2734, 0.01
        %v2805 = vmul.f32 %v2558, 0.01
        %v2806 = vmul.f32 %v2736, 0.01
        %v2807 = vmul.f32 %v2561, 0.01
        %v2808 = vmul.f32 %v2739, 0.01
        %v2809 = vmul.f32 %v2563, 0.01
        %v2810 = vmul.f32 %v2741, 0.01
        %v2811 = vmul.f32 %v2566, 0.01
        %v2812 = vmul.f32 %v2744, 0.01
        %v2813 = vmul.f32 %v2568, 0.01
        %v2814 = vmul.f32 %v2746, 0.01
        %v2815 = vmul.f32 %v2571, 0.01
        %v2816 = vmul.f32 %v2749, 0.01
        %v2817 = vmul.f32 %v2573, 0.01
        %v2818 = vmul.f32 %v2751, 0.01
        %v2819 = vmul.f32 %v2576, 0.01
        %v2820 = vmul.f32 %v2754, 0.01
        %v2821 = vmul.f32 %v2578, 0.01
        %v2822 = vmul.f32 %v2756, 0.01
        %v2823 = vmul.f32 %v2581, 0.01
        %v2824 = vmul.f32 %v2759, 0.01
        %v2825 = vmul.f32 %v2583, 0.01
        %v2826 = vmul.f32 %v2761, 0.01
        %v2827 = vmax.f32 %v2506, %v2763
        %v2828 = vmax.f32 %v2684, %v2764
        %v2829 = vmax.f32 %v2508, %v2765
        %v2830 = vmax.f32 %v2686, %v2766
        %v2831 = vmax.f32 %v2511, %v2767
        %v2832 = vmax.f32 %v2689, %v2768
        %v2833 = vmax.f32 %v2513, %v2769
        %v2834 = vmax.f32 %v2691, %v2770
        %v2835 = vmax.f32 %v2516, %v2771
        %v2836 = vmax.f32 %v2694, %v2772
        %v2837 = vmax.f32 %v2518, %v2773
        %v2838 = vmax.f32 %v2696, %v2774
        %v2839 = vmax.f32 %v2521, %v2775
        %v2840 = vmax.f32 %v2699, %v2776
        %v2841 = vmax.f32 %v2523, %v2777
        %v2842 = vmax.f32 %v2701, %v2778
        %v2843 = vmax.f32 %v2526, %v2779
        %v2844 = vmax.f32 %v2704, %v2780
        %v2845 = vmax.f32 %v2528, %v2781
        %v2846 = vmax.f32 %v2706, %v2782
        %v2847 = vmax.f32 %v2531, %v2783
        %v2848 = vmax.f32 %v2709, %v2784
        %v2849 = vmax.f32 %v2533, %v2785
        %v2850 = vmax.f32 %v2711, %v2786
        %v2851 = vmax.f32 %v2536, %v2787
        %v2852 = vmax.f32 %v2714, %v2788
        %v2853 = vmax.f32 %v2538, %v2789
        %v2854 = vmax.f32 %v2716, %v2790
        %v2855 = vmax.f32 %v2541, %v2791
        %v2856 = vmax.f32 %v2719, %v2792
        %v2857 = vmax.f32 %v2543, %v2793
        %v2858 = vmax.f32 %v2721, %v2794
        %v2859 = vmax.f32 %v2546, %v2795
        %v2860 = vmax.f32 %v2724, %v2796
        %v2861 = vmax.f32 %v2548, %v2797
        %v2862 = vmax.f32 %v2726, %v2798
        %v2863 = vmax.f32 %v2551, %v2799
        %v2864 = vmax.f32 %v2729, %v2800
        %v2865 = vmax.f32 %v2553, %v2801
        %v2866 = vmax.f32 %v2731, %v2802
        %v2867 = vmax.f32 %v2556, %v2803
        %v2868 = vmax.f32 %v2734, %v2804
        %v2869 = vmax.f32 %v2558, %v2805
        %v2870 = vmax.f32 %v2736, %v2806
        %v2871 = vmax.f32 %v2561, %v2807
        %v2872 = vmax.f32 %v2739, %v2808
        %v2873 = vmax.f32 %v2563, %v2809
        %v2874 = vmax.f32 %v2741, %v2810
        %v2875 = vmax.f32 %v2566, %v2811
        %v2876 = vmax.f32 %v2744, %v2812
        %v2877 = vmax.f32 %v2568, %v2813
        %v2878 = vmax.f32 %v2746, %v2814
        %v2879 = vmax.f32 %v2571, %v2815
        %v2880 = vmax.f32 %v2749, %v2816
        %v2881 = vmax.f32 %v2573, %v2817
        %v2882 = vmax.f32 %v2751, %v2818
        %v2883 = vmax.f32 %v2576, %v2819
        %v2884 = vmax.f32 %v2754, %v2820
        %v2885 = vmax.f32 %v2578, %v2821
        %v2886 = vmax.f32 %v2756, %v2822
        %v2887 = vmax.f32 %v2581, %v2823
        %v2888 = vmax.f32 %v2759, %v2824
        %v2889 = vmax.f32 %v2583, %v2825
        %v2890 = vmax.f32 %v2761, %v2826
        %v2891 = vpack.c.bf16 %v2829, %v2827
        %v2892 = vpack.c.bf16 %v2830, %v2828
        %v2893 = vpack.c.bf16 %v2833, %v2831
        %v2894 = vpack.c.bf16 %v2834, %v2832
        %v2895 = vpack.c.bf16 %v2837, %v2835
        %v2896 = vpack.c.bf16 %v2838, %v2836
        %v2897 = vpack.c.bf16 %v2841, %v2839
        %v2898 = vpack.c.bf16 %v2842, %v2840
        %v2899 = vpack.c.bf16 %v2845, %v2843
        %v2900 = vpack.c.bf16 %v2846, %v2844
        %v2901 = vpack.c.bf16 %v2849, %v2847
        %v2902 = vpack.c.bf16 %v2850, %v2848
        %v2903 = vpack.c.bf16 %v2853, %v2851
        %v2904 = vpack.c.bf16 %v2854, %v2852
        %v2905 = vpack.c.bf16 %v2857, %v2855
        %v2906 = vpack.c.bf16 %v2858, %v2856
        %v2907 = vpack.c.bf16 %v2861, %v2859
        %v2908 = vpack.c.bf16 %v2862, %v2860
        %v2909 = vpack.c.bf16 %v2865, %v2863
        %v2910 = vpack.c.bf16 %v2866, %v2864
        %v2911 = vpack.c.bf16 %v2869, %v2867
        %v2912 = vpack.c.bf16 %v2870, %v2868
        %v2913 = vpack.c.bf16 %v2873, %v2871
        %v2914 = vpack.c.bf16 %v2874, %v2872
        %v2915 = vpack.c.bf16 %v2877, %v2875
        %v2916 = vpack.c.bf16 %v2878, %v2876
        %v2917 = vpack.c.bf16 %v2881, %v2879
        %v2918 = vpack.c.bf16 %v2882, %v2880
        %v2919 = vpack.c.bf16 %v2885, %v2883
        %v2920 = vpack.c.bf16 %v2886, %v2884
        %v2921 = vpack.c.bf16 %v2889, %v2887
        %v2922 = vpack.c.bf16 %v2890, %v2888
        %v2923 = vld [vmem:[#allocation10] sm:$0xf]
        %v2924 = vld [vmem:[#allocation10 + $0x4] sm:$0xf]
        %v2925 = vld [vmem:[#allocation10 + $0x8] sm:$0xf]
        %v2926 = vld [vmem:[#allocation10 + $0xc] sm:$0xf]
        %v2927 = vld [vmem:[#allocation10 + $0x10] sm:$0xf]
        %v2928 = vld [vmem:[#allocation10 + $0x14] sm:$0xf]
        %v2929 = vld [vmem:[#allocation10 + $0x18] sm:$0xf]
        %v2930 = vld [vmem:[#allocation10 + $0x1c] sm:$0xf]
        %v2931 = vld [vmem:[#allocation10 + $0x20] sm:$0xf]
        %v2932 = vld [vmem:[#allocation10 + $0x24] sm:$0xf]
        %v2933 = vld [vmem:[#allocation10 + $0x28] sm:$0xf]
        %v2934 = vld [vmem:[#allocation10 + $0x2c] sm:$0xf]
        %v2935 = vld [vmem:[#allocation10 + $0x30] sm:$0xf]
        %v2936 = vld [vmem:[#allocation10 + $0x34] sm:$0xf]
        %v2937 = vld [vmem:[#allocation10 + $0x38] sm:$0xf]
        %v2938 = vld [vmem:[#allocation10 + $0x3c] sm:$0xf]
        %v2939 = vld [vmem:[#allocation10 + $0x40] sm:$0xf]
        %v2940 = vld [vmem:[#allocation10 + $0x44] sm:$0xf]
        %v2941 = vld [vmem:[#allocation10 + $0x48] sm:$0xf]
        %v2942 = vld [vmem:[#allocation10 + $0x4c] sm:$0xf]
        %v2943 = vld [vmem:[#allocation10 + $0x50] sm:$0xf]
        %v2944 = vld [vmem:[#allocation10 + $0x54] sm:$0xf]
        %v2945 = vld [vmem:[#allocation10 + $0x58] sm:$0xf]
        %v2946 = vld [vmem:[#allocation10 + $0x5c] sm:$0xf]
        %v2947 = vld [vmem:[#allocation10 + $0x60] sm:$0xf]
        %v2948 = vld [vmem:[#allocation10 + $0x64] sm:$0xf]
        %v2949 = vld [vmem:[#allocation10 + $0x68] sm:$0xf]
        %v2950 = vld [vmem:[#allocation10 + $0x6c] sm:$0xf]
        %v2951 = vld [vmem:[#allocation10 + $0x70] sm:$0xf]
        %v2952 = vld [vmem:[#allocation10 + $0x74] sm:$0xf]
        %v2953 = vld [vmem:[#allocation10 + $0x78] sm:$0xf]
        %v2954 = vld [vmem:[#allocation10 + $0x7c] sm:$0xf]
        %v2955 = vld [vmem:[%s8] sm:$0x1]
        %v2957 = vperm.slane %v2955, 0
        %v2991 = vunpack.c.l.b16 %v2923
        %v2992 = vunpack.c.l.b16 %v2924
        %v2993 = vunpack.c.l.b16 %v2925
        %v2994 = vunpack.c.l.b16 %v2926
        %v2995 = vunpack.c.l.b16 %v2927
        %v2996 = vunpack.c.l.b16 %v2928
        %v2997 = vunpack.c.l.b16 %v2929
        %v2998 = vunpack.c.l.b16 %v2930
        %v2999 = vunpack.c.l.b16 %v2931
        %v3000 = vunpack.c.l.b16 %v2932
        %v3001 = vunpack.c.l.b16 %v2933
        %v3002 = vunpack.c.l.b16 %v2934
        %v3003 = vunpack.c.l.b16 %v2935
        %v3004 = vunpack.c.l.b16 %v2936
        %v3005 = vunpack.c.l.b16 %v2937
        %v3006 = vunpack.c.l.b16 %v2938
        %v3007 = vunpack.c.l.b16 %v2939
        %v3008 = vunpack.c.l.b16 %v2940
        %v3009 = vunpack.c.l.b16 %v2941
        %v3010 = vunpack.c.l.b16 %v2942
        %v3011 = vunpack.c.l.b16 %v2943
        %v3012 = vunpack.c.l.b16 %v2944
        %v3013 = vunpack.c.l.b16 %v2945
        %v3014 = vunpack.c.l.b16 %v2946
        %v3015 = vunpack.c.l.b16 %v2947
        %v3016 = vunpack.c.l.b16 %v2948
        %v3017 = vunpack.c.l.b16 %v2949
        %v3018 = vunpack.c.l.b16 %v2950
        %v3019 = vunpack.c.l.b16 %v2951
        %v3020 = vunpack.c.l.b16 %v2952
        %v3021 = vunpack.c.l.b16 %v2953
        %v3022 = vunpack.c.l.b16 %v2954
        %v3023 = vpack.c.b16 %v2992, %v2991
        %v3024 = vpack.c.b16 %v2994, %v2993
        %v3025 = vpack.c.b16 %v2996, %v2995
        %v3026 = vpack.c.b16 %v2998, %v2997
        %v3027 = vpack.c.b16 %v3000, %v2999
        %v3028 = vpack.c.b16 %v3002, %v3001
        %v3029 = vpack.c.b16 %v3004, %v3003
        %v3030 = vpack.c.b16 %v3006, %v3005
        %v3031 = vpack.c.b16 %v3008, %v3007
        %v3032 = vpack.c.b16 %v3010, %v3009
        %v3033 = vpack.c.b16 %v3012, %v3011
        %v3034 = vpack.c.b16 %v3014, %v3013
        %v3035 = vpack.c.b16 %v3016, %v3015
        %v3036 = vpack.c.b16 %v3018, %v3017
        %v3037 = vpack.c.b16 %v3020, %v3019
        %v3038 = vpack.c.b16 %v3022, %v3021
        %3055 = vmatpush.bf16.msra.mxu0 %v3030
        %3056 = vmatpush.bf16.msra.mxu0 %v3029
        %3057 = vmatpush.bf16.msra.mxu0 %v3028
        %3058 = vmatpush.bf16.msra.mxu0 %v3027
        %3059 = vmatpush.bf16.msra.mxu0 %v3026
        %3060 = vmatpush.bf16.msra.mxu0 %v3025
        %3061 = vmatpush.bf16.msra.mxu0 %v3024
        %3062 = vmatpush.bf16.msra.mxu0 %v3023
        %3063 = vmatmul.bf16.gmra.mxu0 %v2891
        %v3064 = vpop.f32.mrf.mxu0
        %v3065 = vadd.f32 %v2957, %v3064
        %v3066 = vpop.f32.mrf.mxu0
        %v3067 = vadd.f32 %v2957, %v3066
        %3068 = vmatmul.bf16.gmra.mxu0 %v2893
        %v3069 = vpop.f32.mrf.mxu0
        %v3070 = vadd.f32 %v2957, %v3069
        %v3071 = vpop.f32.mrf.mxu0
        %v3072 = vadd.f32 %v2957, %v3071
        %3073 = vmatmul.bf16.gmra.mxu0 %v2895
        %v3074 = vpop.f32.mrf.mxu0
        %v3075 = vadd.f32 %v2957, %v3074
        %v3076 = vpop.f32.mrf.mxu0
        %v3077 = vadd.f32 %v2957, %v3076
        %3078 = vmatmul.bf16.gmra.mxu0 %v2897
        %v3079 = vpop.f32.mrf.mxu0
        %v3080 = vadd.f32 %v2957, %v3079
        %v3081 = vpop.f32.mrf.mxu0
        %v3082 = vadd.f32 %v2957, %v3081
        %3083 = vmatmul.bf16.gmra.mxu0 %v2899
        %v3084 = vpop.f32.mrf.mxu0
        %v3085 = vadd.f32 %v2957, %v3084
        %v3086 = vpop.f32.mrf.mxu0
        %v3087 = vadd.f32 %v2957, %v3086
        %3088 = vmatmul.bf16.gmra.mxu0 %v2901
        %v3089 = vpop.f32.mrf.mxu0
        %v3090 = vadd.f32 %v2957, %v3089
        %v3091 = vpop.f32.mrf.mxu0
        %v3092 = vadd.f32 %v2957, %v3091
        %3093 = vmatmul.bf16.gmra.mxu0 %v2903
        %v3094 = vpop.f32.mrf.mxu0
        %v3095 = vadd.f32 %v2957, %v3094
        %v3096 = vpop.f32.mrf.mxu0
        %v3097 = vadd.f32 %v2957, %v3096
        %3098 = vmatmul.bf16.gmra.mxu0 %v2905
        %v3099 = vpop.f32.mrf.mxu0
        %v3100 = vadd.f32 %v2957, %v3099
        %v3101 = vpop.f32.mrf.mxu0
        %v3102 = vadd.f32 %v2957, %v3101
        %3103 = vmatmul.bf16.gmra.mxu0 %v2907
        %v3104 = vpop.f32.mrf.mxu0
        %v3105 = vadd.f32 %v2957, %v3104
        %v3106 = vpop.f32.mrf.mxu0
        %v3107 = vadd.f32 %v2957, %v3106
        %3108 = vmatmul.bf16.gmra.mxu0 %v2909
        %v3109 = vpop.f32.mrf.mxu0
        %v3110 = vadd.f32 %v2957, %v3109
        %v3111 = vpop.f32.mrf.mxu0
        %v3112 = vadd.f32 %v2957, %v3111
        %3113 = vmatmul.bf16.gmra.mxu0 %v2911
        %v3114 = vpop.f32.mrf.mxu0
        %v3115 = vadd.f32 %v2957, %v3114
        %v3116 = vpop.f32.mrf.mxu0
        %v3117 = vadd.f32 %v2957, %v3116
        %3118 = vmatmul.bf16.gmra.mxu0 %v2913
        %v3119 = vpop.f32.mrf.mxu0
        %v3120 = vadd.f32 %v2957, %v3119
        %v3121 = vpop.f32.mrf.mxu0
        %v3122 = vadd.f32 %v2957, %v3121
        %3123 = vmatmul.bf16.gmra.mxu0 %v2915
        %v3124 = vpop.f32.mrf.mxu0
        %v3125 = vadd.f32 %v2957, %v3124
        %v3126 = vpop.f32.mrf.mxu0
        %v3127 = vadd.f32 %v2957, %v3126
        %3128 = vmatmul.bf16.gmra.mxu0 %v2917
        %v3129 = vpop.f32.mrf.mxu0
        %v3130 = vadd.f32 %v2957, %v3129
        %v3131 = vpop.f32.mrf.mxu0
        %v3132 = vadd.f32 %v2957, %v3131
        %3133 = vmatmul.bf16.gmra.mxu0 %v2919
        %v3134 = vpop.f32.mrf.mxu0
        %v3135 = vadd.f32 %v2957, %v3134
        %v3136 = vpop.f32.mrf.mxu0
        %v3137 = vadd.f32 %v2957, %v3136
        %3138 = vmatmul.bf16.gmra.mxu0 %v2921
        %v3139 = vpop.f32.mrf.mxu0
        %v3140 = vadd.f32 %v2957, %v3139
        %v3141 = vpop.f32.mrf.mxu0
        %v3142 = vadd.f32 %v2957, %v3141
        %3143 = vdwg.mxu0
        %3144 = vmatpush.bf16.msra.mxu0 %v3038
        %3145 = vmatpush.bf16.msra.mxu0 %v3037
        %3146 = vmatpush.bf16.msra.mxu0 %v3036
        %3147 = vmatpush.bf16.msra.mxu0 %v3035
        %3148 = vmatpush.bf16.msra.mxu0 %v3034
        %3149 = vmatpush.bf16.msra.mxu0 %v3033
        %3150 = vmatpush.bf16.msra.mxu0 %v3032
        %3151 = vmatpush.bf16.msra.mxu0 %v3031
        %3152 = vmatmul.bf16.gmra.mxu0 %v2892
        %v3153 = vpop.f32.mrf.mxu0
        %v3154 = vadd.f32 %v3065, %v3153
        %v3155 = vpop.f32.mrf.mxu0
        %v3156 = vadd.f32 %v3067, %v3155
        %3157 = vmatmul.bf16.gmra.mxu0 %v2894
        %v3158 = vpop.f32.mrf.mxu0
        %v3159 = vadd.f32 %v3070, %v3158
        %v3160 = vpop.f32.mrf.mxu0
        %v3161 = vadd.f32 %v3072, %v3160
        %3162 = vmatmul.bf16.gmra.mxu0 %v2896
        %v3163 = vpop.f32.mrf.mxu0
        %v3164 = vadd.f32 %v3075, %v3163
        %v3165 = vpop.f32.mrf.mxu0
        %v3166 = vadd.f32 %v3077, %v3165
        %3167 = vmatmul.bf16.gmra.mxu0 %v2898
        %v3168 = vpop.f32.mrf.mxu0
        %v3169 = vadd.f32 %v3080, %v3168
        %v3170 = vpop.f32.mrf.mxu0
        %v3171 = vadd.f32 %v3082, %v3170
        %3172 = vmatmul.bf16.gmra.mxu0 %v2900
        %v3173 = vpop.f32.mrf.mxu0
        %v3174 = vadd.f32 %v3085, %v3173
        %v3175 = vpop.f32.mrf.mxu0
        %v3176 = vadd.f32 %v3087, %v3175
        %3177 = vmatmul.bf16.gmra.mxu0 %v2902
        %v3178 = vpop.f32.mrf.mxu0
        %v3179 = vadd.f32 %v3090, %v3178
        %v3180 = vpop.f32.mrf.mxu0
        %v3181 = vadd.f32 %v3092, %v3180
        %3182 = vmatmul.bf16.gmra.mxu0 %v2904
        %v3183 = vpop.f32.mrf.mxu0
        %v3184 = vadd.f32 %v3095, %v3183
        %v3185 = vpop.f32.mrf.mxu0
        %v3186 = vadd.f32 %v3097, %v3185
        %3187 = vmatmul.bf16.gmra.mxu0 %v2906
        %v3188 = vpop.f32.mrf.mxu0
        %v3189 = vadd.f32 %v3100, %v3188
        %v3190 = vpop.f32.mrf.mxu0
        %v3191 = vadd.f32 %v3102, %v3190
        %3192 = vmatmul.bf16.gmra.mxu0 %v2908
        %v3193 = vpop.f32.mrf.mxu0
        %v3194 = vadd.f32 %v3105, %v3193
        %v3195 = vpop.f32.mrf.mxu0
        %v3196 = vadd.f32 %v3107, %v3195
        %3197 = vmatmul.bf16.gmra.mxu0 %v2910
        %v3198 = vpop.f32.mrf.mxu0
        %v3199 = vadd.f32 %v3110, %v3198
        %v3200 = vpop.f32.mrf.mxu0
        %v3201 = vadd.f32 %v3112, %v3200
        %3202 = vmatmul.bf16.gmra.mxu0 %v2912
        %v3203 = vpop.f32.mrf.mxu0
        %v3204 = vadd.f32 %v3115, %v3203
        %v3205 = vpop.f32.mrf.mxu0
        %v3206 = vadd.f32 %v3117, %v3205
        %3207 = vmatmul.bf16.gmra.mxu0 %v2914
        %v3208 = vpop.f32.mrf.mxu0
        %v3209 = vadd.f32 %v3120, %v3208
        %v3210 = vpop.f32.mrf.mxu0
        %v3211 = vadd.f32 %v3122, %v3210
        %3212 = vmatmul.bf16.gmra.mxu0 %v2916
        %v3213 = vpop.f32.mrf.mxu0
        %v3214 = vadd.f32 %v3125, %v3213
        %v3215 = vpop.f32.mrf.mxu0
        %v3216 = vadd.f32 %v3127, %v3215
        %3217 = vmatmul.bf16.gmra.mxu0 %v2918
        %v3218 = vpop.f32.mrf.mxu0
        %v3219 = vadd.f32 %v3130, %v3218
        %v3220 = vpop.f32.mrf.mxu0
        %v3221 = vadd.f32 %v3132, %v3220
        %3222 = vmatmul.bf16.gmra.mxu0 %v2920
        %v3223 = vpop.f32.mrf.mxu0
        %v3224 = vadd.f32 %v3135, %v3223
        %v3225 = vpop.f32.mrf.mxu0
        %v3226 = vadd.f32 %v3137, %v3225
        %3227 = vmatmul.bf16.gmra.mxu0 %v2922
        %v3228 = vpop.f32.mrf.mxu0
        %v3229 = vadd.f32 %v3140, %v3228
        %v3230 = vpop.f32.mrf.mxu0
        %v3231 = vadd.f32 %v3142, %v3230
        %3232 = vdwg.mxu0
        %v3233 = vmul.f32 %v3154, 0.01
        %v3234 = vmul.f32 %v3156, 0.01
        %v3235 = vmul.f32 %v3159, 0.01
        %v3236 = vmul.f32 %v3161, 0.01
        %v3237 = vmul.f32 %v3164, 0.01
        %v3238 = vmul.f32 %v3166, 0.01
        %v3239 = vmul.f32 %v3169, 0.01
        %v3240 = vmul.f32 %v3171, 0.01
        %v3241 = vmul.f32 %v3174, 0.01
        %v3242 = vmul.f32 %v3176, 0.01
        %v3243 = vmul.f32 %v3179, 0.01
        %v3244 = vmul.f32 %v3181, 0.01
        %v3245 = vmul.f32 %v3184, 0.01
        %v3246 = vmul.f32 %v3186, 0.01
        %v3247 = vmul.f32 %v3189, 0.01
        %v3248 = vmul.f32 %v3191, 0.01
        %v3249 = vmul.f32 %v3194, 0.01
        %v3250 = vmul.f32 %v3196, 0.01
        %v3251 = vmul.f32 %v3199, 0.01
        %v3252 = vmul.f32 %v3201, 0.01
        %v3253 = vmul.f32 %v3204, 0.01
        %v3254 = vmul.f32 %v3206, 0.01
        %v3255 = vmul.f32 %v3209, 0.01
        %v3256 = vmul.f32 %v3211, 0.01
        %v3257 = vmul.f32 %v3214, 0.01
        %v3258 = vmul.f32 %v3216, 0.01
        %v3259 = vmul.f32 %v3219, 0.01
        %v3260 = vmul.f32 %v3221, 0.01
        %v3261 = vmul.f32 %v3224, 0.01
        %v3262 = vmul.f32 %v3226, 0.01
        %v3263 = vmul.f32 %v3229, 0.01
        %v3264 = vmul.f32 %v3231, 0.01
        %v3265 = vmax.f32 %v3154, %v3233
        %v3266 = vmax.f32 %v3156, %v3234
        %v3267 = vmax.f32 %v3159, %v3235
        %v3268 = vmax.f32 %v3161, %v3236
        %v3269 = vmax.f32 %v3164, %v3237
        %v3270 = vmax.f32 %v3166, %v3238
        %v3271 = vmax.f32 %v3169, %v3239
        %v3272 = vmax.f32 %v3171, %v3240
        %v3273 = vmax.f32 %v3174, %v3241
        %v3274 = vmax.f32 %v3176, %v3242
        %v3275 = vmax.f32 %v3179, %v3243
        %v3276 = vmax.f32 %v3181, %v3244
        %v3277 = vmax.f32 %v3184, %v3245
        %v3278 = vmax.f32 %v3186, %v3246
        %v3279 = vmax.f32 %v3189, %v3247
        %v3280 = vmax.f32 %v3191, %v3248
        %v3281 = vmax.f32 %v3194, %v3249
        %v3282 = vmax.f32 %v3196, %v3250
        %v3283 = vmax.f32 %v3199, %v3251
        %v3284 = vmax.f32 %v3201, %v3252
        %v3285 = vmax.f32 %v3204, %v3253
        %v3286 = vmax.f32 %v3206, %v3254
        %v3287 = vmax.f32 %v3209, %v3255
        %v3288 = vmax.f32 %v3211, %v3256
        %v3289 = vmax.f32 %v3214, %v3257
        %v3290 = vmax.f32 %v3216, %v3258
        %v3291 = vmax.f32 %v3219, %v3259
        %v3292 = vmax.f32 %v3221, %v3260
        %v3293 = vmax.f32 %v3224, %v3261
        %v3294 = vmax.f32 %v3226, %v3262
        %v3295 = vmax.f32 %v3229, %v3263
        %v3296 = vmax.f32 %v3231, %v3264
        %v3297 = vpack.c.bf16 %v3266, %v3265
        %v3298 = vpack.c.bf16 %v3268, %v3267
        %v3299 = vpack.c.bf16 %v3270, %v3269
        %v3300 = vpack.c.bf16 %v3272, %v3271
        %v3301 = vpack.c.bf16 %v3274, %v3273
        %v3302 = vpack.c.bf16 %v3276, %v3275
        %v3303 = vpack.c.bf16 %v3278, %v3277
        %v3304 = vpack.c.bf16 %v3280, %v3279
        %v3305 = vpack.c.bf16 %v3282, %v3281
        %v3306 = vpack.c.bf16 %v3284, %v3283
        %v3307 = vpack.c.bf16 %v3286, %v3285
        %v3308 = vpack.c.bf16 %v3288, %v3287
        %v3309 = vpack.c.bf16 %v3290, %v3289
        %v3310 = vpack.c.bf16 %v3292, %v3291
        %v3311 = vpack.c.bf16 %v3294, %v3293
        %v3312 = vpack.c.bf16 %v3296, %v3295
        %v3313 = vld [vmem:[%s9] sm:$0xf]
        %v3314 = vld [vmem:[%s9 + $0x4] sm:$0xf]
        %v3315 = vld [vmem:[%s9 + $0x8] sm:$0xf]
        %v3316 = vld [vmem:[%s9 + $0xc] sm:$0xf]
        %v3317 = vld [vmem:[%s9 + $0x10] sm:$0xf]
        %v3318 = vld [vmem:[%s9 + $0x14] sm:$0xf]
        %v3319 = vld [vmem:[%s9 + $0x18] sm:$0xf]
        %v3320 = vld [vmem:[%s9 + $0x1c] sm:$0xf]
        %v3321 = vld [vmem:[%s9 + $0x20] sm:$0xf]
        %v3322 = vld [vmem:[%s9 + $0x24] sm:$0xf]
        %v3323 = vld [vmem:[%s9 + $0x28] sm:$0xf]
        %v3324 = vld [vmem:[%s9 + $0x2c] sm:$0xf]
        %v3325 = vld [vmem:[%s9 + $0x30] sm:$0xf]
        %v3326 = vld [vmem:[%s9 + $0x34] sm:$0xf]
        %v3327 = vld [vmem:[%s9 + $0x38] sm:$0xf]
        %v3328 = vld [vmem:[%s9 + $0x3c] sm:$0xf]
        %v3329 = vld [vmem:[%s10] sm:$0x1]
        %v3331 = vperm.slane %v3329, 0
        %v3349 = vunpack.c.l.b16 %v3313
        %v3350 = vunpack.c.l.b16 %v3314
        %v3351 = vunpack.c.l.b16 %v3315
        %v3352 = vunpack.c.l.b16 %v3316
        %v3353 = vunpack.c.l.b16 %v3317
        %v3354 = vunpack.c.l.b16 %v3318
        %v3355 = vunpack.c.l.b16 %v3319
        %v3356 = vunpack.c.l.b16 %v3320
        %v3357 = vunpack.c.l.b16 %v3321
        %v3358 = vunpack.c.l.b16 %v3322
        %v3359 = vunpack.c.l.b16 %v3323
        %v3360 = vunpack.c.l.b16 %v3324
        %v3361 = vunpack.c.l.b16 %v3325
        %v3362 = vunpack.c.l.b16 %v3326
        %v3363 = vunpack.c.l.b16 %v3327
        %v3364 = vunpack.c.l.b16 %v3328
        %v3365 = vpack.c.b16 %v3350, %v3349
        %v3366 = vpack.c.b16 %v3352, %v3351
        %v3367 = vpack.c.b16 %v3354, %v3353
        %v3368 = vpack.c.b16 %v3356, %v3355
        %v3369 = vpack.c.b16 %v3358, %v3357
        %v3370 = vpack.c.b16 %v3360, %v3359
        %v3371 = vpack.c.b16 %v3362, %v3361
        %v3372 = vpack.c.b16 %v3364, %v3363
        %3381 = vmatpush.bf16.msra.mxu0 %v3372
        %3382 = vmatpush.bf16.msra.mxu0 %v3371
        %3383 = vmatpush.bf16.msra.mxu0 %v3370
        %3384 = vmatpush.bf16.msra.mxu0 %v3369
        %3385 = vmatpush.bf16.msra.mxu0 %v3368
        %3386 = vmatpush.bf16.msra.mxu0 %v3367
        %3387 = vmatpush.bf16.msra.mxu0 %v3366
        %3388 = vmatpush.bf16.msra.mxu0 %v3365
        %3389 = vmatmul.bf16.gmra.mxu0 %v3297
        %v3390 = vpop.f32.mrf.mxu0
        %v3391 = vadd.f32 %v3331, %v3390
        %v3392 = vpop.f32.mrf.mxu0
        %v3393 = vadd.f32 %v3331, %v3392
        %3394 = vmatmul.bf16.gmra.mxu0 %v3298
        %v3395 = vpop.f32.mrf.mxu0
        %v3396 = vadd.f32 %v3331, %v3395
        %v3397 = vpop.f32.mrf.mxu0
        %v3398 = vadd.f32 %v3331, %v3397
        %3399 = vmatmul.bf16.gmra.mxu0 %v3299
        %v3400 = vpop.f32.mrf.mxu0
        %v3401 = vadd.f32 %v3331, %v3400
        %v3402 = vpop.f32.mrf.mxu0
        %v3403 = vadd.f32 %v3331, %v3402
        %3404 = vmatmul.bf16.gmra.mxu0 %v3300
        %v3405 = vpop.f32.mrf.mxu0
        %v3406 = vadd.f32 %v3331, %v3405
        %v3407 = vpop.f32.mrf.mxu0
        %v3408 = vadd.f32 %v3331, %v3407
        %3409 = vmatmul.bf16.gmra.mxu0 %v3301
        %v3410 = vpop.f32.mrf.mxu0
        %v3411 = vadd.f32 %v3331, %v3410
        %v3412 = vpop.f32.mrf.mxu0
        %v3413 = vadd.f32 %v3331, %v3412
        %3414 = vmatmul.bf16.gmra.mxu0 %v3302
        %v3415 = vpop.f32.mrf.mxu0
        %v3416 = vadd.f32 %v3331, %v3415
        %v3417 = vpop.f32.mrf.mxu0
        %v3418 = vadd.f32 %v3331, %v3417
        %3419 = vmatmul.bf16.gmra.mxu0 %v3303
        %v3420 = vpop.f32.mrf.mxu0
        %v3421 = vadd.f32 %v3331, %v3420
        %v3422 = vpop.f32.mrf.mxu0
        %v3423 = vadd.f32 %v3331, %v3422
        %3424 = vmatmul.bf16.gmra.mxu0 %v3304
        %v3425 = vpop.f32.mrf.mxu0
        %v3426 = vadd.f32 %v3331, %v3425
        %v3427 = vpop.f32.mrf.mxu0
        %v3428 = vadd.f32 %v3331, %v3427
        %3429 = vmatmul.bf16.gmra.mxu0 %v3305
        %v3430 = vpop.f32.mrf.mxu0
        %v3431 = vadd.f32 %v3331, %v3430
        %v3432 = vpop.f32.mrf.mxu0
        %v3433 = vadd.f32 %v3331, %v3432
        %3434 = vmatmul.bf16.gmra.mxu0 %v3306
        %v3435 = vpop.f32.mrf.mxu0
        %v3436 = vadd.f32 %v3331, %v3435
        %v3437 = vpop.f32.mrf.mxu0
        %v3438 = vadd.f32 %v3331, %v3437
        %3439 = vmatmul.bf16.gmra.mxu0 %v3307
        %v3440 = vpop.f32.mrf.mxu0
        %v3441 = vadd.f32 %v3331, %v3440
        %v3442 = vpop.f32.mrf.mxu0
        %v3443 = vadd.f32 %v3331, %v3442
        %3444 = vmatmul.bf16.gmra.mxu0 %v3308
        %v3445 = vpop.f32.mrf.mxu0
        %v3446 = vadd.f32 %v3331, %v3445
        %v3447 = vpop.f32.mrf.mxu0
        %v3448 = vadd.f32 %v3331, %v3447
        %3449 = vmatmul.bf16.gmra.mxu0 %v3309
        %v3450 = vpop.f32.mrf.mxu0
        %v3451 = vadd.f32 %v3331, %v3450
        %v3452 = vpop.f32.mrf.mxu0
        %v3453 = vadd.f32 %v3331, %v3452
        %3454 = vmatmul.bf16.gmra.mxu0 %v3310
        %v3455 = vpop.f32.mrf.mxu0
        %v3456 = vadd.f32 %v3331, %v3455
        %v3457 = vpop.f32.mrf.mxu0
        %v3458 = vadd.f32 %v3331, %v3457
        %3459 = vmatmul.bf16.gmra.mxu0 %v3311
        %v3460 = vpop.f32.mrf.mxu0
        %v3461 = vadd.f32 %v3331, %v3460
        %v3462 = vpop.f32.mrf.mxu0
        %v3463 = vadd.f32 %v3331, %v3462
        %3464 = vmatmul.bf16.gmra.mxu0 %v3312
        %v3465 = vpop.f32.mrf.mxu0
        %v3466 = vadd.f32 %v3331, %v3465
        %v3467 = vpop.f32.mrf.mxu0
        %v3468 = vadd.f32 %v3331, %v3467
        %3469 = vdwg.mxu0
        %v3470 = vmul.f32 %v3391, 0.01
        %v3471 = vmul.f32 %v3393, 0.01
        %v3472 = vmul.f32 %v3396, 0.01
        %v3473 = vmul.f32 %v3398, 0.01
        %v3474 = vmul.f32 %v3401, 0.01
        %v3475 = vmul.f32 %v3403, 0.01
        %v3476 = vmul.f32 %v3406, 0.01
        %v3477 = vmul.f32 %v3408, 0.01
        %v3478 = vmul.f32 %v3411, 0.01
        %v3479 = vmul.f32 %v3413, 0.01
        %v3480 = vmul.f32 %v3416, 0.01
        %v3481 = vmul.f32 %v3418, 0.01
        %v3482 = vmul.f32 %v3421, 0.01
        %v3483 = vmul.f32 %v3423, 0.01
        %v3484 = vmul.f32 %v3426, 0.01
        %v3485 = vmul.f32 %v3428, 0.01
        %v3486 = vmul.f32 %v3431, 0.01
        %v3487 = vmul.f32 %v3433, 0.01
        %v3488 = vmul.f32 %v3436, 0.01
        %v3489 = vmul.f32 %v3438, 0.01
        %v3490 = vmul.f32 %v3441, 0.01
        %v3491 = vmul.f32 %v3443, 0.01
        %v3492 = vmul.f32 %v3446, 0.01
        %v3493 = vmul.f32 %v3448, 0.01
        %v3494 = vmul.f32 %v3451, 0.01
        %v3495 = vmul.f32 %v3453, 0.01
        %v3496 = vmul.f32 %v3456, 0.01
        %v3497 = vmul.f32 %v3458, 0.01
        %v3498 = vmul.f32 %v3461, 0.01
        %v3499 = vmul.f32 %v3463, 0.01
        %v3500 = vmul.f32 %v3466, 0.01
        %v3501 = vmul.f32 %v3468, 0.01
        %v3502 = vmax.f32 %v3391, %v3470
        %v3503 = vmax.f32 %v3393, %v3471
        %v3504 = vmax.f32 %v3396, %v3472
        %v3505 = vmax.f32 %v3398, %v3473
        %v3506 = vmax.f32 %v3401, %v3474
        %v3507 = vmax.f32 %v3403, %v3475
        %v3508 = vmax.f32 %v3406, %v3476
        %v3509 = vmax.f32 %v3408, %v3477
        %v3510 = vmax.f32 %v3411, %v3478
        %v3511 = vmax.f32 %v3413, %v3479
        %v3512 = vmax.f32 %v3416, %v3480
        %v3513 = vmax.f32 %v3418, %v3481
        %v3514 = vmax.f32 %v3421, %v3482
        %v3515 = vmax.f32 %v3423, %v3483
        %v3516 = vmax.f32 %v3426, %v3484
        %v3517 = vmax.f32 %v3428, %v3485
        %v3518 = vmax.f32 %v3431, %v3486
        %v3519 = vmax.f32 %v3433, %v3487
        %v3520 = vmax.f32 %v3436, %v3488
        %v3521 = vmax.f32 %v3438, %v3489
        %v3522 = vmax.f32 %v3441, %v3490
        %v3523 = vmax.f32 %v3443, %v3491
        %v3524 = vmax.f32 %v3446, %v3492
        %v3525 = vmax.f32 %v3448, %v3493
        %v3526 = vmax.f32 %v3451, %v3494
        %v3527 = vmax.f32 %v3453, %v3495
        %v3528 = vmax.f32 %v3456, %v3496
        %v3529 = vmax.f32 %v3458, %v3497
        %v3530 = vmax.f32 %v3461, %v3498
        %v3531 = vmax.f32 %v3463, %v3499
        %v3532 = vmax.f32 %v3466, %v3500
        %v3533 = vmax.f32 %v3468, %v3501
        %v3534 = vpack.c.bf16 %v3503, %v3502
        %v3535 = vpack.c.bf16 %v3505, %v3504
        %v3536 = vpack.c.bf16 %v3507, %v3506
        %v3537 = vpack.c.bf16 %v3509, %v3508
        %v3538 = vpack.c.bf16 %v3511, %v3510
        %v3539 = vpack.c.bf16 %v3513, %v3512
        %v3540 = vpack.c.bf16 %v3515, %v3514
        %v3541 = vpack.c.bf16 %v3517, %v3516
        %v3542 = vpack.c.bf16 %v3519, %v3518
        %v3543 = vpack.c.bf16 %v3521, %v3520
        %v3544 = vpack.c.bf16 %v3523, %v3522
        %v3545 = vpack.c.bf16 %v3525, %v3524
        %v3546 = vpack.c.bf16 %v3527, %v3526
        %v3547 = vpack.c.bf16 %v3529, %v3528
        %v3548 = vpack.c.bf16 %v3531, %v3530
        %v3549 = vpack.c.bf16 %v3533, %v3532
        %v3550 = vld [vmem:[%s11] sm:$0xf]
        %v3551 = vld [vmem:[%s11 + $0x4] sm:$0xf]
        %v3552 = vld [vmem:[%s11 + $0x8] sm:$0xf]
        %v3553 = vld [vmem:[%s11 + $0xc] sm:$0xf]
        %v3554 = vld [vmem:[%s11 + $0x10] sm:$0xf]
        %v3555 = vld [vmem:[%s11 + $0x14] sm:$0xf]
        %v3556 = vld [vmem:[%s11 + $0x18] sm:$0xf]
        %v3557 = vld [vmem:[%s11 + $0x1c] sm:$0xf]
        %v3558 = vld [vmem:[%s12] sm:$0x1]
        %v3560 = vperm.slane %v3558, 0
        %v3570 = vunpack.c.l.b16 %v3550
        %v3571 = vunpack.c.l.b16 %v3551
        %v3572 = vunpack.c.l.b16 %v3552
        %v3573 = vunpack.c.l.b16 %v3553
        %v3574 = vunpack.c.l.b16 %v3554
        %v3575 = vunpack.c.l.b16 %v3555
        %v3576 = vunpack.c.l.b16 %v3556
        %v3577 = vunpack.c.l.b16 %v3557
        %v3578 = vpack.c.b16 %v3571, %v3570
        %v3579 = vpack.c.b16 %v3573, %v3572
        %v3580 = vpack.c.b16 %v3575, %v3574
        %v3581 = vpack.c.b16 %v3577, %v3576
        %vm3586 = vcmask 523264
        %v3588 = vsel %vm3586, %v3534, 0
        %v3591 = vsel %vm3586, %v3535, 0
        %v3594 = vsel %vm3586, %v3536, 0
        %v3597 = vsel %vm3586, %v3537, 0
        %v3600 = vsel %vm3586, %v3538, 0
        %v3603 = vsel %vm3586, %v3539, 0
        %v3606 = vsel %vm3586, %v3540, 0
        %v3609 = vsel %vm3586, %v3541, 0
        %v3612 = vsel %vm3586, %v3542, 0
        %v3615 = vsel %vm3586, %v3543, 0
        %v3618 = vsel %vm3586, %v3544, 0
        %v3621 = vsel %vm3586, %v3545, 0
        %v3624 = vsel %vm3586, %v3546, 0
        %v3627 = vsel %vm3586, %v3547, 0
        %v3630 = vsel %vm3586, %v3548, 0
        %v3633 = vsel %vm3586, %v3549, 0
        %3635 = vmatpush.bf16.msra.mxu0 0
        %3636 = vmatpush.bf16.msra.mxu0 0
        %3637 = vmatpush.bf16.msra.mxu0 0
        %3638 = vmatpush.bf16.msra.mxu0 0
        %3639 = vmatpush.bf16.msra.mxu0 %v3581
        %3640 = vmatpush.bf16.msra.mxu0 %v3580
        %3641 = vmatpush.bf16.msra.mxu0 %v3579
        %3642 = vmatpush.bf16.msra.mxu0 %v3578
        %3643 = vmatmul.bf16.gmra.mxu0 %v3588
        %v3644 = vpop.f32.mrf.mxu0
        %v3645 = vadd.f32 %v3560, %v3644
        %v3646 = vpop.f32.mrf.mxu0
        %v3647 = vadd.f32 %v3560, %v3646
        %3648 = vmatmul.bf16.gmra.mxu0 %v3591
        %v3649 = vpop.f32.mrf.mxu0
        %v3650 = vadd.f32 %v3560, %v3649
        %v3651 = vpop.f32.mrf.mxu0
        %v3652 = vadd.f32 %v3560, %v3651
        %3653 = vmatmul.bf16.gmra.mxu0 %v3594
        %v3654 = vpop.f32.mrf.mxu0
        %v3655 = vadd.f32 %v3560, %v3654
        %v3656 = vpop.f32.mrf.mxu0
        %v3657 = vadd.f32 %v3560, %v3656
        %3658 = vmatmul.bf16.gmra.mxu0 %v3597
        %v3659 = vpop.f32.mrf.mxu0
        %v3660 = vadd.f32 %v3560, %v3659
        %v3661 = vpop.f32.mrf.mxu0
        %v3662 = vadd.f32 %v3560, %v3661
        %3663 = vmatmul.bf16.gmra.mxu0 %v3600
        %v3664 = vpop.f32.mrf.mxu0
        %v3665 = vadd.f32 %v3560, %v3664
        %v3666 = vpop.f32.mrf.mxu0
        %v3667 = vadd.f32 %v3560, %v3666
        %3668 = vmatmul.bf16.gmra.mxu0 %v3603
        %v3669 = vpop.f32.mrf.mxu0
        %v3670 = vadd.f32 %v3560, %v3669
        %v3671 = vpop.f32.mrf.mxu0
        %v3672 = vadd.f32 %v3560, %v3671
        %3673 = vmatmul.bf16.gmra.mxu0 %v3606
        %v3674 = vpop.f32.mrf.mxu0
        %v3675 = vadd.f32 %v3560, %v3674
        %v3676 = vpop.f32.mrf.mxu0
        %v3677 = vadd.f32 %v3560, %v3676
        %3678 = vmatmul.bf16.gmra.mxu0 %v3609
        %v3679 = vpop.f32.mrf.mxu0
        %v3680 = vadd.f32 %v3560, %v3679
        %v3681 = vpop.f32.mrf.mxu0
        %v3682 = vadd.f32 %v3560, %v3681
        %3683 = vmatmul.bf16.gmra.mxu0 %v3612
        %v3684 = vpop.f32.mrf.mxu0
        %v3685 = vadd.f32 %v3560, %v3684
        %v3686 = vpop.f32.mrf.mxu0
        %v3687 = vadd.f32 %v3560, %v3686
        %3688 = vmatmul.bf16.gmra.mxu0 %v3615
        %v3689 = vpop.f32.mrf.mxu0
        %v3690 = vadd.f32 %v3560, %v3689
        %v3691 = vpop.f32.mrf.mxu0
        %v3692 = vadd.f32 %v3560, %v3691
        %3693 = vmatmul.bf16.gmra.mxu0 %v3618
        %v3694 = vpop.f32.mrf.mxu0
        %v3695 = vadd.f32 %v3560, %v3694
        %v3696 = vpop.f32.mrf.mxu0
        %v3697 = vadd.f32 %v3560, %v3696
        %3698 = vmatmul.bf16.gmra.mxu0 %v3621
        %v3699 = vpop.f32.mrf.mxu0
        %v3700 = vadd.f32 %v3560, %v3699
        %v3701 = vpop.f32.mrf.mxu0
        %v3702 = vadd.f32 %v3560, %v3701
        %3703 = vmatmul.bf16.gmra.mxu0 %v3624
        %v3704 = vpop.f32.mrf.mxu0
        %v3705 = vadd.f32 %v3560, %v3704
        %v3706 = vpop.f32.mrf.mxu0
        %v3707 = vadd.f32 %v3560, %v3706
        %3708 = vmatmul.bf16.gmra.mxu0 %v3627
        %v3709 = vpop.f32.mrf.mxu0
        %v3710 = vadd.f32 %v3560, %v3709
        %v3711 = vpop.f32.mrf.mxu0
        %v3712 = vadd.f32 %v3560, %v3711
        %3713 = vmatmul.bf16.gmra.mxu0 %v3630
        %v3714 = vpop.f32.mrf.mxu0
        %v3715 = vadd.f32 %v3560, %v3714
        %v3716 = vpop.f32.mrf.mxu0
        %v3717 = vadd.f32 %v3560, %v3716
        %3718 = vmatmul.bf16.gmra.mxu0 %v3633
        %v3719 = vpop.f32.mrf.mxu0
        %v3720 = vadd.f32 %v3560, %v3719
        %v3721 = vpop.f32.mrf.mxu0
        %v3722 = vadd.f32 %v3560, %v3721
        %3723 = vdwg.mxu0
        %v3724 = vmul.f32 %v3645, 0.01
        %v3725 = vmul.f32 %v3647, 0.01
        %v3726 = vmul.f32 %v3650, 0.01
        %v3727 = vmul.f32 %v3652, 0.01
        %v3728 = vmul.f32 %v3655, 0.01
        %v3729 = vmul.f32 %v3657, 0.01
        %v3730 = vmul.f32 %v3660, 0.01
        %v3731 = vmul.f32 %v3662, 0.01
        %v3732 = vmul.f32 %v3665, 0.01
        %v3733 = vmul.f32 %v3667, 0.01
        %v3734 = vmul.f32 %v3670, 0.01
        %v3735 = vmul.f32 %v3672, 0.01
        %v3736 = vmul.f32 %v3675, 0.01
        %v3737 = vmul.f32 %v3677, 0.01
        %v3738 = vmul.f32 %v3680, 0.01
        %v3739 = vmul.f32 %v3682, 0.01
        %v3740 = vmul.f32 %v3685, 0.01
        %v3741 = vmul.f32 %v3687, 0.01
        %v3742 = vmul.f32 %v3690, 0.01
        %v3743 = vmul.f32 %v3692, 0.01
        %v3744 = vmul.f32 %v3695, 0.01
        %v3745 = vmul.f32 %v3697, 0.01
        %v3746 = vmul.f32 %v3700, 0.01
        %v3747 = vmul.f32 %v3702, 0.01
        %v3748 = vmul.f32 %v3705, 0.01
        %v3749 = vmul.f32 %v3707, 0.01
        %v3750 = vmul.f32 %v3710, 0.01
        %v3751 = vmul.f32 %v3712, 0.01
        %v3752 = vmul.f32 %v3715, 0.01
        %v3753 = vmul.f32 %v3717, 0.01
        %v3754 = vmul.f32 %v3720, 0.01
        %v3755 = vmul.f32 %v3722, 0.01
        %v3756 = vmax.f32 %v3645, %v3724
        %v3757 = vmax.f32 %v3647, %v3725
        %v3758 = vmax.f32 %v3650, %v3726
        %v3759 = vmax.f32 %v3652, %v3727
        %v3760 = vmax.f32 %v3655, %v3728
        %v3761 = vmax.f32 %v3657, %v3729
        %v3762 = vmax.f32 %v3660, %v3730
        %v3763 = vmax.f32 %v3662, %v3731
        %v3764 = vmax.f32 %v3665, %v3732
        %v3765 = vmax.f32 %v3667, %v3733
        %v3766 = vmax.f32 %v3670, %v3734
        %v3767 = vmax.f32 %v3672, %v3735
        %v3768 = vmax.f32 %v3675, %v3736
        %v3769 = vmax.f32 %v3677, %v3737
        %v3770 = vmax.f32 %v3680, %v3738
        %v3771 = vmax.f32 %v3682, %v3739
        %v3772 = vmax.f32 %v3685, %v3740
        %v3773 = vmax.f32 %v3687, %v3741
        %v3774 = vmax.f32 %v3690, %v3742
        %v3775 = vmax.f32 %v3692, %v3743
        %v3776 = vmax.f32 %v3695, %v3744
        %v3777 = vmax.f32 %v3697, %v3745
        %v3778 = vmax.f32 %v3700, %v3746
        %v3779 = vmax.f32 %v3702, %v3747
        %v3780 = vmax.f32 %v3705, %v3748
        %v3781 = vmax.f32 %v3707, %v3749
        %v3782 = vmax.f32 %v3710, %v3750
        %v3783 = vmax.f32 %v3712, %v3751
        %v3784 = vmax.f32 %v3715, %v3752
        %v3785 = vmax.f32 %v3717, %v3753
        %v3786 = vmax.f32 %v3720, %v3754
        %v3787 = vmax.f32 %v3722, %v3755
        %v3788 = vpack.c.bf16 %v3756, %v3756
        %v3789 = vpack.c.bf16 %v3757, %v3757
        %v3790 = vpack.c.bf16 %v3758, %v3758
        %v3791 = vpack.c.bf16 %v3759, %v3759
        %v3792 = vpack.c.bf16 %v3760, %v3760
        %v3793 = vpack.c.bf16 %v3761, %v3761
        %v3794 = vpack.c.bf16 %v3762, %v3762
        %v3795 = vpack.c.bf16 %v3763, %v3763
        %v3796 = vpack.c.bf16 %v3764, %v3764
        %v3797 = vpack.c.bf16 %v3765, %v3765
        %v3798 = vpack.c.bf16 %v3766, %v3766
        %v3799 = vpack.c.bf16 %v3767, %v3767
        %v3800 = vpack.c.bf16 %v3768, %v3768
        %v3801 = vpack.c.bf16 %v3769, %v3769
        %v3802 = vpack.c.bf16 %v3770, %v3770
        %v3803 = vpack.c.bf16 %v3771, %v3771
        %v3804 = vpack.c.bf16 %v3772, %v3772
        %v3805 = vpack.c.bf16 %v3773, %v3773
        %v3806 = vpack.c.bf16 %v3774, %v3774
        %v3807 = vpack.c.bf16 %v3775, %v3775
        %v3808 = vpack.c.bf16 %v3776, %v3776
        %v3809 = vpack.c.bf16 %v3777, %v3777
        %v3810 = vpack.c.bf16 %v3778, %v3778
        %v3811 = vpack.c.bf16 %v3779, %v3779
        %v3812 = vpack.c.bf16 %v3780, %v3780
        %v3813 = vpack.c.bf16 %v3781, %v3781
        %v3814 = vpack.c.bf16 %v3782, %v3782
        %v3815 = vpack.c.bf16 %v3783, %v3783
        %v3816 = vpack.c.bf16 %v3784, %v3784
        %v3817 = vpack.c.bf16 %v3785, %v3785
        %v3818 = vpack.c.bf16 %v3786, %v3786
        %v3819 = vpack.c.bf16 %v3787, %v3787
        %v3820 = vunpack.c.l.bf16 %v3788
        %v3821 = vunpack.c.l.bf16 %v3789
        %v3822 = vunpack.c.l.bf16 %v3790
        %v3823 = vunpack.c.l.bf16 %v3791
        %v3824 = vunpack.c.l.bf16 %v3792
        %v3825 = vunpack.c.l.bf16 %v3793
        %v3826 = vunpack.c.l.bf16 %v3794
        %v3827 = vunpack.c.l.bf16 %v3795
        %v3828 = vunpack.c.l.bf16 %v3796
        %v3829 = vunpack.c.l.bf16 %v3797
        %v3830 = vunpack.c.l.bf16 %v3798
        %v3831 = vunpack.c.l.bf16 %v3799
        %v3832 = vunpack.c.l.bf16 %v3800
        %v3833 = vunpack.c.l.bf16 %v3801
        %v3834 = vunpack.c.l.bf16 %v3802
        %v3835 = vunpack.c.l.bf16 %v3803
        %v3836 = vunpack.c.l.bf16 %v3804
        %v3837 = vunpack.c.l.bf16 %v3805
        %v3838 = vunpack.c.l.bf16 %v3806
        %v3839 = vunpack.c.l.bf16 %v3807
        %v3840 = vunpack.c.l.bf16 %v3808
        %v3841 = vunpack.c.l.bf16 %v3809
        %v3842 = vunpack.c.l.bf16 %v3810
        %v3843 = vunpack.c.l.bf16 %v3811
        %v3844 = vunpack.c.l.bf16 %v3812
        %v3845 = vunpack.c.l.bf16 %v3813
        %v3846 = vunpack.c.l.bf16 %v3814
        %v3847 = vunpack.c.l.bf16 %v3815
        %v3848 = vunpack.c.l.bf16 %v3816
        %v3849 = vunpack.c.l.bf16 %v3817
        %v3850 = vunpack.c.l.bf16 %v3818
        %v3851 = vunpack.c.l.bf16 %v3819
        %v3852 = vld [vmem:[%s13] sm:$0x1]
        %v3854 = vperm.slane %v3852, 0
        %v3856 = vmul.f32 %v3820, %v3854
        %v3857 = vmul.f32 %v3821, %v3854
        %v3858 = vmul.f32 %v3822, %v3854
        %v3859 = vmul.f32 %v3823, %v3854
        %v3860 = vmul.f32 %v3824, %v3854
        %v3861 = vmul.f32 %v3825, %v3854
        %v3862 = vmul.f32 %v3826, %v3854
        %v3863 = vmul.f32 %v3827, %v3854
        %v3864 = vmul.f32 %v3828, %v3854
        %v3865 = vmul.f32 %v3829, %v3854
        %v3866 = vmul.f32 %v3830, %v3854
        %v3867 = vmul.f32 %v3831, %v3854
        %v3868 = vmul.f32 %v3832, %v3854
        %v3869 = vmul.f32 %v3833, %v3854
        %v3870 = vmul.f32 %v3834, %v3854
        %v3871 = vmul.f32 %v3835, %v3854
        %v3872 = vmul.f32 %v3836, %v3854
        %v3873 = vmul.f32 %v3837, %v3854
        %v3874 = vmul.f32 %v3838, %v3854
        %v3875 = vmul.f32 %v3839, %v3854
        %v3876 = vmul.f32 %v3840, %v3854
        %v3877 = vmul.f32 %v3841, %v3854
        %v3878 = vmul.f32 %v3842, %v3854
        %v3879 = vmul.f32 %v3843, %v3854
        %v3880 = vmul.f32 %v3844, %v3854
        %v3881 = vmul.f32 %v3845, %v3854
        %v3882 = vmul.f32 %v3846, %v3854
        %v3883 = vmul.f32 %v3847, %v3854
        %v3884 = vmul.f32 %v3848, %v3854
        %v3885 = vmul.f32 %v3849, %v3854
        %v3886 = vmul.f32 %v3850, %v3854
        %v3887 = vmul.f32 %v3851, %v3854
        %vm3888 = vcmask 261120
        %v3889 = vsel %vm3888, %v3856, 0.0
        %3890 = vadd.xlane.f32.xlu0 %v3889
        %v3891 = vpop.xlane.xlu0 %3890
        %v3892 = vsel %vm3888, %v3857, 0.0
        %3893 = vadd.xlane.f32.xlu0 %v3892
        %v3894 = vpop.xlane.xlu0 %3893
        %v3895 = vsel %vm3888, %v3858, 0.0
        %3896 = vadd.xlane.f32.xlu0 %v3895
        %v3897 = vpop.xlane.xlu0 %3896
        %v3898 = vsel %vm3888, %v3859, 0.0
        %3899 = vadd.xlane.f32.xlu0 %v3898
        %v3900 = vpop.xlane.xlu0 %3899
        %v3901 = vsel %vm3888, %v3860, 0.0
        %3902 = vadd.xlane.f32.xlu0 %v3901
        %v3903 = vpop.xlane.xlu0 %3902
        %v3904 = vsel %vm3888, %v3861, 0.0
        %3905 = vadd.xlane.f32.xlu0 %v3904
        %v3906 = vpop.xlane.xlu0 %3905
        %v3907 = vsel %vm3888, %v3862, 0.0
        %3908 = vadd.xlane.f32.xlu0 %v3907
        %v3909 = vpop.xlane.xlu0 %3908
        %v3910 = vsel %vm3888, %v3863, 0.0
        %3911 = vadd.xlane.f32.xlu0 %v3910
        %v3912 = vpop.xlane.xlu0 %3911
        %v3913 = vsel %vm3888, %v3864, 0.0
        %3914 = vadd.xlane.f32.xlu0 %v3913
        %v3915 = vpop.xlane.xlu0 %3914
        %v3916 = vsel %vm3888, %v3865, 0.0
        %3917 = vadd.xlane.f32.xlu0 %v3916
        %v3918 = vpop.xlane.xlu0 %3917
        %v3919 = vsel %vm3888, %v3866, 0.0
        %3920 = vadd.xlane.f32.xlu0 %v3919
        %v3921 = vpop.xlane.xlu0 %3920
        %v3922 = vsel %vm3888, %v3867, 0.0
        %3923 = vadd.xlane.f32.xlu0 %v3922
        %v3924 = vpop.xlane.xlu0 %3923
        %v3925 = vsel %vm3888, %v3868, 0.0
        %3926 = vadd.xlane.f32.xlu0 %v3925
        %v3927 = vpop.xlane.xlu0 %3926
        %v3928 = vsel %vm3888, %v3869, 0.0
        %3929 = vadd.xlane.f32.xlu0 %v3928
        %v3930 = vpop.xlane.xlu0 %3929
        %v3931 = vsel %vm3888, %v3870, 0.0
        %3932 = vadd.xlane.f32.xlu0 %v3931
        %v3933 = vpop.xlane.xlu0 %3932
        %v3934 = vsel %vm3888, %v3871, 0.0
        %3935 = vadd.xlane.f32.xlu0 %v3934
        %v3936 = vpop.xlane.xlu0 %3935
        %v3937 = vsel %vm3888, %v3872, 0.0
        %3938 = vadd.xlane.f32.xlu0 %v3937
        %v3939 = vpop.xlane.xlu0 %3938
        %v3940 = vsel %vm3888, %v3873, 0.0
        %3941 = vadd.xlane.f32.xlu0 %v3940
        %v3942 = vpop.xlane.xlu0 %3941
        %v3943 = vsel %vm3888, %v3874, 0.0
        %3944 = vadd.xlane.f32.xlu0 %v3943
        %v3945 = vpop.xlane.xlu0 %3944
        %v3946 = vsel %vm3888, %v3875, 0.0
        %3947 = vadd.xlane.f32.xlu0 %v3946
        %v3948 = vpop.xlane.xlu0 %3947
        %v3949 = vsel %vm3888, %v3876, 0.0
        %3950 = vadd.xlane.f32.xlu0 %v3949
        %v3951 = vpop.xlane.xlu0 %3950
        %v3952 = vsel %vm3888, %v3877, 0.0
        %3953 = vadd.xlane.f32.xlu0 %v3952
        %v3954 = vpop.xlane.xlu0 %3953
        %v3955 = vsel %vm3888, %v3878, 0.0
        %3956 = vadd.xlane.f32.xlu0 %v3955
        %v3957 = vpop.xlane.xlu0 %3956
        %v3958 = vsel %vm3888, %v3879, 0.0
        %3959 = vadd.xlane.f32.xlu0 %v3958
        %v3960 = vpop.xlane.xlu0 %3959
        %v3961 = vsel %vm3888, %v3880, 0.0
        %3962 = vadd.xlane.f32.xlu0 %v3961
        %v3963 = vpop.xlane.xlu0 %3962
        %v3964 = vsel %vm3888, %v3881, 0.0
        %3965 = vadd.xlane.f32.xlu0 %v3964
        %v3966 = vpop.xlane.xlu0 %3965
        %v3967 = vsel %vm3888, %v3882, 0.0
        %3968 = vadd.xlane.f32.xlu0 %v3967
        %v3969 = vpop.xlane.xlu0 %3968
        %v3970 = vsel %vm3888, %v3883, 0.0
        %3971 = vadd.xlane.f32.xlu0 %v3970
        %v3972 = vpop.xlane.xlu0 %3971
        %v3973 = vsel %vm3888, %v3884, 0.0
        %3974 = vadd.xlane.f32.xlu0 %v3973
        %v3975 = vpop.xlane.xlu0 %3974
        %v3976 = vsel %vm3888, %v3885, 0.0
        %3977 = vadd.xlane.f32.xlu0 %v3976
        %v3978 = vpop.xlane.xlu0 %3977
        %v3979 = vsel %vm3888, %v3886, 0.0
        %3980 = vadd.xlane.f32.xlu0 %v3979
        %v3981 = vpop.xlane.xlu0 %3980
        %v3982 = vsel %vm3888, %v3887, 0.0
        %3983 = vadd.xlane.f32.xlu0 %v3982
        %v3984 = vpop.xlane.xlu0 %3983
        %v3985 = vld [vmem:[#allocation2] sm:$0x1]
        %v3987 = vperm.slane %v3985, 0
        %v3989 = vadd.f32 %v3891, %v3987
        %v3990 = vadd.f32 %v3894, %v3987
        %v3991 = vadd.f32 %v3897, %v3987
        %v3992 = vadd.f32 %v3900, %v3987
        %v3993 = vadd.f32 %v3903, %v3987
        %v3994 = vadd.f32 %v3906, %v3987
        %v3995 = vadd.f32 %v3909, %v3987
        %v3996 = vadd.f32 %v3912, %v3987
        %v3997 = vadd.f32 %v3915, %v3987
        %v3998 = vadd.f32 %v3918, %v3987
        %v3999 = vadd.f32 %v3921, %v3987
        %v4000 = vadd.f32 %v3924, %v3987
        %v4001 = vadd.f32 %v3927, %v3987
        %v4002 = vadd.f32 %v3930, %v3987
        %v4003 = vadd.f32 %v3933, %v3987
        %v4004 = vadd.f32 %v3936, %v3987
        %v4005 = vadd.f32 %v3939, %v3987
        %v4006 = vadd.f32 %v3942, %v3987
        %v4007 = vadd.f32 %v3945, %v3987
        %v4008 = vadd.f32 %v3948, %v3987
        %v4009 = vadd.f32 %v3951, %v3987
        %v4010 = vadd.f32 %v3954, %v3987
        %v4011 = vadd.f32 %v3957, %v3987
        %v4012 = vadd.f32 %v3960, %v3987
        %v4013 = vadd.f32 %v3963, %v3987
        %v4014 = vadd.f32 %v3966, %v3987
        %v4015 = vadd.f32 %v3969, %v3987
        %v4016 = vadd.f32 %v3972, %v3987
        %v4017 = vadd.f32 %v3975, %v3987
        %v4018 = vadd.f32 %v3978, %v3987
        %v4019 = vadd.f32 %v3981, %v3987
        %v4020 = vadd.f32 %v3984, %v3987
        %vm4021 = vcmask 7168
        %4022 = vst.msk [vmem:[%s586] sm:$0xff] %vm4021, %v3989
        %4023 = vst.msk [vmem:[%s586 + $0x8] sm:$0xff] %vm4021, %v3990
        %4024 = vst.msk [vmem:[%s586 + $0x10] sm:$0xff] %vm4021, %v3991
        %4025 = vst.msk [vmem:[%s586 + $0x18] sm:$0xff] %vm4021, %v3992
        %4026 = vst.msk [vmem:[%s586 + $0x20] sm:$0xff] %vm4021, %v3993
        %4027 = vst.msk [vmem:[%s586 + $0x28] sm:$0xff] %vm4021, %v3994
        %4028 = vst.msk [vmem:[%s586 + $0x30] sm:$0xff] %vm4021, %v3995
        %4029 = vst.msk [vmem:[%s586 + $0x38] sm:$0xff] %vm4021, %v3996
        %4030 = vst.msk [vmem:[%s586 + $0x40] sm:$0xff] %vm4021, %v3997
        %4031 = vst.msk [vmem:[%s586 + $0x48] sm:$0xff] %vm4021, %v3998
        %4032 = vst.msk [vmem:[%s586 + $0x50] sm:$0xff] %vm4021, %v3999
        %4033 = vst.msk [vmem:[%s586 + $0x58] sm:$0xff] %vm4021, %v4000
        %4034 = vst.msk [vmem:[%s586 + $0x60] sm:$0xff] %vm4021, %v4001
        %4035 = vst.msk [vmem:[%s586 + $0x68] sm:$0xff] %vm4021, %v4002
        %4036 = vst.msk [vmem:[%s586 + $0x70] sm:$0xff] %vm4021, %v4003
        %4037 = vst.msk [vmem:[%s586 + $0x78] sm:$0xff] %vm4021, %v4004
        %4038 = vst.msk [vmem:[%s586 + $0x80] sm:$0xff] %vm4021, %v4005
        %4039 = vst.msk [vmem:[%s586 + $0x88] sm:$0xff] %vm4021, %v4006
        %4040 = vst.msk [vmem:[%s586 + $0x90] sm:$0xff] %vm4021, %v4007
        %4041 = vst.msk [vmem:[%s586 + $0x98] sm:$0xff] %vm4021, %v4008
        %4042 = vst.msk [vmem:[%s586 + $0xa0] sm:$0xff] %vm4021, %v4009
        %4043 = vst.msk [vmem:[%s586 + $0xa8] sm:$0xff] %vm4021, %v4010
        %4044 = vst.msk [vmem:[%s586 + $0xb0] sm:$0xff] %vm4021, %v4011
        %4045 = vst.msk [vmem:[%s586 + $0xb8] sm:$0xff] %vm4021, %v4012
        %4046 = vst.msk [vmem:[%s586 + $0xc0] sm:$0xff] %vm4021, %v4013
        %4047 = vst.msk [vmem:[%s586 + $0xc8] sm:$0xff] %vm4021, %v4014
        %4048 = vst.msk [vmem:[%s586 + $0xd0] sm:$0xff] %vm4021, %v4015
        %4049 = vst.msk [vmem:[%s586 + $0xd8] sm:$0xff] %vm4021, %v4016
        %4050 = vst.msk [vmem:[%s586 + $0xe0] sm:$0xff] %vm4021, %v4017
        %4051 = vst.msk [vmem:[%s586 + $0xe8] sm:$0xff] %vm4021, %v4018
        %4052 = vst.msk [vmem:[%s586 + $0xf0] sm:$0xff] %vm4021, %v4019
        %4053 = vst.msk [vmem:[%s586 + $0xf8] sm:$0xff] %vm4021, %v4020
        %s4054 = smul.u32 32, %s33
        %p4055 = scmp.lt.s32.totalorder %s4054, 63
        %s4056 = scalar_select %p4055, %s4054, 63
        %s4057 = smul.addr %s4056, 8
        %s4058 = scalar_lea.vmem %s15, %s4057
        // Predicated region
        $region101: #{tpu_custom_call.1} parent=79 // pred_check
          %p4059 = pneg %p371
        $region102: #{tpu_custom_call.1} parent=79 // pred_check_branch
          %4061 = sbr.rel (%p4059) target = $region104
        $region103: #{tpu_custom_call.1} parent=79 // pred_region
          %s4062 = smul.u32 32, %s33
        $region104: #{tpu_custom_call.1} parent=79 // pred_fallthru
          _
      $region80: #{tpu_custom_call.1} parent=5 // pred_fallthru
        _
      %p4063 = scmp.le.s32.totalorder 2, %s28
      // Predicated region
      $region105: #{tpu_custom_call.1} parent=5 // pred_check
        %p4064 = pneg %p4063
      $region106: #{tpu_custom_call.1} parent=5 // pred_check_branch
        %4066 = sbr.rel (%p4064) target = $region108
      $region107: #{tpu_custom_call.1} parent=5 // pred_region
        %s4067 = ssub.s32 %s28, 2
        // Predicated region
        $region109: #{tpu_custom_call.1} parent=107 // pred_check
          %p4068 = pneg %p377
        $region110: #{tpu_custom_call.1} parent=107 // pred_check_branch
          %4070 = sbr.rel (%p4068) target = $region112
        $region111: #{tpu_custom_call.1} parent=107 // pred_region
          %s4071 = smul.u32 32, %s34
          %p4072 = scmp.lt.s32.totalorder %s4071, 63
          %s4073 = scalar_select %p4072, %s4071, 63
          %s4074 = smul.addr %s4073, 8
          %s4075 = scalar_lea.vmem %s15, %s4074
        $region112: #{tpu_custom_call.1} parent=107 // pred_fallthru
          _
      $region108: #{tpu_custom_call.1} parent=5 // pred_fallthru
        _
    $region6: #{tpu_custom_call.1} parent=1 // loop_footer
      %s32 = sadd.s32 1, %s28
    $region7: #{tpu_custom_call.1} parent=1 // loop_footer_branch
      %27 = sbr.rel target = $region3
    $region8: #{tpu_custom_call.1} parent=1 // loop_exit
      _
    %4076 = vsyncpa [#allocation4], 1
    %s4077 = scalar_lea.sflag [#allocation4], 1
    %4078 = vsyncpa %s4077, 1
    %4079 = vsyncpa [#allocation6], 1
    %4080 = vsyncpa [#allocation9], 1

</llo_original>
